<compile_context>
chip_gen: v6e
topology: v6e:2x2x1
jax: 0.10.0
libtpu: 0.0.40
codegen_flags: <defaults>
</compile_context>

<pallas_src>
import functools

import jax
import jax.numpy as jnp
from jax import lax
from jax.experimental import pallas as pl
from jax.experimental.pallas import tpu as pltpu

MXU_DTYPE = jnp.bfloat16          # MXU operand dtype (f32 accumulate everywhere)
VMEM_LIMIT = 64 * 1024 * 1024


def _cparams(n_grid_dims):
    return pltpu.CompilerParams(
        dimension_semantics=("parallel",) * n_grid_dims,
        vmem_limit_bytes=VMEM_LIMIT)


def _pick_row_tile(m, target=512):
    t = min(target, m)
    while t > 8 and m % t:
        t //= 2
    return t if m % t == 0 else m


# ----------------------------------------------------------------------------
# Kernel 1: conv1 (1x1) + bn1 + relu, split outputs (3x3-half / 1x1-half)
# ----------------------------------------------------------------------------
def _conv1_split_kernel(x_ref, w3_ref, w1_ref, s3_ref, b3_ref, s1_ref, b1_ref,
                        o3_ref, o1_ref):
    x = x_ref[...].astype(w3_ref.dtype)                       # bf16 MXU operand
    y3 = jnp.dot(x, w3_ref[...], preferred_element_type=jnp.float32)
    y3 = jnp.maximum(y3 * s3_ref[...] + b3_ref[...], 0.0)
    o3_ref[...] = y3.astype(o3_ref.dtype)
    y1 = jnp.dot(x, w1_ref[...], preferred_element_type=jnp.float32)
    y1 = jnp.maximum(y1 * s1_ref[...] + b1_ref[...], 0.0)
    o1_ref[...] = y1.astype(o1_ref.dtype)


def conv1_split(x_flat, params):
    M, Cin = x_flat.shape
    c3 = params["c1w3"].shape[1]
    c1 = params["c1w1"].shape[1]
    tm = _pick_row_tile(M)
    const = lambda shape: pl.BlockSpec(shape, lambda i: (0,) * len(shape))
    return pl.pallas_call(
        _conv1_split_kernel,
        out_shape=(jax.ShapeDtypeStruct((M, c3), MXU_DTYPE),
                   jax.ShapeDtypeStruct((M, c1), MXU_DTYPE)),
        grid=(M // tm,),
        in_specs=[
            pl.BlockSpec((tm, Cin), lambda i: (i, 0)),
            const((Cin, c3)), const((Cin, c1)),
            const((1, c3)), const((1, c3)),
            const((1, c1)), const((1, c1)),
        ],
        out_specs=(pl.BlockSpec((tm, c3), lambda i: (i, 0)),
                   pl.BlockSpec((tm, c1), lambda i: (i, 0))),
        compiler_params=_cparams(1),
    )(x_flat, params["c1w3"], params["c1w1"],
      params["bn1_s3"], params["bn1_b3"], params["bn1_s1"], params["bn1_b1"])


# ----------------------------------------------------------------------------
# Kernel 2: fused SPConv_3x3 (gwc+pwc as one wide-K matmul, 1x1 branch,
#           SPConv bn1/bn2, softmax ratio mix) + BottleNeck bn2 + relu
# ----------------------------------------------------------------------------
def _spconv_kernel(x3p_ref, x1_ref, wg_ref, w11_ref,
                   sp1s_ref, sp1b_ref, o1s_ref, o1b_ref,
                   bn2s_ref, bn2b_ref, o_ref, *, H, W):
    c3 = x3p_ref.shape[-1]
    HW = H * W
    x3p = x3p_ref[0]                                      # (H+2, W+2, c3) bf16
    # in-VMEM im2col: 9 shifted halo views -> (HW, 9*c3), one wide-K matmul
    taps = [x3p[kh:kh + H, kw:kw + W, :] for kh in range(3) for kw in range(3)]
    tapmat = jnp.concatenate(taps, axis=-1).reshape(HW, 9 * c3)
    # gwc (block-diagonal dense, groups=2) + pwc (folded into centre tap), bn1
    out3 = jnp.dot(tapmat, wg_ref[...], preferred_element_type=jnp.float32)
    out3 = out3 * sp1s_ref[...] + sp1b_ref[...]
    # conv1x1 branch (+bias) with SPConv bn2 folded into one affine
    out1 = jnp.dot(x1_ref[0], w11_ref[...], preferred_element_type=jnp.float32)
    out1 = out1 * o1s_ref[...] + o1b_ref[...]
    # AdaptiveAvgPool2d(1) over full HW (grid is over batch only) + softmax
    r3 = jnp.mean(out3, axis=0, keepdims=True)            # (1, outC)
    r1 = jnp.mean(out1, axis=0, keepdims=True)
    m = jnp.maximum(r3, r1)
    e3 = jnp.exp(r3 - m)
    e1 = jnp.exp(r1 - m)
    inv = 1.0 / (e3 + e1)
    sp = out1 * (e1 * inv) + out3 * (e3 * inv)
    # BottleNeck bn2 + relu
    y = jnp.maximum(sp * bn2s_ref[...] + bn2b_ref[...], 0.0)
    o_ref[0] = y.astype(o_ref.dtype)


def spconv_block(x3_pad, x1_img, params, H, W):
    B = x3_pad.shape[0]
    c3 = x3_pad.shape[-1]
    c1 = x1_img.shape[-1]
    outC = params["w11"].shape[1]
    HW = H * W
    kern = functools.partial(_spconv_kernel, H=H, W=W)
    const = lambda shape: pl.BlockSpec(shape, lambda b: (0,) * len(shape))
    return pl.pallas_call(
        kern,
        out_shape=jax.ShapeDtypeStruct((B, HW, outC), MXU_DTYPE),
        grid=(B,),
        in_specs=[
            pl.BlockSpec((1, H + 2, W + 2, c3), lambda b: (b, 0, 0, 0)),
            pl.BlockSpec((1, HW, c1), lambda b: (b, 0, 0)),
            const((9 * c3, outC)),
            const((c1, outC)),
            const((1, outC)), const((1, outC)),
            const((1, outC)), const((1, outC)),
            const((1, outC)), const((1, outC)),
        ],
        out_specs=pl.BlockSpec((1, HW, outC), lambda b: (b, 0, 0)),
        compiler_params=_cparams(1),
    )(x3_pad, x1_img, params["wg"], params["w11"],
      params["sp1_s"], params["sp1_b"], params["out1_s"], params["out1_b"],
      params["bn2_s"], params["bn2_b"])


# ----------------------------------------------------------------------------
# Kernel 3: conv3 (1x1) + bn3 + residual add + relu (fused epilogue)
# ----------------------------------------------------------------------------
def _conv3_residual_kernel(x_ref, w_ref, s_ref, b_ref, res_ref, o_ref):
    y = jnp.dot(x_ref[...], w_ref[...], preferred_element_type=jnp.float32)
    y = y * s_ref[...] + b_ref[...]
    o_ref[...] = jnp.maximum(y + res_ref[...], 0.0)


def conv3_residual(sp_flat, res_flat, params):
    M, outC = sp_flat.shape
    N = params["c3w"].shape[1]
    tm = _pick_row_tile(M)
    const = lambda shape: pl.BlockSpec(shape, lambda i: (0,) * len(shape))
    return pl.pallas_call(
        _conv3_residual_kernel,
        out_shape=jax.ShapeDtypeStruct((M, N), jnp.float32),
        grid=(M // tm,),
        in_specs=[
            pl.BlockSpec((tm, outC), lambda i: (i, 0)),
            const((outC, N)),
            const((1, N)), const((1, N)),
            pl.BlockSpec((tm, N), lambda i: (i, 0)),
        ],
        out_specs=pl.BlockSpec((tm, N), lambda i: (i, 0)),
        compiler_params=_cparams(1),
    )(sp_flat, params["c3w"], params["bn3_s"], params["bn3_b"], res_flat)


# ----------------------------------------------------------------------------
# Parameter construction (deterministic, synthetic)
# ----------------------------------------------------------------------------
def _bn_affine(key, c):
    k1, k2, k3, k4 = jax.random.split(key, 4)
    gamma = 1.0 + 0.1 * jax.random.normal(k1, (c,), jnp.float32)
    beta = 0.1 * jax.random.normal(k2, (c,), jnp.float32)
    mean = 0.1 * jax.random.normal(k3, (c,), jnp.float32)
    var = jnp.abs(jax.random.normal(k4, (c,), jnp.float32)) + 0.5
    scale = gamma / jnp.sqrt(var + 1e-5)
    shift = beta - mean * scale
    return scale, shift


def init_raw_params(key, inC, outC):
    c3 = outC // 2          # SPConv inplanes_3x3 (ratio=0.5)
    c1 = outC - c3          # SPConv inplanes_1x1
    ks = jax.random.split(key, 11)
    raw = {}
    raw["conv1_w"] = 0.2 * jax.random.normal(ks[0], (outC, inC, 1, 1), jnp.float32)
    raw["bn1_s"], raw["bn1_b"] = _bn_affine(ks[1], outC)
    raw["gwc_w"] = 0.2 * jax.random.normal(ks[2], (outC, c3 // 2, 3, 3), jnp.float32)
    raw["pwc_w"] = 0.2 * jax.random.normal(ks[3], (outC, c3, 1, 1), jnp.float32)
    raw["c11_w"] = 0.2 * jax.random.normal(ks[4], (outC, c1, 1, 1), jnp.float32)
    raw["c11_b"] = 0.1 * jax.random.normal(ks[5], (outC,), jnp.float32)
    raw["sp_bn1_s"], raw["sp_bn1_b"] = _bn_affine(ks[6], outC)
    raw["sp_bn2_s"], raw["sp_bn2_b"] = _bn_affine(ks[7], outC)
    raw["bn2_s"], raw["bn2_b"] = _bn_affine(ks[8], outC)
    raw["conv3_w"] = 0.2 * jax.random.normal(ks[9], (4 * outC, outC, 1, 1), jnp.float32)
    raw["bn3_s"], raw["bn3_b"] = _bn_affine(ks[10], 4 * outC)
    return raw


def gwc_dense(w_gwc, cin3, cout):
    # PyTorch grouped conv weight (cout, cin3//2, 3, 3), groups=2 -> dense
    # block-diagonal weight laid out as (9, cin3, cout), tap index = kh*3+kw.
    cg_in = cin3 // 2
    cg_out = cout // 2
    dense = jnp.zeros((3, 3, cin3, cout), jnp.float32)
    for g in range(2):
        blk = w_gwc[g * cg_out:(g + 1) * cg_out]          # (cg_out, cg_in, 3, 3)
        blk = jnp.transpose(blk, (2, 3, 1, 0))            # (3, 3, cg_in, cg_out)
        dense = dense.at[:, :, g * cg_in:(g + 1) * cg_in,
                         g * cg_out:(g + 1) * cg_out].set(blk)
    return dense.reshape(9, cin3, cout)


def derive_params(raw, inC, outC):
    c3 = outC // 2
    c1 = outC - c3
    p = {}
    w1 = jnp.transpose(raw["conv1_w"][:, :, 0, 0])        # (inC, outC)
    p["c1w3"] = w1[:, :c3].astype(MXU_DTYPE)
    p["c1w1"] = w1[:, c3:].astype(MXU_DTYPE)
    p["bn1_s3"] = raw["bn1_s"][:c3].reshape(1, c3)
    p["bn1_b3"] = raw["bn1_b"][:c3].reshape(1, c3)
    p["bn1_s1"] = raw["bn1_s"][c3:].reshape(1, c1)
    p["bn1_b1"] = raw["bn1_b"][c3:].reshape(1, c1)
    # grouped 3x3 -> dense block-diagonal taps, pwc 1x1 folded into centre tap
    wg = gwc_dense(raw["gwc_w"], c3, outC)                # (9, c3, outC) f32
    pwc = jnp.transpose(raw["pwc_w"][:, :, 0, 0])         # (c3, outC)
    wg = wg.at[4].add(pwc)
    p["wg"] = wg.reshape(9 * c3, outC).astype(MXU_DTYPE)
    p["w11"] = jnp.transpose(raw["c11_w"][:, :, 0, 0]).astype(MXU_DTYPE)
    p["sp1_s"] = raw["sp_bn1_s"].reshape(1, outC)
    p["sp1_b"] = raw["sp_bn1_b"].reshape(1, outC)
    # SPConv conv1x1 bias folded into its bn2 affine
    p["out1_s"] = raw["sp_bn2_s"].reshape(1, outC)
    p["out1_b"] = (raw["sp_bn2_b"] + raw["c11_b"] * raw["sp_bn2_s"]).reshape(1, outC)
    p["bn2_s"] = raw["bn2_s"].reshape(1, outC)
    p["bn2_b"] = raw["bn2_b"].reshape(1, outC)
    p["c3w"] = jnp.transpose(raw["conv3_w"][:, :, 0, 0]).astype(MXU_DTYPE)
    p["bn3_s"] = raw["bn3_s"].reshape(1, 4 * outC)
    p["bn3_b"] = raw["bn3_b"].reshape(1, 4 * outC)
    return p


# ----------------------------------------------------------------------------
# BottleNeck forward (3 fused Pallas calls)
# ----------------------------------------------------------------------------
def bottleneck_forward(x_nchw, params):
    B, Cin, H, W = x_nchw.shape
    c3 = params["c1w3"].shape[1]
    c1 = params["c1w1"].shape[1]
    outC = params["w11"].shape[1]
    expC = params["c3w"].shape[1]
    M = B * H * W
    HW = H * W

    x_nhwc = jnp.transpose(x_nchw, (0, 2, 3, 1)).astype(jnp.float32)   # NHWC
    x_flat = x_nhwc.reshape(M, Cin)

    # conv1 + bn1 + relu, split into the SPConv 3x3 / 1x1 channel halves
    x3_flat, x1_flat = conv1_split(x_flat, params)

    # 1-px halo pad (single cheap pass; no 9x im2col materialization in HBM)
    x3_pad = jnp.pad(x3_flat.reshape(B, H, W, c3),
                     ((0, 0), (1, 1), (1, 1), (0, 0)))
    x1_img = x1_flat.reshape(B, HW, c1)

    # fused SPConv_3x3 + BottleNeck bn2 + relu  -> (B, HW, outC) bf16
    sp = spconv_block(x3_pad, x1_img, params, H, W)

    # conv3 + bn3 + residual add + relu (downsample=None: Cin == 4*outC)
    out = conv3_residual(sp.reshape(M, outC), x_flat, params)

    return jnp.transpose(out.reshape(B, H, W, expC), (0, 3, 1, 2))


# ----------------------------------------------------------------------------
# Pure-JAX NCHW f32 reference (mirrors the PyTorch forward) for validation
# ----------------------------------------------------------------------------
def reference_forward(x, raw, outC):
    hp = lax.Precision.HIGHEST

    def conv(z, w, pad, groups=1, b=None):
        y = lax.conv_general_dilated(z, w, (1, 1), pad,
                                     dimension_numbers=("NCHW", "OIHW", "NCHW"),
                                     feature_group_count=groups, precision=hp)
        if b is not None:
            y = y + b.reshape(1, -1, 1, 1)
        return y

    def bn(z, s, sh):
        return z * s.reshape(1, -1, 1, 1) + sh.reshape(1, -1, 1, 1)

    h = jax.nn.relu(bn(conv(x, raw["conv1_w"], "VALID"), raw["bn1_s"], raw["bn1_b"]))
    c3 = outC // 2
    x3, x1 = h[:, :c3], h[:, c3:]
    gwc = conv(x3, raw["gwc_w"], ((1, 1), (1, 1)), groups=2)
    pwc = conv(x3, raw["pwc_w"], "VALID")
    out3 = bn(gwc + pwc, raw["sp_bn1_s"], raw["sp_bn1_b"])
    out1 = bn(conv(x1, raw["c11_w"], "VALID", b=raw["c11_b"]),
              raw["sp_bn2_s"], raw["sp_bn2_b"])
    r3 = out3.mean(axis=(2, 3))
    r1 = out1.mean(axis=(2, 3))
    sm = jax.nn.softmax(jnp.stack([r3, r1], axis=2), axis=2)
    sp = out1 * sm[:, :, 1][:, :, None, None] + out3 * sm[:, :, 0][:, :, None, None]
    h2 = jax.nn.relu(bn(sp, raw["bn2_s"], raw["bn2_b"]))
    h3 = bn(conv(h2, raw["conv3_w"], "VALID"), raw["bn3_s"], raw["bn3_b"])
    return jax.nn.relu(h3 + x)


if __name__ == "__main__":
    key = jax.random.PRNGKey(0)
    kx, kp = jax.random.split(key)

    B, H, W = 4, 16, 16
    outC = 16
    inC = 4 * outC  # downsample=None -> residual add requires inC == 4*outC

    x = jax.random.normal(kx, (B, inC, H, W), jnp.float32)
    raw = init_raw_params(kp, inC, outC)
    params = derive_params(raw, inC, outC)

    fwd = jax.jit(bottleneck_forward)
    out = jax.block_until_ready(fwd(x, params))

    ref = reference_forward(x, raw, outC)
    err = float(jnp.max(jnp.abs(out - ref)))
    scale = max(1.0, float(jnp.max(jnp.abs(ref))))
    assert out.shape == (B, 4 * outC, H, W), out.shape
    # bf16 MXU operands (f32 accumulate) -> relative-to-max tolerance
    assert err < 2e-2 * scale, f"max abs err {err} (ref max {scale})"
    print("KERNEL_OK")
</pallas_src>

<mosaic_0001>
module attributes {stable_mosaic.version = 11 : i64} {
  func.func @_conv1_split_kernel(%arg0: i32, %arg1: memref<512x64xf32, #tpu.memory_space<vmem>>, %arg2: memref<64x8xbf16, #tpu.memory_space<vmem>>, %arg3: memref<64x8xbf16, #tpu.memory_space<vmem>>, %arg4: memref<1x8xf32, #tpu.memory_space<vmem>>, %arg5: memref<1x8xf32, #tpu.memory_space<vmem>>, %arg6: memref<1x8xf32, #tpu.memory_space<vmem>>, %arg7: memref<1x8xf32, #tpu.memory_space<vmem>>, %arg8: memref<512x8xbf16, #tpu.memory_space<vmem>>, %arg9: memref<512x8xbf16, #tpu.memory_space<vmem>>) attributes {dimension_semantics = [#tpu.dimension_semantics<parallel>], iteration_bounds = array<i64: 2>, scalar_prefetch = 0 : i64, scratch_operands = 0 : i64, tpu.core_type = #tpu.core_type<tc>, window_params = [{transform_indices = @transform_0, window_bounds = array<i64: 512, 64>}, {pipeline_mode = #tpu.pipeline_mode<synchronous>, transform_indices = @transform_1, window_bounds = array<i64: 64, 8>}, {pipeline_mode = #tpu.pipeline_mode<synchronous>, transform_indices = @transform_2, window_bounds = array<i64: 64, 8>}, {pipeline_mode = #tpu.pipeline_mode<synchronous>, transform_indices = @transform_3, window_bounds = array<i64: 1, 8>}, {pipeline_mode = #tpu.pipeline_mode<synchronous>, transform_indices = @transform_4, window_bounds = array<i64: 1, 8>}, {pipeline_mode = #tpu.pipeline_mode<synchronous>, transform_indices = @transform_5, window_bounds = array<i64: 1, 8>}, {pipeline_mode = #tpu.pipeline_mode<synchronous>, transform_indices = @transform_6, window_bounds = array<i64: 1, 8>}, {transform_indices = @transform_7, window_bounds = array<i64: 512, 8>}, {transform_indices = @transform_8, window_bounds = array<i64: 512, 8>}]} {
    %c0 = arith.constant 0 : index
    %c0_0 = arith.constant 0 : index
    %0 = vector.load %arg1[%c0, %c0_0] : memref<512x64xf32, #tpu.memory_space<vmem>>, vector<512x64xf32>
    %1 = arith.truncf %0 : vector<512x64xf32> to vector<512x64xbf16>
    %c0_1 = arith.constant 0 : index
    %c0_2 = arith.constant 0 : index
    %2 = vector.load %arg2[%c0_1, %c0_2] : memref<64x8xbf16, #tpu.memory_space<vmem>>, vector<64x8xbf16>
    %cst = arith.constant dense<0.000000e+00> : vector<512x8xf32>
    %3 = tpu.matmul %1, %2, %cst {dimension_numbers = #tpu.dot_dimension_numbers<[1], [0], [0], [1], [0, 0, 1, 1], [], []>} : vector<512x64xbf16>, vector<64x8xbf16>, vector<512x8xf32> -> vector<512x8xf32>
    %c0_3 = arith.constant 0 : index
    %c0_4 = arith.constant 0 : index
    %4 = vector.load %arg4[%c0_3, %c0_4] : memref<1x8xf32, #tpu.memory_space<vmem>>, vector<1x8xf32>
    %5 = vector.broadcast %4 : vector<1x8xf32> to vector<512x8xf32>
    %6 = arith.mulf %3, %5 : vector<512x8xf32>
    %c0_5 = arith.constant 0 : index
    %c0_6 = arith.constant 0 : index
    %7 = vector.load %arg5[%c0_5, %c0_6] : memref<1x8xf32, #tpu.memory_space<vmem>>, vector<1x8xf32>
    %8 = vector.broadcast %7 : vector<1x8xf32> to vector<512x8xf32>
    %9 = arith.addf %6, %8 : vector<512x8xf32>
    %cst_7 = arith.constant 0.000000e+00 : f32
    %10 = vector.broadcast %cst_7 : f32 to vector<512x8xf32>
    %11 = arith.maximumf %9, %10 : vector<512x8xf32>
    %12 = arith.truncf %11 : vector<512x8xf32> to vector<512x8xbf16>
    %c0_8 = arith.constant 0 : index
    %c0_9 = arith.constant 0 : index
    %13 = vector.load %arg8[%c0_8, %c0_9] : memref<512x8xbf16, #tpu.memory_space<vmem>>, vector<512x8xbf16>
    tpu.vector_store %arg8[%c0_8, %c0_9], %12 {strides = array<i32>} : memref<512x8xbf16, #tpu.memory_space<vmem>>, vector<512x8xbf16>,
    %c0_10 = arith.constant 0 : index
    %c0_11 = arith.constant 0 : index
    %14 = vector.load %arg3[%c0_10, %c0_11] : memref<64x8xbf16, #tpu.memory_space<vmem>>, vector<64x8xbf16>
    %cst_12 = arith.constant dense<0.000000e+00> : vector<512x8xf32>
    %15 = tpu.matmul %1, %14, %cst_12 {dimension_numbers = #tpu.dot_dimension_numbers<[1], [0], [0], [1], [0, 0, 1, 1], [], []>} : vector<512x64xbf16>, vector<64x8xbf16>, vector<512x8xf32> -> vector<512x8xf32>
    %c0_13 = arith.constant 0 : index
    %c0_14 = arith.constant 0 : index
    %16 = vector.load %arg6[%c0_13, %c0_14] : memref<1x8xf32, #tpu.memory_space<vmem>>, vector<1x8xf32>
    %17 = vector.broadcast %16 : vector<1x8xf32> to vector<512x8xf32>
    %18 = arith.mulf %15, %17 : vector<512x8xf32>
    %c0_15 = arith.constant 0 : index
    %c0_16 = arith.constant 0 : index
    %19 = vector.load %arg7[%c0_15, %c0_16] : memref<1x8xf32, #tpu.memory_space<vmem>>, vector<1x8xf32>
    %20 = vector.broadcast %19 : vector<1x8xf32> to vector<512x8xf32>
    %21 = arith.addf %18, %20 : vector<512x8xf32>
    %cst_17 = arith.constant 0.000000e+00 : f32
    %22 = vector.broadcast %cst_17 : f32 to vector<512x8xf32>
    %23 = arith.maximumf %21, %22 : vector<512x8xf32>
    %24 = arith.truncf %23 : vector<512x8xf32> to vector<512x8xbf16>
    %c0_18 = arith.constant 0 : index
    %c0_19 = arith.constant 0 : index
    %25 = vector.load %arg9[%c0_18, %c0_19] : memref<512x8xbf16, #tpu.memory_space<vmem>>, vector<512x8xbf16>
    tpu.vector_store %arg9[%c0_18, %c0_19], %24 {strides = array<i32>} : memref<512x8xbf16, #tpu.memory_space<vmem>>, vector<512x8xbf16>,
    return
  }
  func.func @transform_0(%arg0: i32) -> (i32, i32) {
    %c0_i32 = arith.constant 0 : i32
    %c0_i32_0 = arith.constant 0 : i32
    return %arg0, %c0_i32 : i32, i32
  }
  func.func @transform_1(%arg0: i32) -> (i32, i32) {
    %c0_i32 = arith.constant 0 : i32
    %c0_i32_0 = arith.constant 0 : i32
    %c0_i32_1 = arith.constant 0 : i32
    return %c0_i32, %c0_i32_0 : i32, i32
  }
  func.func @transform_2(%arg0: i32) -> (i32, i32) {
    %c0_i32 = arith.constant 0 : i32
    %c0_i32_0 = arith.constant 0 : i32
    %c0_i32_1 = arith.constant 0 : i32
    return %c0_i32, %c0_i32_0 : i32, i32
  }
  func.func @transform_3(%arg0: i32) -> (i32, i32) {
    %c0_i32 = arith.constant 0 : i32
    %c0_i32_0 = arith.constant 0 : i32
    %c0_i32_1 = arith.constant 0 : i32
    return %c0_i32, %c0_i32_0 : i32, i32
  }
  func.func @transform_4(%arg0: i32) -> (i32, i32) {
    %c0_i32 = arith.constant 0 : i32
    %c0_i32_0 = arith.constant 0 : i32
    %c0_i32_1 = arith.constant 0 : i32
    return %c0_i32, %c0_i32_0 : i32, i32
  }
  func.func @transform_5(%arg0: i32) -> (i32, i32) {
    %c0_i32 = arith.constant 0 : i32
    %c0_i32_0 = arith.constant 0 : i32
    %c0_i32_1 = arith.constant 0 : i32
    return %c0_i32, %c0_i32_0 : i32, i32
  }
  func.func @transform_6(%arg0: i32) -> (i32, i32) {
    %c0_i32 = arith.constant 0 : i32
    %c0_i32_0 = arith.constant 0 : i32
    %c0_i32_1 = arith.constant 0 : i32
    return %c0_i32, %c0_i32_0 : i32, i32
  }
  func.func @transform_7(%arg0: i32) -> (i32, i32) {
    %c0_i32 = arith.constant 0 : i32
    %c0_i32_0 = arith.constant 0 : i32
    return %arg0, %c0_i32 : i32, i32
  }
  func.func @transform_8(%arg0: i32) -> (i32, i32) {
    %c0_i32 = arith.constant 0 : i32
    %c0_i32_0 = arith.constant 0 : i32
    return %arg0, %c0_i32 : i32, i32
  }
}

module attributes {stable_mosaic.version = 11 : i64} {
  func.func @_conv3_residual_kernel(%arg0: i32, %arg1: memref<512x16xbf16, #tpu.memory_space<vmem>>, %arg2: memref<16x64xbf16, #tpu.memory_space<vmem>>, %arg3: memref<1x64xf32, #tpu.memory_space<vmem>>, %arg4: memref<1x64xf32, #tpu.memory_space<vmem>>, %arg5: memref<512x64xf32, #tpu.memory_space<vmem>>, %arg6: memref<512x64xf32, #tpu.memory_space<vmem>>) attributes {dimension_semantics = [#tpu.dimension_semantics<parallel>], iteration_bounds = array<i64: 2>, scalar_prefetch = 0 : i64, scratch_operands = 0 : i64, tpu.core_type = #tpu.core_type<tc>, window_params = [{transform_indices = @transform_0, window_bounds = array<i64: 512, 16>}, {pipeline_mode = #tpu.pipeline_mode<synchronous>, transform_indices = @transform_1, window_bounds = array<i64: 16, 64>}, {pipeline_mode = #tpu.pipeline_mode<synchronous>, transform_indices = @transform_2, window_bounds = array<i64: 1, 64>}, {pipeline_mode = #tpu.pipeline_mode<synchronous>, transform_indices = @transform_3, window_bounds = array<i64: 1, 64>}, {transform_indices = @transform_4, window_bounds = array<i64: 512, 64>}, {transform_indices = @transform_5, window_bounds = array<i64: 512, 64>}]} {
    %c0 = arith.constant 0 : index
    %c0_0 = arith.constant 0 : index
    %0 = vector.load %arg1[%c0, %c0_0] : memref<512x16xbf16, #tpu.memory_space<vmem>>, vector<512x16xbf16>
    %c0_1 = arith.constant 0 : index
    %c0_2 = arith.constant 0 : index
    %1 = vector.load %arg2[%c0_1, %c0_2] : memref<16x64xbf16, #tpu.memory_space<vmem>>, vector<16x64xbf16>
    %cst = arith.constant dense<0.000000e+00> : vector<512x64xf32>
    %2 = tpu.matmul %0, %1, %cst {dimension_numbers = #tpu.dot_dimension_numbers<[1], [0], [0], [1], [0, 0, 1, 1], [], []>} : vector<512x16xbf16>, vector<16x64xbf16>, vector<512x64xf32> -> vector<512x64xf32>
    %c0_3 = arith.constant 0 : index
    %c0_4 = arith.constant 0 : index
    %3 = vector.load %arg3[%c0_3, %c0_4] : memref<1x64xf32, #tpu.memory_space<vmem>>, vector<1x64xf32>
    %4 = vector.broadcast %3 : vector<1x64xf32> to vector<512x64xf32>
    %5 = arith.mulf %2, %4 : vector<512x64xf32>
    %c0_5 = arith.constant 0 : index
    %c0_6 = arith.constant 0 : index
    %6 = vector.load %arg4[%c0_5, %c0_6] : memref<1x64xf32, #tpu.memory_space<vmem>>, vector<1x64xf32>
    %7 = vector.broadcast %6 : vector<1x64xf32> to vector<512x64xf32>
    %8 = arith.addf %5, %7 : vector<512x64xf32>
    %c0_7 = arith.constant 0 : index
    %c0_8 = arith.constant 0 : index
    %9 = vector.load %arg5[%c0_7, %c0_8] : memref<512x64xf32, #tpu.memory_space<vmem>>, vector<512x64xf32>
    %10 = arith.addf %8, %9 : vector<512x64xf32>
    %cst_9 = arith.constant 0.000000e+00 : f32
    %11 = vector.broadcast %cst_9 : f32 to vector<512x64xf32>
    %12 = arith.maximumf %10, %11 : vector<512x64xf32>
    %c0_10 = arith.constant 0 : index
    %c0_11 = arith.constant 0 : index
    %13 = vector.load %arg6[%c0_10, %c0_11] : memref<512x64xf32, #tpu.memory_space<vmem>>, vector<512x64xf32>
    tpu.vector_store %arg6[%c0_10, %c0_11], %12 {strides = array<i32>} : memref<512x64xf32, #tpu.memory_space<vmem>>, vector<512x64xf32>,
    return
  }
  func.func @transform_0(%arg0: i32) -> (i32, i32) {
    %c0_i32 = arith.constant 0 : i32
    %c0_i32_0 = arith.constant 0 : i32
    return %arg0, %c0_i32 : i32, i32
  }
  func.func @transform_1(%arg0: i32) -> (i32, i32) {
    %c0_i32 = arith.constant 0 : i32
    %c0_i32_0 = arith.constant 0 : i32
    %c0_i32_1 = arith.constant 0 : i32
    return %c0_i32, %c0_i32_0 : i32, i32
  }
  func.func @transform_2(%arg0: i32) -> (i32, i32) {
    %c0_i32 = arith.constant 0 : i32
    %c0_i32_0 = arith.constant 0 : i32
    %c0_i32_1 = arith.constant 0 : i32
    return %c0_i32, %c0_i32_0 : i32, i32
  }
  func.func @transform_3(%arg0: i32) -> (i32, i32) {
    %c0_i32 = arith.constant 0 : i32
    %c0_i32_0 = arith.constant 0 : i32
    %c0_i32_1 = arith.constant 0 : i32
    return %c0_i32, %c0_i32_0 : i32, i32
  }
  func.func @transform_4(%arg0: i32) -> (i32, i32) {
    %c0_i32 = arith.constant 0 : i32
    %c0_i32_0 = arith.constant 0 : i32
    return %arg0, %c0_i32 : i32, i32
  }
  func.func @transform_5(%arg0: i32) -> (i32, i32) {
    %c0_i32 = arith.constant 0 : i32
    %c0_i32_0 = arith.constant 0 : i32
    return %arg0, %c0_i32 : i32, i32
  }
}

module attributes {stable_mosaic.version = 11 : i64} {
  func.func @_spconv_kernel(%arg0: i32, %arg1: memref<1x18x18x8xbf16, #tpu.memory_space<vmem>>, %arg2: memref<1x256x8xbf16, #tpu.memory_space<vmem>>, %arg3: memref<72x16xbf16, #tpu.memory_space<vmem>>, %arg4: memref<8x16xbf16, #tpu.memory_space<vmem>>, %arg5: memref<1x16xf32, #tpu.memory_space<vmem>>, %arg6: memref<1x16xf32, #tpu.memory_space<vmem>>, %arg7: memref<1x16xf32, #tpu.memory_space<vmem>>, %arg8: memref<1x16xf32, #tpu.memory_space<vmem>>, %arg9: memref<1x16xf32, #tpu.memory_space<vmem>>, %arg10: memref<1x16xf32, #tpu.memory_space<vmem>>, %arg11: memref<1x256x16xbf16, #tpu.memory_space<vmem>>) attributes {dimension_semantics = [#tpu.dimension_semantics<parallel>], iteration_bounds = array<i64: 4>, scalar_prefetch = 0 : i64, scratch_operands = 0 : i64, tpu.core_type = #tpu.core_type<tc>, window_params = [{transform_indices = @transform_0, window_bounds = array<i64: 1, 18, 18, 8>}, {transform_indices = @transform_1, window_bounds = array<i64: 1, 256, 8>}, {pipeline_mode = #tpu.pipeline_mode<synchronous>, transform_indices = @transform_2, window_bounds = array<i64: 72, 16>}, {pipeline_mode = #tpu.pipeline_mode<synchronous>, transform_indices = @transform_3, window_bounds = array<i64: 8, 16>}, {pipeline_mode = #tpu.pipeline_mode<synchronous>, transform_indices = @transform_4, window_bounds = array<i64: 1, 16>}, {pipeline_mode = #tpu.pipeline_mode<synchronous>, transform_indices = @transform_5, window_bounds = array<i64: 1, 16>}, {pipeline_mode = #tpu.pipeline_mode<synchronous>, transform_indices = @transform_6, window_bounds = array<i64: 1, 16>}, {pipeline_mode = #tpu.pipeline_mode<synchronous>, transform_indices = @transform_7, window_bounds = array<i64: 1, 16>}, {pipeline_mode = #tpu.pipeline_mode<synchronous>, transform_indices = @transform_8, window_bounds = array<i64: 1, 16>}, {pipeline_mode = #tpu.pipeline_mode<synchronous>, transform_indices = @transform_9, window_bounds = array<i64: 1, 16>}, {transform_indices = @transform_10, window_bounds = array<i64: 1, 256, 16>}]} {
    %c0 = arith.constant 0 : index
    %c0_0 = arith.constant 0 : index
    %c0_1 = arith.constant 0 : index
    %c0_2 = arith.constant 0 : index
    %0 = vector.load %arg1[%c0, %c0_0, %c0_1, %c0_2] : memref<1x18x18x8xbf16, #tpu.memory_space<vmem>>, vector<1x18x18x8xbf16>
    %1 = vector.shape_cast %0 : vector<1x18x18x8xbf16> to vector<18x18x8xbf16>
    %2 = vector.extract_strided_slice %1 {offsets = [0, 0, 0], sizes = [16, 16, 8], strides = [1, 1, 1]} : vector<18x18x8xbf16> to vector<16x16x8xbf16>
    %3 = vector.extract_strided_slice %1 {offsets = [0, 1, 0], sizes = [16, 16, 8], strides = [1, 1, 1]} : vector<18x18x8xbf16> to vector<16x16x8xbf16>
    %4 = vector.extract_strided_slice %1 {offsets = [0, 2, 0], sizes = [16, 16, 8], strides = [1, 1, 1]} : vector<18x18x8xbf16> to vector<16x16x8xbf16>
    %5 = vector.extract_strided_slice %1 {offsets = [1, 0, 0], sizes = [16, 16, 8], strides = [1, 1, 1]} : vector<18x18x8xbf16> to vector<16x16x8xbf16>
    %6 = vector.extract_strided_slice %1 {offsets = [1, 1, 0], sizes = [16, 16, 8], strides = [1, 1, 1]} : vector<18x18x8xbf16> to vector<16x16x8xbf16>
    %7 = vector.extract_strided_slice %1 {offsets = [1, 2, 0], sizes = [16, 16, 8], strides = [1, 1, 1]} : vector<18x18x8xbf16> to vector<16x16x8xbf16>
    %8 = vector.extract_strided_slice %1 {offsets = [2, 0, 0], sizes = [16, 16, 8], strides = [1, 1, 1]} : vector<18x18x8xbf16> to vector<16x16x8xbf16>
    %9 = vector.extract_strided_slice %1 {offsets = [2, 1, 0], sizes = [16, 16, 8], strides = [1, 1, 1]} : vector<18x18x8xbf16> to vector<16x16x8xbf16>
    %10 = vector.extract_strided_slice %1 {offsets = [2, 2, 0], sizes = [16, 16, 8], strides = [1, 1, 1]} : vector<18x18x8xbf16> to vector<16x16x8xbf16>
    %11 = tpu.concatenate %2, %3, %4, %5, %6, %7, %8, %9, %10 in 2 : vector<16x16x8xbf16>, vector<16x16x8xbf16>, vector<16x16x8xbf16>, vector<16x16x8xbf16>, vector<16x16x8xbf16>, vector<16x16x8xbf16>, vector<16x16x8xbf16>, vector<16x16x8xbf16>, vector<16x16x8xbf16> -> vector<16x16x72xbf16>
    %12 = vector.shape_cast %11 : vector<16x16x72xbf16> to vector<256x72xbf16>
    %c0_3 = arith.constant 0 : index
    %c0_4 = arith.constant 0 : index
    %13 = vector.load %arg3[%c0_3, %c0_4] : memref<72x16xbf16, #tpu.memory_space<vmem>>, vector<72x16xbf16>
    %cst = arith.constant dense<0.000000e+00> : vector<256x16xf32>
    %14 = tpu.matmul %12, %13, %cst {dimension_numbers = #tpu.dot_dimension_numbers<[1], [0], [0], [1], [0, 0, 1, 1], [], []>} : vector<256x72xbf16>, vector<72x16xbf16>, vector<256x16xf32> -> vector<256x16xf32>
    %c0_5 = arith.constant 0 : index
    %c0_6 = arith.constant 0 : index
    %15 = vector.load %arg5[%c0_5, %c0_6] : memref<1x16xf32, #tpu.memory_space<vmem>>, vector<1x16xf32>
    %16 = vector.broadcast %15 : vector<1x16xf32> to vector<256x16xf32>
    %17 = arith.mulf %14, %16 : vector<256x16xf32>
    %c0_7 = arith.constant 0 : index
    %c0_8 = arith.constant 0 : index
    %18 = vector.load %arg6[%c0_7, %c0_8] : memref<1x16xf32, #tpu.memory_space<vmem>>, vector<1x16xf32>
    %19 = vector.broadcast %18 : vector<1x16xf32> to vector<256x16xf32>
    %20 = arith.addf %17, %19 : vector<256x16xf32>
    %c0_9 = arith.constant 0 : index
    %c0_10 = arith.constant 0 : index
    %c0_11 = arith.constant 0 : index
    %21 = vector.load %arg2[%c0_9, %c0_10, %c0_11] : memref<1x256x8xbf16, #tpu.memory_space<vmem>>, vector<1x256x8xbf16>
    %22 = vector.shape_cast %21 : vector<1x256x8xbf16> to vector<256x8xbf16>
    %c0_12 = arith.constant 0 : index
    %c0_13 = arith.constant 0 : index
    %23 = vector.load %arg4[%c0_12, %c0_13] : memref<8x16xbf16, #tpu.memory_space<vmem>>, vector<8x16xbf16>
    %cst_14 = arith.constant dense<0.000000e+00> : vector<256x16xf32>
    %24 = tpu.matmul %22, %23, %cst_14 {dimension_numbers = #tpu.dot_dimension_numbers<[1], [0], [0], [1], [0, 0, 1, 1], [], []>} : vector<256x8xbf16>, vector<8x16xbf16>, vector<256x16xf32> -> vector<256x16xf32>
    %c0_15 = arith.constant 0 : index
    %c0_16 = arith.constant 0 : index
    %25 = vector.load %arg7[%c0_15, %c0_16] : memref<1x16xf32, #tpu.memory_space<vmem>>, vector<1x16xf32>
    %26 = vector.broadcast %25 : vector<1x16xf32> to vector<256x16xf32>
    %27 = arith.mulf %24, %26 : vector<256x16xf32>
    %c0_17 = arith.constant 0 : index
    %c0_18 = arith.constant 0 : index
    %28 = vector.load %arg8[%c0_17, %c0_18] : memref<1x16xf32, #tpu.memory_space<vmem>>, vector<1x16xf32>
    %29 = vector.broadcast %28 : vector<1x16xf32> to vector<256x16xf32>
    %30 = arith.addf %27, %29 : vector<256x16xf32>
    %cst_19 = arith.constant dense<0.000000e+00> : vector<16xf32>
    %31 = vector.multi_reduction <add>, %20, %cst_19 [0] : vector<256x16xf32> to vector<16xf32>
    %32 = vector.shape_cast %31 : vector<16xf32> to vector<1x16xf32>
    %cst_20 = arith.constant 2.560000e+02 : f32
    %33 = vector.broadcast %cst_20 : f32 to vector<1x16xf32>
    %34 = arith.divf %32, %33 : vector<1x16xf32>
    %cst_21 = arith.constant dense<0.000000e+00> : vector<16xf32>
    %35 = vector.multi_reduction <add>, %30, %cst_21 [0] : vector<256x16xf32> to vector<16xf32>
    %36 = vector.shape_cast %35 : vector<16xf32> to vector<1x16xf32>
    %cst_22 = arith.constant 2.560000e+02 : f32
    %37 = vector.broadcast %cst_22 : f32 to vector<1x16xf32>
    %38 = arith.divf %36, %37 : vector<1x16xf32>
    %39 = arith.maximumf %34, %38 : vector<1x16xf32>
    %40 = arith.subf %34, %39 : vector<1x16xf32>
    %41 = math.exp %40 : vector<1x16xf32>
    %42 = arith.subf %38, %39 : vector<1x16xf32>
    %43 = math.exp %42 : vector<1x16xf32>
    %44 = arith.addf %41, %43 : vector<1x16xf32>
    %cst_23 = arith.constant 1.000000e+00 : f32
    %45 = vector.broadcast %cst_23 : f32 to vector<1x16xf32>
    %46 = arith.divf %45, %44 : vector<1x16xf32>
    %47 = arith.mulf %43, %46 : vector<1x16xf32>
    %48 = vector.broadcast %47 : vector<1x16xf32> to vector<256x16xf32>
    %49 = arith.mulf %30, %48 : vector<256x16xf32>
    %50 = arith.mulf %41, %46 : vector<1x16xf32>
    %51 = vector.broadcast %50 : vector<1x16xf32> to vector<256x16xf32>
    %52 = arith.mulf %20, %51 : vector<256x16xf32>
    %53 = arith.addf %49, %52 : vector<256x16xf32>
    %c0_24 = arith.constant 0 : index
    %c0_25 = arith.constant 0 : index
    %54 = vector.load %arg9[%c0_24, %c0_25] : memref<1x16xf32, #tpu.memory_space<vmem>>, vector<1x16xf32>
    %55 = vector.broadcast %54 : vector<1x16xf32> to vector<256x16xf32>
    %56 = arith.mulf %53, %55 : vector<256x16xf32>
    %c0_26 = arith.constant 0 : index
    %c0_27 = arith.constant 0 : index
    %57 = vector.load %arg10[%c0_26, %c0_27] : memref<1x16xf32, #tpu.memory_space<vmem>>, vector<1x16xf32>
    %58 = vector.broadcast %57 : vector<1x16xf32> to vector<256x16xf32>
    %59 = arith.addf %56, %58 : vector<256x16xf32>
    %cst_28 = arith.constant 0.000000e+00 : f32
    %60 = vector.broadcast %cst_28 : f32 to vector<256x16xf32>
    %61 = arith.maximumf %59, %60 : vector<256x16xf32>
    %62 = arith.truncf %61 : vector<256x16xf32> to vector<256x16xbf16>
    %c0_29 = arith.constant 0 : index
    %c0_30 = arith.constant 0 : index
    %c0_31 = arith.constant 0 : index
    %63 = vector.load %arg11[%c0_29, %c0_30, %c0_31] : memref<1x256x16xbf16, #tpu.memory_space<vmem>>, vector<1x256x16xbf16>
    %64 = vector.shape_cast %63 : vector<1x256x16xbf16> to vector<256x16xbf16>
    %65 = vector.shape_cast %62 : vector<256x16xbf16> to vector<1x256x16xbf16>
    tpu.vector_store %arg11[%c0_29, %c0_30, %c0_31], %65 {strides = array<i32>} : memref<1x256x16xbf16, #tpu.memory_space<vmem>>, vector<1x256x16xbf16>,
    return
  }
  func.func @transform_0(%arg0: i32) -> (i32, i32, i32, i32) {
    %c0_i32 = arith.constant 0 : i32
    %c0_i32_0 = arith.constant 0 : i32
    %c0_i32_1 = arith.constant 0 : i32
    %c0_i32_2 = arith.constant 0 : i32
    return %arg0, %c0_i32, %c0_i32_0, %c0_i32_1 : i32, i32, i32, i32
  }
  func.func @transform_1(%arg0: i32) -> (i32, i32, i32) {
    %c0_i32 = arith.constant 0 : i32
    %c0_i32_0 = arith.constant 0 : i32
    %c0_i32_1 = arith.constant 0 : i32
    return %arg0, %c0_i32, %c0_i32_0 : i32, i32, i32
  }
  func.func @transform_2(%arg0: i32) -> (i32, i32) {
    %c0_i32 = arith.constant 0 : i32
    %c0_i32_0 = arith.constant 0 : i32
    %c0_i32_1 = arith.constant 0 : i32
    return %c0_i32, %c0_i32_0 : i32, i32
  }
  func.func @transform_3(%arg0: i32) -> (i32, i32) {
    %c0_i32 = arith.constant 0 : i32
    %c0_i32_0 = arith.constant 0 : i32
    %c0_i32_1 = arith.constant 0 : i32
    return %c0_i32, %c0_i32_0 : i32, i32
  }
  func.func @transform_4(%arg0: i32) -> (i32, i32) {
    %c0_i32 = arith.constant 0 : i32
    %c0_i32_0 = arith.constant 0 : i32
    %c0_i32_1 = arith.constant 0 : i32
    return %c0_i32, %c0_i32_0 : i32, i32
  }
  func.func @transform_5(%arg0: i32) -> (i32, i32) {
    %c0_i32 = arith.constant 0 : i32
    %c0_i32_0 = arith.constant 0 : i32
    %c0_i32_1 = arith.constant 0 : i32
    return %c0_i32, %c0_i32_0 : i32, i32
  }
  func.func @transform_6(%arg0: i32) -> (i32, i32) {
    %c0_i32 = arith.constant 0 : i32
    %c0_i32_0 = arith.constant 0 : i32
    %c0_i32_1 = arith.constant 0 : i32
    return %c0_i32, %c0_i32_0 : i32, i32
  }
  func.func @transform_7(%arg0: i32) -> (i32, i32) {
    %c0_i32 = arith.constant 0 : i32
    %c0_i32_0 = arith.constant 0 : i32
    %c0_i32_1 = arith.constant 0 : i32
    return %c0_i32, %c0_i32_0 : i32, i32
  }
  func.func @transform_8(%arg0: i32) -> (i32, i32) {
    %c0_i32 = arith.constant 0 : i32
    %c0_i32_0 = arith.constant 0 : i32
    %c0_i32_1 = arith.constant 0 : i32
    return %c0_i32, %c0_i32_0 : i32, i32
  }
  func.func @transform_9(%arg0: i32) -> (i32, i32) {
    %c0_i32 = arith.constant 0 : i32
    %c0_i32_0 = arith.constant 0 : i32
    %c0_i32_1 = arith.constant 0 : i32
    return %c0_i32, %c0_i32_0 : i32, i32
  }
  func.func @transform_10(%arg0: i32) -> (i32, i32, i32) {
    %c0_i32 = arith.constant 0 : i32
    %c0_i32_0 = arith.constant 0 : i32
    %c0_i32_1 = arith.constant 0 : i32
    return %arg0, %c0_i32, %c0_i32_0 : i32, i32, i32
  }
}

</mosaic_0001>

<llo_original>
// kernel: bottleneck_forward.5
$region0: #{bottleneck_forward.5}
  #allocation0 [shape = 'u32[]', space=smem, size = 0x4, offset = 0x4, fixed_abs, tag = 'smem constant byte address 0x4 - core index']
  #allocation1 [shape = 'u32[144,128]{1,0:T(1,128)}', space=vmem, size = 0x12000, scoped, tag = 'internal scratch']
  %s0 = inlined_call_operand.vmem [shape: bf16[1024,16], index: 0, kind: input, shape index: {}]
  %s1 = inlined_call_operand.vmem [shape: bf16[16,64], index: 1, kind: input, shape index: {}]
  %s2 = inlined_call_operand.vmem [shape: f32[1,64], index: 2, kind: input, shape index: {}]
  %s3 = inlined_call_operand.vmem [shape: f32[1,64], index: 3, kind: input, shape index: {}]
  %s4 = inlined_call_operand.vmem [shape: f32[1024,64], index: 4, kind: input, shape index: {}]
  %s5 = inlined_call_operand.hbm [shape: f32[1024,64], index: 5, kind: output, shape index: {}]
  %s6 = sld [smem:[#allocation0]]
  $region53: #{bottleneck_forward.5} parent=0
    _
  %s8 = ssub.s32 1, %s6
  %s9 = scalar_select 0, %s8, %s6
  $region1: #{bottleneck_forward.5} parent=0
    #allocation2 [shape = 'u8[524288]{0}', space=vmem, size = 0x80000, scoped, tag = 'output window, operand 0']
    #allocation3 [shape = 's32[2]{0}', space=sflag, size = 0x8, scoped, tag = 'scoped memory for bottleneck_forward.5']
    %10 = vsyncpa [#allocation3], 0
    %s11 = scalar_lea.sflag [#allocation3], 1
    %12 = vsyncpa %s11, 0
    loop: start=0, step=1, limit=4
    $region2: #{bottleneck_forward.5} parent=1 // loop_pre_header
      _
    $region3: #{bottleneck_forward.5} parent=1 // loop_header
      %s14 = sphi 0, %s18
      %p15 = scmp.ge.s32.totalorder %s14, 4
      %s24 = sphi 0, %s26
      %s27 = sphi 0, %s24
      %s28 = sphi 0, %s27
      %s44 = sphi 0, %s28
      %s48 = sphi 0, %s48
      %s50 = sphi 0, %s48
      %s51 = sphi 0, %s50
      %s65 = sphi 0, %s51
      %s69 = sphi 0, %s69
      %s71 = sphi 0, %s69
      %s72 = sphi 0, %s71
      %s86 = sphi 0, %s72
      %s90 = sphi 0, %s90
      %s92 = sphi 0, %s90
      %s93 = sphi 0, %s92
      %s107 = sphi 0, %s93
      %s113 = sphi 0, %s115
      %s116 = sphi 0, %s113
      %s117 = sphi 0, %s116
      %s133 = sphi 0, %s117
      %s139 = sphi 0, %s141
      %s142 = sphi 0, %s139
      %s143 = sphi 0, %s142
      %s159 = sphi 0, %s143
    $region4: #{bottleneck_forward.5} parent=1 // loop_header_branch
      %17 = sbr.rel (%p15) target = $region8
    $region5: #{bottleneck_forward.5} parent=1 // loop_body
      %s19 = ssub.s32 %s14, 1
      %s20 = ssub.s32 %s14, 2
      %s21 = sadd.s32 %s14, 1
      %s22 = ssub.s32 %s14, %s21
      %p23 = scmp.eq.s32.totalorder %s22, 0
      %s25 = sadd.s32 %s24, 1
      %s26 = scalar_select %p23, %s24, %s25
      %p29 = pneg %p23
      %p30 = scmp.eq.s32.totalorder %s14, 1
      %p31 = por %p29, %p30
      %p32 = scmp.ne.s32.totalorder %s24, %s27
      %p33 = scmp.eq.s32.totalorder %s14, 0
      %p34 = por %p32, %p33
      %p35 = scmp.ne.s32.totalorder %s24, %s27
      %p36 = scmp.eq.s32.totalorder %s19, 1
      %p37 = por %p35, %p36
      %p38 = scmp.ne.s32.totalorder %s27, %s28
      %p39 = scmp.eq.s32.totalorder %s19, 0
      %p40 = por %p38, %p39
      %p41 = scmp.ne.s32.totalorder %s27, %s28
      %p42 = scmp.eq.s32.totalorder %s20, 1
      %p43 = por %p41, %p42
      %p45 = scmp.ne.s32.totalorder %s28, %s44
      %p46 = scmp.eq.s32.totalorder %s20, 0
      %p47 = por %p45, %p46
      %s49 = sadd.s32 %s48, 1
      %p52 = scmp.eq.s32.totalorder %s14, 1
      %p53 = scmp.ne.s32.totalorder %s48, %s50
      %p54 = scmp.eq.s32.totalorder %s14, 0
      %p55 = por %p53, %p54
      %p56 = scmp.ne.s32.totalorder %s48, %s50
      %p57 = scmp.eq.s32.totalorder %s19, 1
      %p58 = por %p56, %p57
      %p59 = scmp.ne.s32.totalorder %s50, %s51
      %p60 = scmp.eq.s32.totalorder %s19, 0
      %p61 = por %p59, %p60
      %p62 = scmp.ne.s32.totalorder %s50, %s51
      %p63 = scmp.eq.s32.totalorder %s20, 1
      %p64 = por %p62, %p63
      %p66 = scmp.ne.s32.totalorder %s51, %s65
      %p67 = scmp.eq.s32.totalorder %s20, 0
      %p68 = por %p66, %p67
      %s70 = sadd.s32 %s69, 1
      %p73 = scmp.eq.s32.totalorder %s14, 1
      %p74 = scmp.ne.s32.totalorder %s69, %s71
      %p75 = scmp.eq.s32.totalorder %s14, 0
      %p76 = por %p74, %p75
      %p77 = scmp.ne.s32.totalorder %s69, %s71
      %p78 = scmp.eq.s32.totalorder %s19, 1
      %p79 = por %p77, %p78
      %p80 = scmp.ne.s32.totalorder %s71, %s72
      %p81 = scmp.eq.s32.totalorder %s19, 0
      %p82 = por %p80, %p81
      %p83 = scmp.ne.s32.totalorder %s71, %s72
      %p84 = scmp.eq.s32.totalorder %s20, 1
      %p85 = por %p83, %p84
      %p87 = scmp.ne.s32.totalorder %s72, %s86
      %p88 = scmp.eq.s32.totalorder %s20, 0
      %p89 = por %p87, %p88
      %s91 = sadd.s32 %s90, 1
      %p94 = scmp.eq.s32.totalorder %s14, 1
      %p95 = scmp.ne.s32.totalorder %s90, %s92
      %p96 = scmp.eq.s32.totalorder %s14, 0
      %p97 = por %p95, %p96
      %p98 = scmp.ne.s32.totalorder %s90, %s92
      %p99 = scmp.eq.s32.totalorder %s19, 1
      %p100 = por %p98, %p99
      %p101 = scmp.ne.s32.totalorder %s92, %s93
      %p102 = scmp.eq.s32.totalorder %s19, 0
      %p103 = por %p101, %p102
      %p104 = scmp.ne.s32.totalorder %s92, %s93
      %p105 = scmp.eq.s32.totalorder %s20, 1
      %p106 = por %p104, %p105
      %p108 = scmp.ne.s32.totalorder %s93, %s107
      %p109 = scmp.eq.s32.totalorder %s20, 0
      %p110 = por %p108, %p109
      %s111 = ssub.s32 %s14, %s21
      %p112 = scmp.eq.s32.totalorder %s111, 0
      %s114 = sadd.s32 %s113, 1
      %s115 = scalar_select %p112, %s113, %s114
      %p118 = pneg %p112
      %p119 = scmp.eq.s32.totalorder %s14, 1
      %p120 = por %p118, %p119
      %p121 = scmp.ne.s32.totalorder %s113, %s116
      %p122 = scmp.eq.s32.totalorder %s14, 0
      %p123 = por %p121, %p122
      %p124 = scmp.ne.s32.totalorder %s113, %s116
      %p125 = scmp.eq.s32.totalorder %s19, 1
      %p126 = por %p124, %p125
      %p127 = scmp.ne.s32.totalorder %s116, %s117
      %p128 = scmp.eq.s32.totalorder %s19, 0
      %p129 = por %p127, %p128
      %p130 = scmp.ne.s32.totalorder %s116, %s117
      %p131 = scmp.eq.s32.totalorder %s20, 1
      %p132 = por %p130, %p131
      %p134 = scmp.ne.s32.totalorder %s117, %s133
      %p135 = scmp.eq.s32.totalorder %s20, 0
      %p136 = por %p134, %p135
      %s137 = ssub.s32 %s14, %s21
      %p138 = scmp.eq.s32.totalorder %s137, 0
      %s140 = sadd.s32 %s139, 1
      %s141 = scalar_select %p138, %s139, %s140
      %p144 = pneg %p138
      %p145 = scmp.eq.s32.totalorder %s14, 1
      %p146 = por %p144, %p145
      %p147 = scmp.ne.s32.totalorder %s139, %s142
      %p148 = scmp.eq.s32.totalorder %s14, 0
      %p149 = por %p147, %p148
      %p150 = scmp.ne.s32.totalorder %s139, %s142
      %p151 = scmp.eq.s32.totalorder %s19, 1
      %p152 = por %p150, %p151
      %p153 = scmp.ne.s32.totalorder %s142, %s143
      %p154 = scmp.eq.s32.totalorder %s19, 0
      %p155 = por %p153, %p154
      %p156 = scmp.ne.s32.totalorder %s142, %s143
      %p157 = scmp.eq.s32.totalorder %s20, 1
      %p158 = por %p156, %p157
      %p160 = scmp.ne.s32.totalorder %s143, %s159
      %p161 = scmp.eq.s32.totalorder %s20, 0
      %p162 = por %p160, %p161
      %p163 = scmp.le.s32.totalorder 1, %s14
      %p164 = scmp.lt.s32.totalorder %s14, 3
      %p165 = pnand %p163, %p164
      %p166 = pneg %p165
      // Predicated region
      $region9: #{bottleneck_forward.5} parent=5 // pred_check
        _
      $region10: #{bottleneck_forward.5} parent=5 // pred_check_branch
        %168 = sbr.rel (%p165) target = $region12
      $region11: #{bottleneck_forward.5} parent=5 // pred_region
        %s169 = ssub.s32 %s14, 1
        // Predicated region
        $region13: #{bottleneck_forward.5} parent=11 // pred_check
          %p170 = pneg %p61
        $region14: #{bottleneck_forward.5} parent=11 // pred_check_branch
          %172 = sbr.rel (%p170) target = $region16
        $region15: #{bottleneck_forward.5} parent=11 // pred_region
          _
        $region16: #{bottleneck_forward.5} parent=11 // pred_fallthru
          _
        // Predicated region
        $region17: #{bottleneck_forward.5} parent=11 // pred_check
          %p173 = pneg %p82
        $region18: #{bottleneck_forward.5} parent=11 // pred_check_branch
          %175 = sbr.rel (%p173) target = $region20
        $region19: #{bottleneck_forward.5} parent=11 // pred_region
          _
        $region20: #{bottleneck_forward.5} parent=11 // pred_fallthru
          _
        // Predicated region
        $region21: #{bottleneck_forward.5} parent=11 // pred_check
          %p176 = pneg %p103
        $region22: #{bottleneck_forward.5} parent=11 // pred_check_branch
          %178 = sbr.rel (%p176) target = $region24
        $region23: #{bottleneck_forward.5} parent=11 // pred_region
          _
        $region24: #{bottleneck_forward.5} parent=11 // pred_fallthru
          _
      $region12: #{bottleneck_forward.5} parent=5 // pred_fallthru
        _
      %p179 = scmp.lt.s32.totalorder %s14, 2
      // Predicated region
      $region25: #{bottleneck_forward.5} parent=5 // pred_check
        %p180 = pneg %p179
      $region26: #{bottleneck_forward.5} parent=5 // pred_check_branch
        %182 = sbr.rel (%p180) target = $region28
      $region27: #{bottleneck_forward.5} parent=5 // pred_region
        // Predicated region
        $region29: #{bottleneck_forward.5} parent=27 // pred_check
          %p183 = pneg %p34
        $region30: #{bottleneck_forward.5} parent=27 // pred_check_branch
          %185 = sbr.rel (%p183) target = $region32
        $region31: #{bottleneck_forward.5} parent=27 // pred_region
          %s186 = smul.u32 64, %s14
          %p187 = scmp.lt.s32.totalorder %s186, 127
          %s188 = scalar_select %p187, %s186, 127
          %s189 = smul.addr %s188, 4
          %s190 = scalar_lea.vmem %s0, %s189
          %s191 = smul.u32 64, %s14
        $region32: #{bottleneck_forward.5} parent=27 // pred_fallthru
          _
        // Predicated region
        $region33: #{bottleneck_forward.5} parent=27 // pred_check
          %p192 = pneg %p123
        $region34: #{bottleneck_forward.5} parent=27 // pred_check_branch
          %194 = sbr.rel (%p192) target = $region36
        $region35: #{bottleneck_forward.5} parent=27 // pred_region
          %s195 = smul.u32 64, %s14
          %p196 = scmp.lt.s32.totalorder %s195, 127
          %s197 = scalar_select %p196, %s195, 127
          %s198 = smul.addr %s197, 8
          %s199 = scalar_lea.vmem %s4, %s198
          %s200 = smul.u32 64, %s14
        $region36: #{bottleneck_forward.5} parent=27 // pred_fallthru
          _
      $region28: #{bottleneck_forward.5} parent=5 // pred_fallthru
        _
      %p201 = scmp.le.s32.totalorder 1, %s14
      %p202 = scmp.lt.s32.totalorder %s14, 3
      %p203 = pnand %p201, %p202
      %p204 = pneg %p203
      // Predicated region
      $region37: #{bottleneck_forward.5} parent=5 // pred_check
        _
      $region38: #{bottleneck_forward.5} parent=5 // pred_check_branch
        %206 = sbr.rel (%p203) target = $region40
      $region39: #{bottleneck_forward.5} parent=5 // pred_region
        %s207 = ssub.s32 %s14, 1
        %s208 = smul.u32 64, %s19
        %p209 = scmp.lt.s32.totalorder %s208, 127
        %s210 = scalar_select %p209, %s208, 127
        %s211 = smul.addr %s210, 4
        %s212 = scalar_lea.vmem %s0, %s211
        %p213 = pneg %p40
        %p214 = pneg %p37
        %p215 = pneg %p61
        %p216 = pneg %p58
        %p217 = pneg %p82
        %p218 = pneg %p79
        %p219 = pneg %p103
        %p220 = pneg %p100
        %s221 = smul.u32 64, %s19
        %p222 = scmp.lt.s32.totalorder %s221, 127
        %s223 = scalar_select %p222, %s221, 127
        %s224 = smul.addr %s223, 8
        %s225 = scalar_lea.vmem %s4, %s224
        %p226 = pneg %p129
        %p227 = pneg %p126
        %p228 = pneg %p155
        %p229 = pneg %p152
        %s230 = sand.u32 %s142, 1
        %s231 = scalar_lea.sflag [#allocation3], %s230
        %s232 = sand.u32 %s142, 1
        %s233 = smul.addr %s232, 512
        %s234 = scalar_lea.vmem [#allocation2], %s233
        %s235 = smul.u32 64, %s19
        %p236 = scmp.lt.s32.totalorder %s235, 127
        %s237 = scalar_select %p236, %s235, 127
        %s238 = smul.addr %s237, 4
        %s239 = scalar_lea.vmem %s0, %s238
        %s240 = smul.u32 64, %s19
        %s241 = smul.u32 64, %s19
        %p242 = scmp.lt.s32.totalorder %s241, 127
        %s243 = scalar_select %p242, %s241, 127
        %s244 = smul.addr %s243, 8
        %s245 = scalar_lea.vmem %s4, %s244
        %s246 = smul.u32 64, %s19
        %s247 = smul.u32 64, %s19
        %v249 = vld [vmem:[%s239] sm:$0xf]
        %v250 = vld [vmem:[%s239 + $0x4] sm:$0xf]
        %v251 = vld [vmem:[%s239 + $0x8] sm:$0xf]
        %v252 = vld [vmem:[%s239 + $0xc] sm:$0xf]
        %v253 = vld [vmem:[%s239 + $0x10] sm:$0xf]
        %v254 = vld [vmem:[%s239 + $0x14] sm:$0xf]
        %v255 = vld [vmem:[%s239 + $0x18] sm:$0xf]
        %v256 = vld [vmem:[%s239 + $0x1c] sm:$0xf]
        %v257 = vld [vmem:[%s239 + $0x20] sm:$0xf]
        %v258 = vld [vmem:[%s239 + $0x24] sm:$0xf]
        %v259 = vld [vmem:[%s239 + $0x28] sm:$0xf]
        %v260 = vld [vmem:[%s239 + $0x2c] sm:$0xf]
        %v261 = vld [vmem:[%s239 + $0x30] sm:$0xf]
        %v262 = vld [vmem:[%s239 + $0x34] sm:$0xf]
        %v263 = vld [vmem:[%s239 + $0x38] sm:$0xf]
        %v264 = vld [vmem:[%s239 + $0x3c] sm:$0xf]
        %v265 = vld [vmem:[%s239 + $0x40] sm:$0xf]
        %v266 = vld [vmem:[%s239 + $0x44] sm:$0xf]
        %v267 = vld [vmem:[%s239 + $0x48] sm:$0xf]
        %v268 = vld [vmem:[%s239 + $0x4c] sm:$0xf]
        %v269 = vld [vmem:[%s239 + $0x50] sm:$0xf]
        %v270 = vld [vmem:[%s239 + $0x54] sm:$0xf]
        %v271 = vld [vmem:[%s239 + $0x58] sm:$0xf]
        %v272 = vld [vmem:[%s239 + $0x5c] sm:$0xf]
        %v273 = vld [vmem:[%s239 + $0x60] sm:$0xf]
        %v274 = vld [vmem:[%s239 + $0x64] sm:$0xf]
        %v275 = vld [vmem:[%s239 + $0x68] sm:$0xf]
        %v276 = vld [vmem:[%s239 + $0x6c] sm:$0xf]
        %v277 = vld [vmem:[%s239 + $0x70] sm:$0xf]
        %v278 = vld [vmem:[%s239 + $0x74] sm:$0xf]
        %v279 = vld [vmem:[%s239 + $0x78] sm:$0xf]
        %v280 = vld [vmem:[%s239 + $0x7c] sm:$0xf]
        %v281 = vld [vmem:[%s239 + $0x80] sm:$0xf]
        %v282 = vld [vmem:[%s239 + $0x84] sm:$0xf]
        %v283 = vld [vmem:[%s239 + $0x88] sm:$0xf]
        %v284 = vld [vmem:[%s239 + $0x8c] sm:$0xf]
        %v285 = vld [vmem:[%s239 + $0x90] sm:$0xf]
        %v286 = vld [vmem:[%s239 + $0x94] sm:$0xf]
        %v287 = vld [vmem:[%s239 + $0x98] sm:$0xf]
        %v288 = vld [vmem:[%s239 + $0x9c] sm:$0xf]
        %v289 = vld [vmem:[%s239 + $0xa0] sm:$0xf]
        %v290 = vld [vmem:[%s239 + $0xa4] sm:$0xf]
        %v291 = vld [vmem:[%s239 + $0xa8] sm:$0xf]
        %v292 = vld [vmem:[%s239 + $0xac] sm:$0xf]
        %v293 = vld [vmem:[%s239 + $0xb0] sm:$0xf]
        %v294 = vld [vmem:[%s239 + $0xb4] sm:$0xf]
        %v295 = vld [vmem:[%s239 + $0xb8] sm:$0xf]
        %v296 = vld [vmem:[%s239 + $0xbc] sm:$0xf]
        %v297 = vld [vmem:[%s239 + $0xc0] sm:$0xf]
        %v298 = vld [vmem:[%s239 + $0xc4] sm:$0xf]
        %v299 = vld [vmem:[%s239 + $0xc8] sm:$0xf]
        %v300 = vld [vmem:[%s239 + $0xcc] sm:$0xf]
        %v301 = vld [vmem:[%s239 + $0xd0] sm:$0xf]
        %v302 = vld [vmem:[%s239 + $0xd4] sm:$0xf]
        %v303 = vld [vmem:[%s239 + $0xd8] sm:$0xf]
        %v304 = vld [vmem:[%s239 + $0xdc] sm:$0xf]
        %v305 = vld [vmem:[%s239 + $0xe0] sm:$0xf]
        %v306 = vld [vmem:[%s239 + $0xe4] sm:$0xf]
        %v307 = vld [vmem:[%s239 + $0xe8] sm:$0xf]
        %v308 = vld [vmem:[%s239 + $0xec] sm:$0xf]
        %v309 = vld [vmem:[%s239 + $0xf0] sm:$0xf]
        %v310 = vld [vmem:[%s239 + $0xf4] sm:$0xf]
        %v311 = vld [vmem:[%s239 + $0xf8] sm:$0xf]
        %v312 = vld [vmem:[%s239 + $0xfc] sm:$0xf]
        %v313 = vld [vmem:[%s1] sm:$0xf]
        %v314 = vld [vmem:[%s1 + $0x4] sm:$0xf]
        %v379 = vunpack.c.l.b16 %v249
        %v380 = vunpack.c.l.b16 %v250
        %v381 = vunpack.c.l.b16 %v251
        %v382 = vunpack.c.l.b16 %v252
        %v383 = vunpack.c.l.b16 %v253
        %v384 = vunpack.c.l.b16 %v254
        %v385 = vunpack.c.l.b16 %v255
        %v386 = vunpack.c.l.b16 %v256
        %v387 = vunpack.c.l.b16 %v257
        %v388 = vunpack.c.l.b16 %v258
        %v389 = vunpack.c.l.b16 %v259
        %v390 = vunpack.c.l.b16 %v260
        %v391 = vunpack.c.l.b16 %v261
        %v392 = vunpack.c.l.b16 %v262
        %v393 = vunpack.c.l.b16 %v263
        %v394 = vunpack.c.l.b16 %v264
        %v395 = vunpack.c.l.b16 %v265
        %v396 = vunpack.c.l.b16 %v266
        %v397 = vunpack.c.l.b16 %v267
        %v398 = vunpack.c.l.b16 %v268
        %v399 = vunpack.c.l.b16 %v269
        %v400 = vunpack.c.l.b16 %v270
        %v401 = vunpack.c.l.b16 %v271
        %v402 = vunpack.c.l.b16 %v272
        %v403 = vunpack.c.l.b16 %v273
        %v404 = vunpack.c.l.b16 %v274
        %v405 = vunpack.c.l.b16 %v275
        %v406 = vunpack.c.l.b16 %v276
        %v407 = vunpack.c.l.b16 %v277
        %v408 = vunpack.c.l.b16 %v278
        %v409 = vunpack.c.l.b16 %v279
        %v410 = vunpack.c.l.b16 %v280
        %v411 = vunpack.c.l.b16 %v281
        %v412 = vunpack.c.l.b16 %v282
        %v413 = vunpack.c.l.b16 %v283
        %v414 = vunpack.c.l.b16 %v284
        %v415 = vunpack.c.l.b16 %v285
        %v416 = vunpack.c.l.b16 %v286
        %v417 = vunpack.c.l.b16 %v287
        %v418 = vunpack.c.l.b16 %v288
        %v419 = vunpack.c.l.b16 %v289
        %v420 = vunpack.c.l.b16 %v290
        %v421 = vunpack.c.l.b16 %v291
        %v422 = vunpack.c.l.b16 %v292
        %v423 = vunpack.c.l.b16 %v293
        %v424 = vunpack.c.l.b16 %v294
        %v425 = vunpack.c.l.b16 %v295
        %v426 = vunpack.c.l.b16 %v296
        %v427 = vunpack.c.l.b16 %v297
        %v428 = vunpack.c.l.b16 %v298
        %v429 = vunpack.c.l.b16 %v299
        %v430 = vunpack.c.l.b16 %v300
        %v431 = vunpack.c.l.b16 %v301
        %v432 = vunpack.c.l.b16 %v302
        %v433 = vunpack.c.l.b16 %v303
        %v434 = vunpack.c.l.b16 %v304
        %v435 = vunpack.c.l.b16 %v305
        %v436 = vunpack.c.l.b16 %v306
        %v437 = vunpack.c.l.b16 %v307
        %v438 = vunpack.c.l.b16 %v308
        %v439 = vunpack.c.l.b16 %v309
        %v440 = vunpack.c.l.b16 %v310
        %v441 = vunpack.c.l.b16 %v311
        %v442 = vunpack.c.l.b16 %v312
        %v443 = vpack.c.b16 %v380, %v379
        %v444 = vpack.c.b16 %v382, %v381
        %v445 = vpack.c.b16 %v384, %v383
        %v446 = vpack.c.b16 %v386, %v385
        %v447 = vpack.c.b16 %v388, %v387
        %v448 = vpack.c.b16 %v390, %v389
        %v449 = vpack.c.b16 %v392, %v391
        %v450 = vpack.c.b16 %v394, %v393
        %v451 = vpack.c.b16 %v396, %v395
        %v452 = vpack.c.b16 %v398, %v397
        %v453 = vpack.c.b16 %v400, %v399
        %v454 = vpack.c.b16 %v402, %v401
        %v455 = vpack.c.b16 %v404, %v403
        %v456 = vpack.c.b16 %v406, %v405
        %v457 = vpack.c.b16 %v408, %v407
        %v458 = vpack.c.b16 %v410, %v409
        %v459 = vpack.c.b16 %v412, %v411
        %v460 = vpack.c.b16 %v414, %v413
        %v461 = vpack.c.b16 %v416, %v415
        %v462 = vpack.c.b16 %v418, %v417
        %v463 = vpack.c.b16 %v420, %v419
        %v464 = vpack.c.b16 %v422, %v421
        %v465 = vpack.c.b16 %v424, %v423
        %v466 = vpack.c.b16 %v426, %v425
        %v467 = vpack.c.b16 %v428, %v427
        %v468 = vpack.c.b16 %v430, %v429
        %v469 = vpack.c.b16 %v432, %v431
        %v470 = vpack.c.b16 %v434, %v433
        %v471 = vpack.c.b16 %v436, %v435
        %v472 = vpack.c.b16 %v438, %v437
        %v473 = vpack.c.b16 %v440, %v439
        %v474 = vpack.c.b16 %v442, %v441
        %v477 = vunpack.c.l.b16 %v313
        %v478 = vunpack.c.l.b16 %v314
        %v479 = vpack.c.b16 %v478, %v477
        %vm481 = vcmask 130048
        %v483 = vsel %vm481, %v443, 0
        %v486 = vsel %vm481, %v444, 0
        %v489 = vsel %vm481, %v445, 0
        %v492 = vsel %vm481, %v446, 0
        %v495 = vsel %vm481, %v447, 0
        %v498 = vsel %vm481, %v448, 0
        %v501 = vsel %vm481, %v449, 0
        %v504 = vsel %vm481, %v450, 0
        %v507 = vsel %vm481, %v451, 0
        %v510 = vsel %vm481, %v452, 0
        %v513 = vsel %vm481, %v453, 0
        %v516 = vsel %vm481, %v454, 0
        %v519 = vsel %vm481, %v455, 0
        %v522 = vsel %vm481, %v456, 0
        %v525 = vsel %vm481, %v457, 0
        %v528 = vsel %vm481, %v458, 0
        %v531 = vsel %vm481, %v459, 0
        %v534 = vsel %vm481, %v460, 0
        %v537 = vsel %vm481, %v461, 0
        %v540 = vsel %vm481, %v462, 0
        %v543 = vsel %vm481, %v463, 0
        %v546 = vsel %vm481, %v464, 0
        %v549 = vsel %vm481, %v465, 0
        %v552 = vsel %vm481, %v466, 0
        %v555 = vsel %vm481, %v467, 0
        %v558 = vsel %vm481, %v468, 0
        %v561 = vsel %vm481, %v469, 0
        %v564 = vsel %vm481, %v470, 0
        %v567 = vsel %vm481, %v471, 0
        %v570 = vsel %vm481, %v472, 0
        %v573 = vsel %vm481, %v473, 0
        %v576 = vsel %vm481, %v474, 0
        %578 = vmatprep.subr.bf16.mxu0 0
        %579 = vmatpush1.bf16.msra.mxu0 0
        %580 = vmatprep.subr.bf16.mxu0 0
        %581 = vmatpush1.bf16.msra.mxu0 0
        %582 = vmatprep.subr.bf16.mxu0 0
        %583 = vmatpush1.bf16.msra.mxu0 0
        %584 = vmatprep.subr.bf16.mxu0 0
        %585 = vmatpush1.bf16.msra.mxu0 0
        %586 = vmatprep.subr.bf16.mxu0 0
        %587 = vmatpush1.bf16.msra.mxu0 0
        %588 = vmatprep.subr.bf16.mxu0 0
        %589 = vmatpush1.bf16.msra.mxu0 0
        %590 = vmatprep.subr.bf16.mxu0 0
        %591 = vmatpush1.bf16.msra.mxu0 0
        %592 = vmatprep.subr.bf16.mxu0 0
        %593 = vmatpush1.bf16.msra.mxu0 %v479
        %594 = vmatprep.subr.bf16.mxu0 0
        %595 = vmatpush2.bf16.msra.mxu0 0
        %596 = vmatprep.subr.bf16.mxu0 0
        %597 = vmatpush2.bf16.msra.mxu0 0
        %598 = vmatprep.subr.bf16.mxu0 0
        %599 = vmatpush2.bf16.msra.mxu0 0
        %600 = vmatprep.subr.bf16.mxu0 0
        %601 = vmatpush2.bf16.msra.mxu0 0
        %602 = vmatprep.subr.bf16.mxu0 0
        %603 = vmatpush2.bf16.msra.mxu0 0
        %604 = vmatprep.subr.bf16.mxu0 0
        %605 = vmatpush2.bf16.msra.mxu0 0
        %606 = vmatprep.subr.bf16.mxu0 0
        %607 = vmatpush2.bf16.msra.mxu0 0
        %608 = vmatprep.subr.bf16.mxu0 0
        %609 = vmatpush2.bf16.msra.mxu0 0
        %610 = vmatprep.mubr.bf16.mxu0 0
        %611 = vmatmul.mubr.bf16.gmra.mxu0 %v483
        %v612 = vpop.f32.mrf.mxu0
        %v613 = vadd.f32 0.0, %v612
        %v614 = vpop.f32.mrf.mxu0
        %v615 = vpop.f32.mrf.mxu0
        %v616 = vadd.f32 0.0, %v615
        %v617 = vpop.f32.mrf.mxu0
        %618 = vmatprep.mubr.bf16.mxu0 0
        %619 = vmatmul.mubr.bf16.gmra.mxu0 %v486
        %v620 = vpop.f32.mrf.mxu0
        %v621 = vadd.f32 0.0, %v620
        %v622 = vpop.f32.mrf.mxu0
        %v623 = vpop.f32.mrf.mxu0
        %v624 = vadd.f32 0.0, %v623
        %v625 = vpop.f32.mrf.mxu0
        %626 = vmatprep.mubr.bf16.mxu0 0
        %627 = vmatmul.mubr.bf16.gmra.mxu0 %v489
        %v628 = vpop.f32.mrf.mxu0
        %v629 = vadd.f32 0.0, %v628
        %v630 = vpop.f32.mrf.mxu0
        %v631 = vpop.f32.mrf.mxu0
        %v632 = vadd.f32 0.0, %v631
        %v633 = vpop.f32.mrf.mxu0
        %634 = vmatprep.mubr.bf16.mxu0 0
        %635 = vmatmul.mubr.bf16.gmra.mxu0 %v492
        %v636 = vpop.f32.mrf.mxu0
        %v637 = vadd.f32 0.0, %v636
        %v638 = vpop.f32.mrf.mxu0
        %v639 = vpop.f32.mrf.mxu0
        %v640 = vadd.f32 0.0, %v639
        %v641 = vpop.f32.mrf.mxu0
        %642 = vmatprep.mubr.bf16.mxu0 0
        %643 = vmatmul.mubr.bf16.gmra.mxu0 %v495
        %v644 = vpop.f32.mrf.mxu0
        %v645 = vadd.f32 0.0, %v644
        %v646 = vpop.f32.mrf.mxu0
        %v647 = vpop.f32.mrf.mxu0
        %v648 = vadd.f32 0.0, %v647
        %v649 = vpop.f32.mrf.mxu0
        %650 = vmatprep.mubr.bf16.mxu0 0
        %651 = vmatmul.mubr.bf16.gmra.mxu0 %v498
        %v652 = vpop.f32.mrf.mxu0
        %v653 = vadd.f32 0.0, %v652
        %v654 = vpop.f32.mrf.mxu0
        %v655 = vpop.f32.mrf.mxu0
        %v656 = vadd.f32 0.0, %v655
        %v657 = vpop.f32.mrf.mxu0
        %658 = vmatprep.mubr.bf16.mxu0 0
        %659 = vmatmul.mubr.bf16.gmra.mxu0 %v501
        %v660 = vpop.f32.mrf.mxu0
        %v661 = vadd.f32 0.0, %v660
        %v662 = vpop.f32.mrf.mxu0
        %v663 = vpop.f32.mrf.mxu0
        %v664 = vadd.f32 0.0, %v663
        %v665 = vpop.f32.mrf.mxu0
        %666 = vmatprep.mubr.bf16.mxu0 0
        %667 = vmatmul.mubr.bf16.gmra.mxu0 %v504
        %v668 = vpop.f32.mrf.mxu0
        %v669 = vadd.f32 0.0, %v668
        %v670 = vpop.f32.mrf.mxu0
        %v671 = vpop.f32.mrf.mxu0
        %v672 = vadd.f32 0.0, %v671
        %v673 = vpop.f32.mrf.mxu0
        %674 = vmatprep.mubr.bf16.mxu0 0
        %675 = vmatmul.mubr.bf16.gmra.mxu0 %v507
        %v676 = vpop.f32.mrf.mxu0
        %v677 = vadd.f32 0.0, %v676
        %v678 = vpop.f32.mrf.mxu0
        %v679 = vpop.f32.mrf.mxu0
        %v680 = vadd.f32 0.0, %v679
        %v681 = vpop.f32.mrf.mxu0
        %682 = vmatprep.mubr.bf16.mxu0 0
        %683 = vmatmul.mubr.bf16.gmra.mxu0 %v510
        %v684 = vpop.f32.mrf.mxu0
        %v685 = vadd.f32 0.0, %v684
        %v686 = vpop.f32.mrf.mxu0
        %v687 = vpop.f32.mrf.mxu0
        %v688 = vadd.f32 0.0, %v687
        %v689 = vpop.f32.mrf.mxu0
        %690 = vmatprep.mubr.bf16.mxu0 0
        %691 = vmatmul.mubr.bf16.gmra.mxu0 %v513
        %v692 = vpop.f32.mrf.mxu0
        %v693 = vadd.f32 0.0, %v692
        %v694 = vpop.f32.mrf.mxu0
        %v695 = vpop.f32.mrf.mxu0
        %v696 = vadd.f32 0.0, %v695
        %v697 = vpop.f32.mrf.mxu0
        %698 = vmatprep.mubr.bf16.mxu0 0
        %699 = vmatmul.mubr.bf16.gmra.mxu0 %v516
        %v700 = vpop.f32.mrf.mxu0
        %v701 = vadd.f32 0.0, %v700
        %v702 = vpop.f32.mrf.mxu0
        %v703 = vpop.f32.mrf.mxu0
        %v704 = vadd.f32 0.0, %v703
        %v705 = vpop.f32.mrf.mxu0
        %706 = vmatprep.mubr.bf16.mxu0 0
        %707 = vmatmul.mubr.bf16.gmra.mxu0 %v519
        %v708 = vpop.f32.mrf.mxu0
        %v709 = vadd.f32 0.0, %v708
        %v710 = vpop.f32.mrf.mxu0
        %v711 = vpop.f32.mrf.mxu0
        %v712 = vadd.f32 0.0, %v711
        %v713 = vpop.f32.mrf.mxu0
        %714 = vmatprep.mubr.bf16.mxu0 0
        %715 = vmatmul.mubr.bf16.gmra.mxu0 %v522
        %v716 = vpop.f32.mrf.mxu0
        %v717 = vadd.f32 0.0, %v716
        %v718 = vpop.f32.mrf.mxu0
        %v719 = vpop.f32.mrf.mxu0
        %v720 = vadd.f32 0.0, %v719
        %v721 = vpop.f32.mrf.mxu0
        %722 = vmatprep.mubr.bf16.mxu0 0
        %723 = vmatmul.mubr.bf16.gmra.mxu0 %v525
        %v724 = vpop.f32.mrf.mxu0
        %v725 = vadd.f32 0.0, %v724
        %v726 = vpop.f32.mrf.mxu0
        %v727 = vpop.f32.mrf.mxu0
        %v728 = vadd.f32 0.0, %v727
        %v729 = vpop.f32.mrf.mxu0
        %730 = vmatprep.mubr.bf16.mxu0 0
        %731 = vmatmul.mubr.bf16.gmra.mxu0 %v528
        %v732 = vpop.f32.mrf.mxu0
        %v733 = vadd.f32 0.0, %v732
        %v734 = vpop.f32.mrf.mxu0
        %v735 = vpop.f32.mrf.mxu0
        %v736 = vadd.f32 0.0, %v735
        %v737 = vpop.f32.mrf.mxu0
        %738 = vmatprep.mubr.bf16.mxu0 0
        %739 = vmatmul.mubr.bf16.gmra.mxu0 %v531
        %v740 = vpop.f32.mrf.mxu0
        %v741 = vadd.f32 0.0, %v740
        %v742 = vpop.f32.mrf.mxu0
        %v743 = vpop.f32.mrf.mxu0
        %v744 = vadd.f32 0.0, %v743
        %v745 = vpop.f32.mrf.mxu0
        %746 = vmatprep.mubr.bf16.mxu0 0
        %747 = vmatmul.mubr.bf16.gmra.mxu0 %v534
        %v748 = vpop.f32.mrf.mxu0
        %v749 = vadd.f32 0.0, %v748
        %v750 = vpop.f32.mrf.mxu0
        %v751 = vpop.f32.mrf.mxu0
        %v752 = vadd.f32 0.0, %v751
        %v753 = vpop.f32.mrf.mxu0
        %754 = vmatprep.mubr.bf16.mxu0 0
        %755 = vmatmul.mubr.bf16.gmra.mxu0 %v537
        %v756 = vpop.f32.mrf.mxu0
        %v757 = vadd.f32 0.0, %v756
        %v758 = vpop.f32.mrf.mxu0
        %v759 = vpop.f32.mrf.mxu0
        %v760 = vadd.f32 0.0, %v759
        %v761 = vpop.f32.mrf.mxu0
        %762 = vmatprep.mubr.bf16.mxu0 0
        %763 = vmatmul.mubr.bf16.gmra.mxu0 %v540
        %v764 = vpop.f32.mrf.mxu0
        %v765 = vadd.f32 0.0, %v764
        %v766 = vpop.f32.mrf.mxu0
        %v767 = vpop.f32.mrf.mxu0
        %v768 = vadd.f32 0.0, %v767
        %v769 = vpop.f32.mrf.mxu0
        %770 = vmatprep.mubr.bf16.mxu0 0
        %771 = vmatmul.mubr.bf16.gmra.mxu0 %v543
        %v772 = vpop.f32.mrf.mxu0
        %v773 = vadd.f32 0.0, %v772
        %v774 = vpop.f32.mrf.mxu0
        %v775 = vpop.f32.mrf.mxu0
        %v776 = vadd.f32 0.0, %v775
        %v777 = vpop.f32.mrf.mxu0
        %778 = vmatprep.mubr.bf16.mxu0 0
        %779 = vmatmul.mubr.bf16.gmra.mxu0 %v546
        %v780 = vpop.f32.mrf.mxu0
        %v781 = vadd.f32 0.0, %v780
        %v782 = vpop.f32.mrf.mxu0
        %v783 = vpop.f32.mrf.mxu0
        %v784 = vadd.f32 0.0, %v783
        %v785 = vpop.f32.mrf.mxu0
        %786 = vmatprep.mubr.bf16.mxu0 0
        %787 = vmatmul.mubr.bf16.gmra.mxu0 %v549
        %v788 = vpop.f32.mrf.mxu0
        %v789 = vadd.f32 0.0, %v788
        %v790 = vpop.f32.mrf.mxu0
        %v791 = vpop.f32.mrf.mxu0
        %v792 = vadd.f32 0.0, %v791
        %v793 = vpop.f32.mrf.mxu0
        %794 = vmatprep.mubr.bf16.mxu0 0
        %795 = vmatmul.mubr.bf16.gmra.mxu0 %v552
        %v796 = vpop.f32.mrf.mxu0
        %v797 = vadd.f32 0.0, %v796
        %v798 = vpop.f32.mrf.mxu0
        %v799 = vpop.f32.mrf.mxu0
        %v800 = vadd.f32 0.0, %v799
        %v801 = vpop.f32.mrf.mxu0
        %802 = vmatprep.mubr.bf16.mxu0 0
        %803 = vmatmul.mubr.bf16.gmra.mxu0 %v555
        %v804 = vpop.f32.mrf.mxu0
        %v805 = vadd.f32 0.0, %v804
        %v806 = vpop.f32.mrf.mxu0
        %v807 = vpop.f32.mrf.mxu0
        %v808 = vadd.f32 0.0, %v807
        %v809 = vpop.f32.mrf.mxu0
        %810 = vmatprep.mubr.bf16.mxu0 0
        %811 = vmatmul.mubr.bf16.gmra.mxu0 %v558
        %v812 = vpop.f32.mrf.mxu0
        %v813 = vadd.f32 0.0, %v812
        %v814 = vpop.f32.mrf.mxu0
        %v815 = vpop.f32.mrf.mxu0
        %v816 = vadd.f32 0.0, %v815
        %v817 = vpop.f32.mrf.mxu0
        %818 = vmatprep.mubr.bf16.mxu0 0
        %819 = vmatmul.mubr.bf16.gmra.mxu0 %v561
        %v820 = vpop.f32.mrf.mxu0
        %v821 = vadd.f32 0.0, %v820
        %v822 = vpop.f32.mrf.mxu0
        %v823 = vpop.f32.mrf.mxu0
        %v824 = vadd.f32 0.0, %v823
        %v825 = vpop.f32.mrf.mxu0
        %826 = vmatprep.mubr.bf16.mxu0 0
        %827 = vmatmul.mubr.bf16.gmra.mxu0 %v564
        %v828 = vpop.f32.mrf.mxu0
        %v829 = vadd.f32 0.0, %v828
        %v830 = vpop.f32.mrf.mxu0
        %v831 = vpop.f32.mrf.mxu0
        %v832 = vadd.f32 0.0, %v831
        %v833 = vpop.f32.mrf.mxu0
        %834 = vmatprep.mubr.bf16.mxu0 0
        %835 = vmatmul.mubr.bf16.gmra.mxu0 %v567
        %v836 = vpop.f32.mrf.mxu0
        %v837 = vadd.f32 0.0, %v836
        %v838 = vpop.f32.mrf.mxu0
        %v839 = vpop.f32.mrf.mxu0
        %v840 = vadd.f32 0.0, %v839
        %v841 = vpop.f32.mrf.mxu0
        %842 = vmatprep.mubr.bf16.mxu0 0
        %843 = vmatmul.mubr.bf16.gmra.mxu0 %v570
        %v844 = vpop.f32.mrf.mxu0
        %v845 = vadd.f32 0.0, %v844
        %v846 = vpop.f32.mrf.mxu0
        %v847 = vpop.f32.mrf.mxu0
        %v848 = vadd.f32 0.0, %v847
        %v849 = vpop.f32.mrf.mxu0
        %850 = vmatprep.mubr.bf16.mxu0 0
        %851 = vmatmul.mubr.bf16.gmra.mxu0 %v573
        %v852 = vpop.f32.mrf.mxu0
        %v853 = vadd.f32 0.0, %v852
        %v854 = vpop.f32.mrf.mxu0
        %v855 = vpop.f32.mrf.mxu0
        %v856 = vadd.f32 0.0, %v855
        %v857 = vpop.f32.mrf.mxu0
        %858 = vmatprep.mubr.bf16.mxu0 0
        %859 = vmatmul.mubr.bf16.gmra.mxu0 %v576
        %v860 = vpop.f32.mrf.mxu0
        %v861 = vadd.f32 0.0, %v860
        %v862 = vpop.f32.mrf.mxu0
        %v863 = vpop.f32.mrf.mxu0
        %v864 = vadd.f32 0.0, %v863
        %v865 = vpop.f32.mrf.mxu0
        %866 = vdwg.mxu0
        %v867 = vld [vmem:[%s2] sm:$0x1]
        %v869 = vlaneseq
        %v870 = vshrl.u32 %v869, 7
        %v871 = vsub.s32 0, %v870
        %v872 = vrot.slane %v867, %v871
        %v874 = vmul.f32 %v613, %v872
        %v875 = vmul.f32 %v616, %v872
        %v876 = vmul.f32 %v621, %v872
        %v877 = vmul.f32 %v624, %v872
        %v878 = vmul.f32 %v629, %v872
        %v879 = vmul.f32 %v632, %v872
        %v880 = vmul.f32 %v637, %v872
        %v881 = vmul.f32 %v640, %v872
        %v882 = vmul.f32 %v645, %v872
        %v883 = vmul.f32 %v648, %v872
        %v884 = vmul.f32 %v653, %v872
        %v885 = vmul.f32 %v656, %v872
        %v886 = vmul.f32 %v661, %v872
        %v887 = vmul.f32 %v664, %v872
        %v888 = vmul.f32 %v669, %v872
        %v889 = vmul.f32 %v672, %v872
        %v890 = vmul.f32 %v677, %v872
        %v891 = vmul.f32 %v680, %v872
        %v892 = vmul.f32 %v685, %v872
        %v893 = vmul.f32 %v688, %v872
        %v894 = vmul.f32 %v693, %v872
        %v895 = vmul.f32 %v696, %v872
        %v896 = vmul.f32 %v701, %v872
        %v897 = vmul.f32 %v704, %v872
        %v898 = vmul.f32 %v709, %v872
        %v899 = vmul.f32 %v712, %v872
        %v900 = vmul.f32 %v717, %v872
        %v901 = vmul.f32 %v720, %v872
        %v902 = vmul.f32 %v725, %v872
        %v903 = vmul.f32 %v728, %v872
        %v904 = vmul.f32 %v733, %v872
        %v905 = vmul.f32 %v736, %v872
        %v906 = vmul.f32 %v741, %v872
        %v907 = vmul.f32 %v744, %v872
        %v908 = vmul.f32 %v749, %v872
        %v909 = vmul.f32 %v752, %v872
        %v910 = vmul.f32 %v757, %v872
        %v911 = vmul.f32 %v760, %v872
        %v912 = vmul.f32 %v765, %v872
        %v913 = vmul.f32 %v768, %v872
        %v914 = vmul.f32 %v773, %v872
        %v915 = vmul.f32 %v776, %v872
        %v916 = vmul.f32 %v781, %v872
        %v917 = vmul.f32 %v784, %v872
        %v918 = vmul.f32 %v789, %v872
        %v919 = vmul.f32 %v792, %v872
        %v920 = vmul.f32 %v797, %v872
        %v921 = vmul.f32 %v800, %v872
        %v922 = vmul.f32 %v805, %v872
        %v923 = vmul.f32 %v808, %v872
        %v924 = vmul.f32 %v813, %v872
        %v925 = vmul.f32 %v816, %v872
        %v926 = vmul.f32 %v821, %v872
        %v927 = vmul.f32 %v824, %v872
        %v928 = vmul.f32 %v829, %v872
        %v929 = vmul.f32 %v832, %v872
        %v930 = vmul.f32 %v837, %v872
        %v931 = vmul.f32 %v840, %v872
        %v932 = vmul.f32 %v845, %v872
        %v933 = vmul.f32 %v848, %v872
        %v934 = vmul.f32 %v853, %v872
        %v935 = vmul.f32 %v856, %v872
        %v936 = vmul.f32 %v861, %v872
        %v937 = vmul.f32 %v864, %v872
        %v938 = vld [vmem:[%s3] sm:$0x1]
        %v940 = vlaneseq
        %v941 = vshrl.u32 %v940, 7
        %v942 = vsub.s32 0, %v941
        %v943 = vrot.slane %v938, %v942
        %v945 = vadd.f32 %v874, %v943
        %v946 = vadd.f32 %v875, %v943
        %v947 = vadd.f32 %v876, %v943
        %v948 = vadd.f32 %v877, %v943
        %v949 = vadd.f32 %v878, %v943
        %v950 = vadd.f32 %v879, %v943
        %v951 = vadd.f32 %v880, %v943
        %v952 = vadd.f32 %v881, %v943
        %v953 = vadd.f32 %v882, %v943
        %v954 = vadd.f32 %v883, %v943
        %v955 = vadd.f32 %v884, %v943
        %v956 = vadd.f32 %v885, %v943
        %v957 = vadd.f32 %v886, %v943
        %v958 = vadd.f32 %v887, %v943
        %v959 = vadd.f32 %v888, %v943
        %v960 = vadd.f32 %v889, %v943
        %v961 = vadd.f32 %v890, %v943
        %v962 = vadd.f32 %v891, %v943
        %v963 = vadd.f32 %v892, %v943
        %v964 = vadd.f32 %v893, %v943
        %v965 = vadd.f32 %v894, %v943
        %v966 = vadd.f32 %v895, %v943
        %v967 = vadd.f32 %v896, %v943
        %v968 = vadd.f32 %v897, %v943
        %v969 = vadd.f32 %v898, %v943
        %v970 = vadd.f32 %v899, %v943
        %v971 = vadd.f32 %v900, %v943
        %v972 = vadd.f32 %v901, %v943
        %v973 = vadd.f32 %v902, %v943
        %v974 = vadd.f32 %v903, %v943
        %v975 = vadd.f32 %v904, %v943
        %v976 = vadd.f32 %v905, %v943
        %v977 = vadd.f32 %v906, %v943
        %v978 = vadd.f32 %v907, %v943
        %v979 = vadd.f32 %v908, %v943
        %v980 = vadd.f32 %v909, %v943
        %v981 = vadd.f32 %v910, %v943
        %v982 = vadd.f32 %v911, %v943
        %v983 = vadd.f32 %v912, %v943
        %v984 = vadd.f32 %v913, %v943
        %v985 = vadd.f32 %v914, %v943
        %v986 = vadd.f32 %v915, %v943
        %v987 = vadd.f32 %v916, %v943
        %v988 = vadd.f32 %v917, %v943
        %v989 = vadd.f32 %v918, %v943
        %v990 = vadd.f32 %v919, %v943
        %v991 = vadd.f32 %v920, %v943
        %v992 = vadd.f32 %v921, %v943
        %v993 = vadd.f32 %v922, %v943
        %v994 = vadd.f32 %v923, %v943
        %v995 = vadd.f32 %v924, %v943
        %v996 = vadd.f32 %v925, %v943
        %v997 = vadd.f32 %v926, %v943
        %v998 = vadd.f32 %v927, %v943
        %v999 = vadd.f32 %v928, %v943
        %v1000 = vadd.f32 %v929, %v943
        %v1001 = vadd.f32 %v930, %v943
        %v1002 = vadd.f32 %v931, %v943
        %v1003 = vadd.f32 %v932, %v943
        %v1004 = vadd.f32 %v933, %v943
        %v1005 = vadd.f32 %v934, %v943
        %v1006 = vadd.f32 %v935, %v943
        %v1007 = vadd.f32 %v936, %v943
        %v1008 = vadd.f32 %v937, %v943
        %v1009 = vld [vmem:[%s245] sm:$0xff]
        %v1010 = vld [vmem:[%s245 + $0x8] sm:$0xff]
        %v1011 = vld [vmem:[%s245 + $0x10] sm:$0xff]
        %v1012 = vld [vmem:[%s245 + $0x18] sm:$0xff]
        %v1013 = vld [vmem:[%s245 + $0x20] sm:$0xff]
        %v1014 = vld [vmem:[%s245 + $0x28] sm:$0xff]
        %v1015 = vld [vmem:[%s245 + $0x30] sm:$0xff]
        %v1016 = vld [vmem:[%s245 + $0x38] sm:$0xff]
        %v1017 = vld [vmem:[%s245 + $0x40] sm:$0xff]
        %v1018 = vld [vmem:[%s245 + $0x48] sm:$0xff]
        %v1019 = vld [vmem:[%s245 + $0x50] sm:$0xff]
        %v1020 = vld [vmem:[%s245 + $0x58] sm:$0xff]
        %v1021 = vld [vmem:[%s245 + $0x60] sm:$0xff]
        %v1022 = vld [vmem:[%s245 + $0x68] sm:$0xff]
        %v1023 = vld [vmem:[%s245 + $0x70] sm:$0xff]
        %v1024 = vld [vmem:[%s245 + $0x78] sm:$0xff]
        %v1025 = vld [vmem:[%s245 + $0x80] sm:$0xff]
        %v1026 = vld [vmem:[%s245 + $0x88] sm:$0xff]
        %v1027 = vld [vmem:[%s245 + $0x90] sm:$0xff]
        %v1028 = vld [vmem:[%s245 + $0x98] sm:$0xff]
        %v1029 = vld [vmem:[%s245 + $0xa0] sm:$0xff]
        %v1030 = vld [vmem:[%s245 + $0xa8] sm:$0xff]
        %v1031 = vld [vmem:[%s245 + $0xb0] sm:$0xff]
        %v1032 = vld [vmem:[%s245 + $0xb8] sm:$0xff]
        %v1033 = vld [vmem:[%s245 + $0xc0] sm:$0xff]
        %v1034 = vld [vmem:[%s245 + $0xc8] sm:$0xff]
        %v1035 = vld [vmem:[%s245 + $0xd0] sm:$0xff]
        %v1036 = vld [vmem:[%s245 + $0xd8] sm:$0xff]
        %v1037 = vld [vmem:[%s245 + $0xe0] sm:$0xff]
        %v1038 = vld [vmem:[%s245 + $0xe8] sm:$0xff]
        %v1039 = vld [vmem:[%s245 + $0xf0] sm:$0xff]
        %v1040 = vld [vmem:[%s245 + $0xf8] sm:$0xff]
        %v1041 = vld [vmem:[%s245 + $0x100] sm:$0xff]
        %v1042 = vld [vmem:[%s245 + $0x108] sm:$0xff]
        %v1043 = vld [vmem:[%s245 + $0x110] sm:$0xff]
        %v1044 = vld [vmem:[%s245 + $0x118] sm:$0xff]
        %v1045 = vld [vmem:[%s245 + $0x120] sm:$0xff]
        %v1046 = vld [vmem:[%s245 + $0x128] sm:$0xff]
        %v1047 = vld [vmem:[%s245 + $0x130] sm:$0xff]
        %v1048 = vld [vmem:[%s245 + $0x138] sm:$0xff]
        %v1049 = vld [vmem:[%s245 + $0x140] sm:$0xff]
        %v1050 = vld [vmem:[%s245 + $0x148] sm:$0xff]
        %v1051 = vld [vmem:[%s245 + $0x150] sm:$0xff]
        %v1052 = vld [vmem:[%s245 + $0x158] sm:$0xff]
        %v1053 = vld [vmem:[%s245 + $0x160] sm:$0xff]
        %v1054 = vld [vmem:[%s245 + $0x168] sm:$0xff]
        %v1055 = vld [vmem:[%s245 + $0x170] sm:$0xff]
        %v1056 = vld [vmem:[%s245 + $0x178] sm:$0xff]
        %v1057 = vld [vmem:[%s245 + $0x180] sm:$0xff]
        %v1058 = vld [vmem:[%s245 + $0x188] sm:$0xff]
        %v1059 = vld [vmem:[%s245 + $0x190] sm:$0xff]
        %v1060 = vld [vmem:[%s245 + $0x198] sm:$0xff]
        %v1061 = vld [vmem:[%s245 + $0x1a0] sm:$0xff]
        %v1062 = vld [vmem:[%s245 + $0x1a8] sm:$0xff]
        %v1063 = vld [vmem:[%s245 + $0x1b0] sm:$0xff]
        %v1064 = vld [vmem:[%s245 + $0x1b8] sm:$0xff]
        %v1065 = vld [vmem:[%s245 + $0x1c0] sm:$0xff]
        %v1066 = vld [vmem:[%s245 + $0x1c8] sm:$0xff]
        %v1067 = vld [vmem:[%s245 + $0x1d0] sm:$0xff]
        %v1068 = vld [vmem:[%s245 + $0x1d8] sm:$0xff]
        %v1069 = vld [vmem:[%s245 + $0x1e0] sm:$0xff]
        %v1070 = vld [vmem:[%s245 + $0x1e8] sm:$0xff]
        %v1071 = vld [vmem:[%s245 + $0x1f0] sm:$0xff]
        %v1072 = vld [vmem:[%s245 + $0x1f8] sm:$0xff]
        %v1073 = vadd.f32 %v945, %v1009
        %v1074 = vadd.f32 %v946, %v1010
        %v1075 = vadd.f32 %v947, %v1011
        %v1076 = vadd.f32 %v948, %v1012
        %v1077 = vadd.f32 %v949, %v1013
        %v1078 = vadd.f32 %v950, %v1014
        %v1079 = vadd.f32 %v951, %v1015
        %v1080 = vadd.f32 %v952, %v1016
        %v1081 = vadd.f32 %v953, %v1017
        %v1082 = vadd.f32 %v954, %v1018
        %v1083 = vadd.f32 %v955, %v1019
        %v1084 = vadd.f32 %v956, %v1020
        %v1085 = vadd.f32 %v957, %v1021
        %v1086 = vadd.f32 %v958, %v1022
        %v1087 = vadd.f32 %v959, %v1023
        %v1088 = vadd.f32 %v960, %v1024
        %v1089 = vadd.f32 %v961, %v1025
        %v1090 = vadd.f32 %v962, %v1026
        %v1091 = vadd.f32 %v963, %v1027
        %v1092 = vadd.f32 %v964, %v1028
        %v1093 = vadd.f32 %v965, %v1029
        %v1094 = vadd.f32 %v966, %v1030
        %v1095 = vadd.f32 %v967, %v1031
        %v1096 = vadd.f32 %v968, %v1032
        %v1097 = vadd.f32 %v969, %v1033
        %v1098 = vadd.f32 %v970, %v1034
        %v1099 = vadd.f32 %v971, %v1035
        %v1100 = vadd.f32 %v972, %v1036
        %v1101 = vadd.f32 %v973, %v1037
        %v1102 = vadd.f32 %v974, %v1038
        %v1103 = vadd.f32 %v975, %v1039
        %v1104 = vadd.f32 %v976, %v1040
        %v1105 = vadd.f32 %v977, %v1041
        %v1106 = vadd.f32 %v978, %v1042
        %v1107 = vadd.f32 %v979, %v1043
        %v1108 = vadd.f32 %v980, %v1044
        %v1109 = vadd.f32 %v981, %v1045
        %v1110 = vadd.f32 %v982, %v1046
        %v1111 = vadd.f32 %v983, %v1047
        %v1112 = vadd.f32 %v984, %v1048
        %v1113 = vadd.f32 %v985, %v1049
        %v1114 = vadd.f32 %v986, %v1050
        %v1115 = vadd.f32 %v987, %v1051
        %v1116 = vadd.f32 %v988, %v1052
        %v1117 = vadd.f32 %v989, %v1053
        %v1118 = vadd.f32 %v990, %v1054
        %v1119 = vadd.f32 %v991, %v1055
        %v1120 = vadd.f32 %v992, %v1056
        %v1121 = vadd.f32 %v993, %v1057
        %v1122 = vadd.f32 %v994, %v1058
        %v1123 = vadd.f32 %v995, %v1059
        %v1124 = vadd.f32 %v996, %v1060
        %v1125 = vadd.f32 %v997, %v1061
        %v1126 = vadd.f32 %v998, %v1062
        %v1127 = vadd.f32 %v999, %v1063
        %v1128 = vadd.f32 %v1000, %v1064
        %v1129 = vadd.f32 %v1001, %v1065
        %v1130 = vadd.f32 %v1002, %v1066
        %v1131 = vadd.f32 %v1003, %v1067
        %v1132 = vadd.f32 %v1004, %v1068
        %v1133 = vadd.f32 %v1005, %v1069
        %v1134 = vadd.f32 %v1006, %v1070
        %v1135 = vadd.f32 %v1007, %v1071
        %v1136 = vadd.f32 %v1008, %v1072
        %v1137 = vmax.f32 %v1073, 0.0
        %v1138 = vmax.f32 %v1074, 0.0
        %v1139 = vmax.f32 %v1075, 0.0
        %v1140 = vmax.f32 %v1076, 0.0
        %v1141 = vmax.f32 %v1077, 0.0
        %v1142 = vmax.f32 %v1078, 0.0
        %v1143 = vmax.f32 %v1079, 0.0
        %v1144 = vmax.f32 %v1080, 0.0
        %v1145 = vmax.f32 %v1081, 0.0
        %v1146 = vmax.f32 %v1082, 0.0
        %v1147 = vmax.f32 %v1083, 0.0
        %v1148 = vmax.f32 %v1084, 0.0
        %v1149 = vmax.f32 %v1085, 0.0
        %v1150 = vmax.f32 %v1086, 0.0
        %v1151 = vmax.f32 %v1087, 0.0
        %v1152 = vmax.f32 %v1088, 0.0
        %v1153 = vmax.f32 %v1089, 0.0
        %v1154 = vmax.f32 %v1090, 0.0
        %v1155 = vmax.f32 %v1091, 0.0
        %v1156 = vmax.f32 %v1092, 0.0
        %v1157 = vmax.f32 %v1093, 0.0
        %v1158 = vmax.f32 %v1094, 0.0
        %v1159 = vmax.f32 %v1095, 0.0
        %v1160 = vmax.f32 %v1096, 0.0
        %v1161 = vmax.f32 %v1097, 0.0
        %v1162 = vmax.f32 %v1098, 0.0
        %v1163 = vmax.f32 %v1099, 0.0
        %v1164 = vmax.f32 %v1100, 0.0
        %v1165 = vmax.f32 %v1101, 0.0
        %v1166 = vmax.f32 %v1102, 0.0
        %v1167 = vmax.f32 %v1103, 0.0
        %v1168 = vmax.f32 %v1104, 0.0
        %v1169 = vmax.f32 %v1105, 0.0
        %v1170 = vmax.f32 %v1106, 0.0
        %v1171 = vmax.f32 %v1107, 0.0
        %v1172 = vmax.f32 %v1108, 0.0
        %v1173 = vmax.f32 %v1109, 0.0
        %v1174 = vmax.f32 %v1110, 0.0
        %v1175 = vmax.f32 %v1111, 0.0
        %v1176 = vmax.f32 %v1112, 0.0
        %v1177 = vmax.f32 %v1113, 0.0
        %v1178 = vmax.f32 %v1114, 0.0
        %v1179 = vmax.f32 %v1115, 0.0
        %v1180 = vmax.f32 %v1116, 0.0
        %v1181 = vmax.f32 %v1117, 0.0
        %v1182 = vmax.f32 %v1118, 0.0
        %v1183 = vmax.f32 %v1119, 0.0
        %v1184 = vmax.f32 %v1120, 0.0
        %v1185 = vmax.f32 %v1121, 0.0
        %v1186 = vmax.f32 %v1122, 0.0
        %v1187 = vmax.f32 %v1123, 0.0
        %v1188 = vmax.f32 %v1124, 0.0
        %v1189 = vmax.f32 %v1125, 0.0
        %v1190 = vmax.f32 %v1126, 0.0
        %v1191 = vmax.f32 %v1127, 0.0
        %v1192 = vmax.f32 %v1128, 0.0
        %v1193 = vmax.f32 %v1129, 0.0
        %v1194 = vmax.f32 %v1130, 0.0
        %v1195 = vmax.f32 %v1131, 0.0
        %v1196 = vmax.f32 %v1132, 0.0
        %v1197 = vmax.f32 %v1133, 0.0
        %v1198 = vmax.f32 %v1134, 0.0
        %v1199 = vmax.f32 %v1135, 0.0
        %v1200 = vmax.f32 %v1136, 0.0
        %vm1201 = vcmask 523264
        %1202 = vst.msk [vmem:[%s234] sm:$0xff] %vm1201, %v1137
        %1203 = vst.msk [vmem:[%s234 + $0x8] sm:$0xff] %vm1201, %v1138
        %1204 = vst.msk [vmem:[%s234 + $0x10] sm:$0xff] %vm1201, %v1139
        %1205 = vst.msk [vmem:[%s234 + $0x18] sm:$0xff] %vm1201, %v1140
        %1206 = vst.msk [vmem:[%s234 + $0x20] sm:$0xff] %vm1201, %v1141
        %1207 = vst.msk [vmem:[%s234 + $0x28] sm:$0xff] %vm1201, %v1142
        %1208 = vst.msk [vmem:[%s234 + $0x30] sm:$0xff] %vm1201, %v1143
        %1209 = vst.msk [vmem:[%s234 + $0x38] sm:$0xff] %vm1201, %v1144
        %1210 = vst.msk [vmem:[%s234 + $0x40] sm:$0xff] %vm1201, %v1145
        %1211 = vst.msk [vmem:[%s234 + $0x48] sm:$0xff] %vm1201, %v1146
        %1212 = vst.msk [vmem:[%s234 + $0x50] sm:$0xff] %vm1201, %v1147
        %1213 = vst.msk [vmem:[%s234 + $0x58] sm:$0xff] %vm1201, %v1148
        %1214 = vst.msk [vmem:[%s234 + $0x60] sm:$0xff] %vm1201, %v1149
        %1215 = vst.msk [vmem:[%s234 + $0x68] sm:$0xff] %vm1201, %v1150
        %1216 = vst.msk [vmem:[%s234 + $0x70] sm:$0xff] %vm1201, %v1151
        %1217 = vst.msk [vmem:[%s234 + $0x78] sm:$0xff] %vm1201, %v1152
        %1218 = vst.msk [vmem:[%s234 + $0x80] sm:$0xff] %vm1201, %v1153
        %1219 = vst.msk [vmem:[%s234 + $0x88] sm:$0xff] %vm1201, %v1154
        %1220 = vst.msk [vmem:[%s234 + $0x90] sm:$0xff] %vm1201, %v1155
        %1221 = vst.msk [vmem:[%s234 + $0x98] sm:$0xff] %vm1201, %v1156
        %1222 = vst.msk [vmem:[%s234 + $0xa0] sm:$0xff] %vm1201, %v1157
        %1223 = vst.msk [vmem:[%s234 + $0xa8] sm:$0xff] %vm1201, %v1158
        %1224 = vst.msk [vmem:[%s234 + $0xb0] sm:$0xff] %vm1201, %v1159
        %1225 = vst.msk [vmem:[%s234 + $0xb8] sm:$0xff] %vm1201, %v1160
        %1226 = vst.msk [vmem:[%s234 + $0xc0] sm:$0xff] %vm1201, %v1161
        %1227 = vst.msk [vmem:[%s234 + $0xc8] sm:$0xff] %vm1201, %v1162
        %1228 = vst.msk [vmem:[%s234 + $0xd0] sm:$0xff] %vm1201, %v1163
        %1229 = vst.msk [vmem:[%s234 + $0xd8] sm:$0xff] %vm1201, %v1164
        %1230 = vst.msk [vmem:[%s234 + $0xe0] sm:$0xff] %vm1201, %v1165
        %1231 = vst.msk [vmem:[%s234 + $0xe8] sm:$0xff] %vm1201, %v1166
        %1232 = vst.msk [vmem:[%s234 + $0xf0] sm:$0xff] %vm1201, %v1167
        %1233 = vst.msk [vmem:[%s234 + $0xf8] sm:$0xff] %vm1201, %v1168
        %1234 = vst.msk [vmem:[%s234 + $0x100] sm:$0xff] %vm1201, %v1169
        %1235 = vst.msk [vmem:[%s234 + $0x108] sm:$0xff] %vm1201, %v1170
        %1236 = vst.msk [vmem:[%s234 + $0x110] sm:$0xff] %vm1201, %v1171
        %1237 = vst.msk [vmem:[%s234 + $0x118] sm:$0xff] %vm1201, %v1172
        %1238 = vst.msk [vmem:[%s234 + $0x120] sm:$0xff] %vm1201, %v1173
        %1239 = vst.msk [vmem:[%s234 + $0x128] sm:$0xff] %vm1201, %v1174
        %1240 = vst.msk [vmem:[%s234 + $0x130] sm:$0xff] %vm1201, %v1175
        %1241 = vst.msk [vmem:[%s234 + $0x138] sm:$0xff] %vm1201, %v1176
        %1242 = vst.msk [vmem:[%s234 + $0x140] sm:$0xff] %vm1201, %v1177
        %1243 = vst.msk [vmem:[%s234 + $0x148] sm:$0xff] %vm1201, %v1178
        %1244 = vst.msk [vmem:[%s234 + $0x150] sm:$0xff] %vm1201, %v1179
        %1245 = vst.msk [vmem:[%s234 + $0x158] sm:$0xff] %vm1201, %v1180
        %1246 = vst.msk [vmem:[%s234 + $0x160] sm:$0xff] %vm1201, %v1181
        %1247 = vst.msk [vmem:[%s234 + $0x168] sm:$0xff] %vm1201, %v1182
        %1248 = vst.msk [vmem:[%s234 + $0x170] sm:$0xff] %vm1201, %v1183
        %1249 = vst.msk [vmem:[%s234 + $0x178] sm:$0xff] %vm1201, %v1184
        %1250 = vst.msk [vmem:[%s234 + $0x180] sm:$0xff] %vm1201, %v1185
        %1251 = vst.msk [vmem:[%s234 + $0x188] sm:$0xff] %vm1201, %v1186
        %1252 = vst.msk [vmem:[%s234 + $0x190] sm:$0xff] %vm1201, %v1187
        %1253 = vst.msk [vmem:[%s234 + $0x198] sm:$0xff] %vm1201, %v1188
        %1254 = vst.msk [vmem:[%s234 + $0x1a0] sm:$0xff] %vm1201, %v1189
        %1255 = vst.msk [vmem:[%s234 + $0x1a8] sm:$0xff] %vm1201, %v1190
        %1256 = vst.msk [vmem:[%s234 + $0x1b0] sm:$0xff] %vm1201, %v1191
        %1257 = vst.msk [vmem:[%s234 + $0x1b8] sm:$0xff] %vm1201, %v1192
        %1258 = vst.msk [vmem:[%s234 + $0x1c0] sm:$0xff] %vm1201, %v1193
        %1259 = vst.msk [vmem:[%s234 + $0x1c8] sm:$0xff] %vm1201, %v1194
        %1260 = vst.msk [vmem:[%s234 + $0x1d0] sm:$0xff] %vm1201, %v1195
        %1261 = vst.msk [vmem:[%s234 + $0x1d8] sm:$0xff] %vm1201, %v1196
        %1262 = vst.msk [vmem:[%s234 + $0x1e0] sm:$0xff] %vm1201, %v1197
        %1263 = vst.msk [vmem:[%s234 + $0x1e8] sm:$0xff] %vm1201, %v1198
        %1264 = vst.msk [vmem:[%s234 + $0x1f0] sm:$0xff] %vm1201, %v1199
        %1265 = vst.msk [vmem:[%s234 + $0x1f8] sm:$0xff] %vm1201, %v1200
        %s1266 = sand.u32 %s142, 1
        %s1267 = scalar_lea.sflag [#allocation3], %s1266
        %s1268 = sand.u32 %s142, 1
        %s1269 = smul.addr %s1268, 512
        %s1270 = scalar_lea.vmem [#allocation2], %s1269
        // Predicated region
        $region41: #{bottleneck_forward.5} parent=39 // pred_check
          %p1271 = pneg %p152
        $region42: #{bottleneck_forward.5} parent=39 // pred_check_branch
          %1273 = sbr.rel (%p1271) target = $region44
        $region43: #{bottleneck_forward.5} parent=39 // pred_region
          %s1274 = smul.u32 64, %s19
          %s1276 = ssub.s32 8192, 8192
          %1277 = vsyncadd %s1267, %s1276
          %s1278 = smul.addr %s1274, 128
          %s1279 = scalar_lea.hbm %s5, %s1278
          %s1280 = sshll.u32 %s1270, 4
          %s1281 = int_to_ptr.vmem [resolvable:$true] %s1280
          %1286 = dma.vmem_to_hbm [thread:$0]  %s1281, 8192, %s1279, %s1267, 128, 128, 8
        $region44: #{bottleneck_forward.5} parent=39 // pred_fallthru
          _
      $region40: #{bottleneck_forward.5} parent=5 // pred_fallthru
        _
      %p1287 = scmp.le.s32.totalorder 2, %s14
      // Predicated region
      $region45: #{bottleneck_forward.5} parent=5 // pred_check
        %p1288 = pneg %p1287
      $region46: #{bottleneck_forward.5} parent=5 // pred_check_branch
        %1290 = sbr.rel (%p1288) target = $region48
      $region47: #{bottleneck_forward.5} parent=5 // pred_region
        %s1291 = ssub.s32 %s14, 2
        // Predicated region
        $region49: #{bottleneck_forward.5} parent=47 // pred_check
          %p1292 = pneg %p158
        $region50: #{bottleneck_forward.5} parent=47 // pred_check_branch
          %1294 = sbr.rel (%p1292) target = $region52
        $region51: #{bottleneck_forward.5} parent=47 // pred_region
          %s1295 = sand.u32 %s143, 1
          %s1296 = scalar_lea.sflag [#allocation3], %s1295
          %s1297 = sand.u32 %s143, 1
          %s1298 = smul.addr %s1297, 512
          %s1299 = scalar_lea.vmem [#allocation2], %s1298
          %1300 = dma.done %s1296, 8192
        $region52: #{bottleneck_forward.5} parent=47 // pred_fallthru
          _
      $region48: #{bottleneck_forward.5} parent=5 // pred_fallthru
        _
    $region6: #{bottleneck_forward.5} parent=1 // loop_footer
      %s18 = sadd.s32 1, %s14
    $region7: #{bottleneck_forward.5} parent=1 // loop_footer_branch
      %13 = sbr.rel target = $region3
    $region8: #{bottleneck_forward.5} parent=1 // loop_exit
      _
    %1301 = vsyncpa [#allocation3], 1
    %s1302 = scalar_lea.sflag [#allocation3], 1
    %1303 = vsyncpa %s1302, 1

// kernel: bottleneck_forward.3
$region0: #{bottleneck_forward.3}
  #allocation0 [shape = 'u32[]', space=smem, size = 0x4, offset = 0x4, fixed_abs, tag = 'smem constant byte address 0x4 - core index']
  #allocation1 [shape = 'u32[144,128]{1,0:T(1,128)}', space=vmem, size = 0x12000, scoped, tag = 'internal scratch']
  %s0 = inlined_call_operand.hbm [shape: f32[1024,64], index: 0, kind: input, shape index: {}]
  %s1 = inlined_call_operand.vmem [shape: bf16[64,8], index: 1, kind: input, shape index: {}]
  %s2 = inlined_call_operand.vmem [shape: bf16[64,8], index: 2, kind: input, shape index: {}]
  %s3 = inlined_call_operand.vmem [shape: f32[1,8], index: 3, kind: input, shape index: {}]
  %s4 = inlined_call_operand.vmem [shape: f32[1,8], index: 4, kind: input, shape index: {}]
  %s5 = inlined_call_operand.vmem [shape: f32[1,8], index: 5, kind: input, shape index: {}]
  %s6 = inlined_call_operand.vmem [shape: f32[1,8], index: 6, kind: input, shape index: {}]
  %s7 = inlined_call_operand.vmem [shape: bf16[1024,8], index: 7, kind: output, shape index: {0}]
  %s8 = inlined_call_operand.vmem [shape: bf16[1024,8], index: 8, kind: output, shape index: {1}]
  %9 = xla_tuple %s7, %s8
  %s10 = sld [smem:[#allocation0]]
  $region73: #{bottleneck_forward.3} parent=0
    _
  %s12 = ssub.s32 1, %s10
  %s13 = scalar_select 0, %s12, %s10
  $region1: #{bottleneck_forward.3} parent=0
    #allocation2 [shape = 'u8[524288]{0}', space=vmem, size = 0x80000, scoped, tag = 'input window, operand 0']
    #allocation3 [shape = 's32[2]{0}', space=sflag, size = 0x8, scoped, tag = 'scoped memory for bottleneck_forward.3']
    %14 = vsyncpa [#allocation3], 0
    %s15 = scalar_lea.sflag [#allocation3], 1
    %16 = vsyncpa %s15, 0
    loop: start=0, step=1, limit=4
    $region2: #{bottleneck_forward.3} parent=1 // loop_pre_header
      _
    $region3: #{bottleneck_forward.3} parent=1 // loop_header
      %s18 = sphi 0, %s22
      %p19 = scmp.ge.s32.totalorder %s18, 4
      %s28 = sphi 0, %s30
      %s31 = sphi 0, %s28
      %s32 = sphi 0, %s31
      %s48 = sphi 0, %s32
      %s52 = sphi 0, %s52
      %s54 = sphi 0, %s52
      %s55 = sphi 0, %s54
      %s69 = sphi 0, %s55
      %s73 = sphi 0, %s73
      %s75 = sphi 0, %s73
      %s76 = sphi 0, %s75
      %s90 = sphi 0, %s76
      %s94 = sphi 0, %s94
      %s96 = sphi 0, %s94
      %s97 = sphi 0, %s96
      %s111 = sphi 0, %s97
      %s115 = sphi 0, %s115
      %s117 = sphi 0, %s115
      %s118 = sphi 0, %s117
      %s132 = sphi 0, %s118
      %s136 = sphi 0, %s136
      %s138 = sphi 0, %s136
      %s139 = sphi 0, %s138
      %s153 = sphi 0, %s139
      %s157 = sphi 0, %s157
      %s159 = sphi 0, %s157
      %s160 = sphi 0, %s159
      %s174 = sphi 0, %s160
      %s180 = sphi 0, %s182
      %s183 = sphi 0, %s180
      %s184 = sphi 0, %s183
      %s200 = sphi 0, %s184
      %s206 = sphi 0, %s208
      %s209 = sphi 0, %s206
      %s210 = sphi 0, %s209
      %s226 = sphi 0, %s210
    $region4: #{bottleneck_forward.3} parent=1 // loop_header_branch
      %21 = sbr.rel (%p19) target = $region8
    $region5: #{bottleneck_forward.3} parent=1 // loop_body
      %s23 = ssub.s32 %s18, 1
      %s24 = ssub.s32 %s18, 2
      %s25 = sadd.s32 %s18, 1
      %s26 = ssub.s32 %s18, %s25
      %p27 = scmp.eq.s32.totalorder %s26, 0
      %s29 = sadd.s32 %s28, 1
      %s30 = scalar_select %p27, %s28, %s29
      %p33 = pneg %p27
      %p34 = scmp.eq.s32.totalorder %s18, 1
      %p35 = por %p33, %p34
      %p36 = scmp.ne.s32.totalorder %s28, %s31
      %p37 = scmp.eq.s32.totalorder %s18, 0
      %p38 = por %p36, %p37
      %p39 = scmp.ne.s32.totalorder %s28, %s31
      %p40 = scmp.eq.s32.totalorder %s23, 1
      %p41 = por %p39, %p40
      %p42 = scmp.ne.s32.totalorder %s31, %s32
      %p43 = scmp.eq.s32.totalorder %s23, 0
      %p44 = por %p42, %p43
      %p45 = scmp.ne.s32.totalorder %s31, %s32
      %p46 = scmp.eq.s32.totalorder %s24, 1
      %p47 = por %p45, %p46
      %p49 = scmp.ne.s32.totalorder %s32, %s48
      %p50 = scmp.eq.s32.totalorder %s24, 0
      %p51 = por %p49, %p50
      %s53 = sadd.s32 %s52, 1
      %p56 = scmp.eq.s32.totalorder %s18, 1
      %p57 = scmp.ne.s32.totalorder %s52, %s54
      %p58 = scmp.eq.s32.totalorder %s18, 0
      %p59 = por %p57, %p58
      %p60 = scmp.ne.s32.totalorder %s52, %s54
      %p61 = scmp.eq.s32.totalorder %s23, 1
      %p62 = por %p60, %p61
      %p63 = scmp.ne.s32.totalorder %s54, %s55
      %p64 = scmp.eq.s32.totalorder %s23, 0
      %p65 = por %p63, %p64
      %p66 = scmp.ne.s32.totalorder %s54, %s55
      %p67 = scmp.eq.s32.totalorder %s24, 1
      %p68 = por %p66, %p67
      %p70 = scmp.ne.s32.totalorder %s55, %s69
      %p71 = scmp.eq.s32.totalorder %s24, 0
      %p72 = por %p70, %p71
      %s74 = sadd.s32 %s73, 1
      %p77 = scmp.eq.s32.totalorder %s18, 1
      %p78 = scmp.ne.s32.totalorder %s73, %s75
      %p79 = scmp.eq.s32.totalorder %s18, 0
      %p80 = por %p78, %p79
      %p81 = scmp.ne.s32.totalorder %s73, %s75
      %p82 = scmp.eq.s32.totalorder %s23, 1
      %p83 = por %p81, %p82
      %p84 = scmp.ne.s32.totalorder %s75, %s76
      %p85 = scmp.eq.s32.totalorder %s23, 0
      %p86 = por %p84, %p85
      %p87 = scmp.ne.s32.totalorder %s75, %s76
      %p88 = scmp.eq.s32.totalorder %s24, 1
      %p89 = por %p87, %p88
      %p91 = scmp.ne.s32.totalorder %s76, %s90
      %p92 = scmp.eq.s32.totalorder %s24, 0
      %p93 = por %p91, %p92
      %s95 = sadd.s32 %s94, 1
      %p98 = scmp.eq.s32.totalorder %s18, 1
      %p99 = scmp.ne.s32.totalorder %s94, %s96
      %p100 = scmp.eq.s32.totalorder %s18, 0
      %p101 = por %p99, %p100
      %p102 = scmp.ne.s32.totalorder %s94, %s96
      %p103 = scmp.eq.s32.totalorder %s23, 1
      %p104 = por %p102, %p103
      %p105 = scmp.ne.s32.totalorder %s96, %s97
      %p106 = scmp.eq.s32.totalorder %s23, 0
      %p107 = por %p105, %p106
      %p108 = scmp.ne.s32.totalorder %s96, %s97
      %p109 = scmp.eq.s32.totalorder %s24, 1
      %p110 = por %p108, %p109
      %p112 = scmp.ne.s32.totalorder %s97, %s111
      %p113 = scmp.eq.s32.totalorder %s24, 0
      %p114 = por %p112, %p113
      %s116 = sadd.s32 %s115, 1
      %p119 = scmp.eq.s32.totalorder %s18, 1
      %p120 = scmp.ne.s32.totalorder %s115, %s117
      %p121 = scmp.eq.s32.totalorder %s18, 0
      %p122 = por %p120, %p121
      %p123 = scmp.ne.s32.totalorder %s115, %s117
      %p124 = scmp.eq.s32.totalorder %s23, 1
      %p125 = por %p123, %p124
      %p126 = scmp.ne.s32.totalorder %s117, %s118
      %p127 = scmp.eq.s32.totalorder %s23, 0
      %p128 = por %p126, %p127
      %p129 = scmp.ne.s32.totalorder %s117, %s118
      %p130 = scmp.eq.s32.totalorder %s24, 1
      %p131 = por %p129, %p130
      %p133 = scmp.ne.s32.totalorder %s118, %s132
      %p134 = scmp.eq.s32.totalorder %s24, 0
      %p135 = por %p133, %p134
      %s137 = sadd.s32 %s136, 1
      %p140 = scmp.eq.s32.totalorder %s18, 1
      %p141 = scmp.ne.s32.totalorder %s136, %s138
      %p142 = scmp.eq.s32.totalorder %s18, 0
      %p143 = por %p141, %p142
      %p144 = scmp.ne.s32.totalorder %s136, %s138
      %p145 = scmp.eq.s32.totalorder %s23, 1
      %p146 = por %p144, %p145
      %p147 = scmp.ne.s32.totalorder %s138, %s139
      %p148 = scmp.eq.s32.totalorder %s23, 0
      %p149 = por %p147, %p148
      %p150 = scmp.ne.s32.totalorder %s138, %s139
      %p151 = scmp.eq.s32.totalorder %s24, 1
      %p152 = por %p150, %p151
      %p154 = scmp.ne.s32.totalorder %s139, %s153
      %p155 = scmp.eq.s32.totalorder %s24, 0
      %p156 = por %p154, %p155
      %s158 = sadd.s32 %s157, 1
      %p161 = scmp.eq.s32.totalorder %s18, 1
      %p162 = scmp.ne.s32.totalorder %s157, %s159
      %p163 = scmp.eq.s32.totalorder %s18, 0
      %p164 = por %p162, %p163
      %p165 = scmp.ne.s32.totalorder %s157, %s159
      %p166 = scmp.eq.s32.totalorder %s23, 1
      %p167 = por %p165, %p166
      %p168 = scmp.ne.s32.totalorder %s159, %s160
      %p169 = scmp.eq.s32.totalorder %s23, 0
      %p170 = por %p168, %p169
      %p171 = scmp.ne.s32.totalorder %s159, %s160
      %p172 = scmp.eq.s32.totalorder %s24, 1
      %p173 = por %p171, %p172
      %p175 = scmp.ne.s32.totalorder %s160, %s174
      %p176 = scmp.eq.s32.totalorder %s24, 0
      %p177 = por %p175, %p176
      %s178 = ssub.s32 %s18, %s25
      %p179 = scmp.eq.s32.totalorder %s178, 0
      %s181 = sadd.s32 %s180, 1
      %s182 = scalar_select %p179, %s180, %s181
      %p185 = pneg %p179
      %p186 = scmp.eq.s32.totalorder %s18, 1
      %p187 = por %p185, %p186
      %p188 = scmp.ne.s32.totalorder %s180, %s183
      %p189 = scmp.eq.s32.totalorder %s18, 0
      %p190 = por %p188, %p189
      %p191 = scmp.ne.s32.totalorder %s180, %s183
      %p192 = scmp.eq.s32.totalorder %s23, 1
      %p193 = por %p191, %p192
      %p194 = scmp.ne.s32.totalorder %s183, %s184
      %p195 = scmp.eq.s32.totalorder %s23, 0
      %p196 = por %p194, %p195
      %p197 = scmp.ne.s32.totalorder %s183, %s184
      %p198 = scmp.eq.s32.totalorder %s24, 1
      %p199 = por %p197, %p198
      %p201 = scmp.ne.s32.totalorder %s184, %s200
      %p202 = scmp.eq.s32.totalorder %s24, 0
      %p203 = por %p201, %p202
      %s204 = ssub.s32 %s18, %s25
      %p205 = scmp.eq.s32.totalorder %s204, 0
      %s207 = sadd.s32 %s206, 1
      %s208 = scalar_select %p205, %s206, %s207
      %p211 = pneg %p205
      %p212 = scmp.eq.s32.totalorder %s18, 1
      %p213 = por %p211, %p212
      %p214 = scmp.ne.s32.totalorder %s206, %s209
      %p215 = scmp.eq.s32.totalorder %s18, 0
      %p216 = por %p214, %p215
      %p217 = scmp.ne.s32.totalorder %s206, %s209
      %p218 = scmp.eq.s32.totalorder %s23, 1
      %p219 = por %p217, %p218
      %p220 = scmp.ne.s32.totalorder %s209, %s210
      %p221 = scmp.eq.s32.totalorder %s23, 0
      %p222 = por %p220, %p221
      %p223 = scmp.ne.s32.totalorder %s209, %s210
      %p224 = scmp.eq.s32.totalorder %s24, 1
      %p225 = por %p223, %p224
      %p227 = scmp.ne.s32.totalorder %s210, %s226
      %p228 = scmp.eq.s32.totalorder %s24, 0
      %p229 = por %p227, %p228
      %p230 = scmp.le.s32.totalorder 1, %s18
      %p231 = scmp.lt.s32.totalorder %s18, 3
      %p232 = pnand %p230, %p231
      %p233 = pneg %p232
      // Predicated region
      $region9: #{bottleneck_forward.3} parent=5 // pred_check
        _
      $region10: #{bottleneck_forward.3} parent=5 // pred_check_branch
        %235 = sbr.rel (%p232) target = $region12
      $region11: #{bottleneck_forward.3} parent=5 // pred_region
        %s236 = ssub.s32 %s18, 1
        // Predicated region
        $region13: #{bottleneck_forward.3} parent=11 // pred_check
          %p237 = pneg %p65
        $region14: #{bottleneck_forward.3} parent=11 // pred_check_branch
          %239 = sbr.rel (%p237) target = $region16
        $region15: #{bottleneck_forward.3} parent=11 // pred_region
          _
        $region16: #{bottleneck_forward.3} parent=11 // pred_fallthru
          _
        // Predicated region
        $region17: #{bottleneck_forward.3} parent=11 // pred_check
          %p240 = pneg %p86
        $region18: #{bottleneck_forward.3} parent=11 // pred_check_branch
          %242 = sbr.rel (%p240) target = $region20
        $region19: #{bottleneck_forward.3} parent=11 // pred_region
          _
        $region20: #{bottleneck_forward.3} parent=11 // pred_fallthru
          _
        // Predicated region
        $region21: #{bottleneck_forward.3} parent=11 // pred_check
          %p243 = pneg %p107
        $region22: #{bottleneck_forward.3} parent=11 // pred_check_branch
          %245 = sbr.rel (%p243) target = $region24
        $region23: #{bottleneck_forward.3} parent=11 // pred_region
          _
        $region24: #{bottleneck_forward.3} parent=11 // pred_fallthru
          _
        // Predicated region
        $region25: #{bottleneck_forward.3} parent=11 // pred_check
          %p246 = pneg %p128
        $region26: #{bottleneck_forward.3} parent=11 // pred_check_branch
          %248 = sbr.rel (%p246) target = $region28
        $region27: #{bottleneck_forward.3} parent=11 // pred_region
          _
        $region28: #{bottleneck_forward.3} parent=11 // pred_fallthru
          _
        // Predicated region
        $region29: #{bottleneck_forward.3} parent=11 // pred_check
          %p249 = pneg %p149
        $region30: #{bottleneck_forward.3} parent=11 // pred_check_branch
          %251 = sbr.rel (%p249) target = $region32
        $region31: #{bottleneck_forward.3} parent=11 // pred_region
          _
        $region32: #{bottleneck_forward.3} parent=11 // pred_fallthru
          _
        // Predicated region
        $region33: #{bottleneck_forward.3} parent=11 // pred_check
          %p252 = pneg %p170
        $region34: #{bottleneck_forward.3} parent=11 // pred_check_branch
          %254 = sbr.rel (%p252) target = $region36
        $region35: #{bottleneck_forward.3} parent=11 // pred_region
          _
        $region36: #{bottleneck_forward.3} parent=11 // pred_fallthru
          _
      $region12: #{bottleneck_forward.3} parent=5 // pred_fallthru
        _
      %p255 = scmp.lt.s32.totalorder %s18, 2
      // Predicated region
      $region37: #{bottleneck_forward.3} parent=5 // pred_check
        %p256 = pneg %p255
      $region38: #{bottleneck_forward.3} parent=5 // pred_check_branch
        %258 = sbr.rel (%p256) target = $region40
      $region39: #{bottleneck_forward.3} parent=5 // pred_region
        // Predicated region
        $region41: #{bottleneck_forward.3} parent=39 // pred_check
          %p259 = pneg %p38
        $region42: #{bottleneck_forward.3} parent=39 // pred_check_branch
          %261 = sbr.rel (%p259) target = $region44
        $region43: #{bottleneck_forward.3} parent=39 // pred_region
          %s262 = sand.u32 %s28, 1
          %s263 = scalar_lea.sflag [#allocation3], %s262
          %s264 = sand.u32 %s28, 1
          %s265 = smul.addr %s264, 512
          %s266 = scalar_lea.vmem [#allocation2], %s265
          %s267 = smul.u32 64, %s18
          %s269 = ssub.s32 8192, 8192
          %270 = vsyncadd %s263, %s269
          %s271 = smul.addr %s267, 128
          %s272 = scalar_lea.hbm %s0, %s271
          %s273 = sshll.u32 %s266, 4
          %s274 = int_to_ptr.vmem [resolvable:$true] %s273
          %279 = dma.hbm_to_vmem [thread:$0]  %s272, 8192, %s274, %s263, 128, 128, 8
        $region44: #{bottleneck_forward.3} parent=39 // pred_fallthru
          _
      $region40: #{bottleneck_forward.3} parent=5 // pred_fallthru
        _
      %p280 = scmp.le.s32.totalorder 1, %s18
      %p281 = scmp.lt.s32.totalorder %s18, 3
      %p282 = pnand %p280, %p281
      %p283 = pneg %p282
      // Predicated region
      $region45: #{bottleneck_forward.3} parent=5 // pred_check
        _
      $region46: #{bottleneck_forward.3} parent=5 // pred_check_branch
        %285 = sbr.rel (%p282) target = $region48
      $region47: #{bottleneck_forward.3} parent=5 // pred_region
        %s286 = ssub.s32 %s18, 1
        %s287 = sand.u32 %s31, 1
        %s288 = scalar_lea.sflag [#allocation3], %s287
        %s289 = sand.u32 %s31, 1
        %s290 = smul.addr %s289, 512
        %s291 = scalar_lea.vmem [#allocation2], %s290
        // Predicated region
        $region49: #{bottleneck_forward.3} parent=47 // pred_check
          %p292 = pneg %p44
        $region50: #{bottleneck_forward.3} parent=47 // pred_check_branch
          %294 = sbr.rel (%p292) target = $region52
        $region51: #{bottleneck_forward.3} parent=47 // pred_region
          %295 = dma.done %s288, 8192
        $region52: #{bottleneck_forward.3} parent=47 // pred_fallthru
          _
        %s296 = sand.u32 %s31, 1
        %s297 = scalar_lea.sflag [#allocation3], %s296
        %s298 = sand.u32 %s31, 1
        %s299 = smul.addr %s298, 512
        %s300 = scalar_lea.vmem [#allocation2], %s299
        %p301 = pneg %p44
        %p302 = pneg %p41
        %p303 = pneg %p65
        %p304 = pneg %p62
        %p305 = pneg %p86
        %p306 = pneg %p83
        %p307 = pneg %p107
        %p308 = pneg %p104
        %p309 = pneg %p128
        %p310 = pneg %p125
        %p311 = pneg %p149
        %p312 = pneg %p146
        %p313 = pneg %p170
        %p314 = pneg %p167
        %p315 = pneg %p196
        %p316 = pneg %p193
        %s317 = smul.u32 64, %s23
        %p318 = scmp.lt.s32.totalorder %s317, 127
        %s319 = scalar_select %p318, %s317, 127
        %s320 = smul.addr %s319, 4
        %s321 = scalar_lea.vmem %s7, %s320
        %p322 = pneg %p222
        %p323 = pneg %p219
        %s324 = smul.u32 64, %s23
        %p325 = scmp.lt.s32.totalorder %s324, 127
        %s326 = scalar_select %p325, %s324, 127
        %s327 = smul.addr %s326, 4
        %s328 = scalar_lea.vmem %s8, %s327
        %s329 = smul.u32 64, %s23
        %s330 = smul.u32 64, %s23
        %p331 = scmp.lt.s32.totalorder %s330, 127
        %s332 = scalar_select %p331, %s330, 127
        %s333 = smul.addr %s332, 4
        %s334 = scalar_lea.vmem %s7, %s333
        %s335 = smul.u32 64, %s23
        %s336 = smul.u32 64, %s23
        %p337 = scmp.lt.s32.totalorder %s336, 127
        %s338 = scalar_select %p337, %s336, 127
        %s339 = smul.addr %s338, 4
        %s340 = scalar_lea.vmem %s8, %s339
        %s341 = smul.u32 64, %s23
        %v343 = vld [vmem:[%s291] sm:$0xff]
        %v344 = vld [vmem:[%s291 + $0x8] sm:$0xff]
        %v345 = vld [vmem:[%s291 + $0x10] sm:$0xff]
        %v346 = vld [vmem:[%s291 + $0x18] sm:$0xff]
        %v347 = vld [vmem:[%s291 + $0x20] sm:$0xff]
        %v348 = vld [vmem:[%s291 + $0x28] sm:$0xff]
        %v349 = vld [vmem:[%s291 + $0x30] sm:$0xff]
        %v350 = vld [vmem:[%s291 + $0x38] sm:$0xff]
        %v351 = vld [vmem:[%s291 + $0x40] sm:$0xff]
        %v352 = vld [vmem:[%s291 + $0x48] sm:$0xff]
        %v353 = vld [vmem:[%s291 + $0x50] sm:$0xff]
        %v354 = vld [vmem:[%s291 + $0x58] sm:$0xff]
        %v355 = vld [vmem:[%s291 + $0x60] sm:$0xff]
        %v356 = vld [vmem:[%s291 + $0x68] sm:$0xff]
        %v357 = vld [vmem:[%s291 + $0x70] sm:$0xff]
        %v358 = vld [vmem:[%s291 + $0x78] sm:$0xff]
        %v359 = vld [vmem:[%s291 + $0x80] sm:$0xff]
        %v360 = vld [vmem:[%s291 + $0x88] sm:$0xff]
        %v361 = vld [vmem:[%s291 + $0x90] sm:$0xff]
        %v362 = vld [vmem:[%s291 + $0x98] sm:$0xff]
        %v363 = vld [vmem:[%s291 + $0xa0] sm:$0xff]
        %v364 = vld [vmem:[%s291 + $0xa8] sm:$0xff]
        %v365 = vld [vmem:[%s291 + $0xb0] sm:$0xff]
        %v366 = vld [vmem:[%s291 + $0xb8] sm:$0xff]
        %v367 = vld [vmem:[%s291 + $0xc0] sm:$0xff]
        %v368 = vld [vmem:[%s291 + $0xc8] sm:$0xff]
        %v369 = vld [vmem:[%s291 + $0xd0] sm:$0xff]
        %v370 = vld [vmem:[%s291 + $0xd8] sm:$0xff]
        %v371 = vld [vmem:[%s291 + $0xe0] sm:$0xff]
        %v372 = vld [vmem:[%s291 + $0xe8] sm:$0xff]
        %v373 = vld [vmem:[%s291 + $0xf0] sm:$0xff]
        %v374 = vld [vmem:[%s291 + $0xf8] sm:$0xff]
        %v375 = vld [vmem:[%s291 + $0x100] sm:$0xff]
        %v376 = vld [vmem:[%s291 + $0x108] sm:$0xff]
        %v377 = vld [vmem:[%s291 + $0x110] sm:$0xff]
        %v378 = vld [vmem:[%s291 + $0x118] sm:$0xff]
        %v379 = vld [vmem:[%s291 + $0x120] sm:$0xff]
        %v380 = vld [vmem:[%s291 + $0x128] sm:$0xff]
        %v381 = vld [vmem:[%s291 + $0x130] sm:$0xff]
        %v382 = vld [vmem:[%s291 + $0x138] sm:$0xff]
        %v383 = vld [vmem:[%s291 + $0x140] sm:$0xff]
        %v384 = vld [vmem:[%s291 + $0x148] sm:$0xff]
        %v385 = vld [vmem:[%s291 + $0x150] sm:$0xff]
        %v386 = vld [vmem:[%s291 + $0x158] sm:$0xff]
        %v387 = vld [vmem:[%s291 + $0x160] sm:$0xff]
        %v388 = vld [vmem:[%s291 + $0x168] sm:$0xff]
        %v389 = vld [vmem:[%s291 + $0x170] sm:$0xff]
        %v390 = vld [vmem:[%s291 + $0x178] sm:$0xff]
        %v391 = vld [vmem:[%s291 + $0x180] sm:$0xff]
        %v392 = vld [vmem:[%s291 + $0x188] sm:$0xff]
        %v393 = vld [vmem:[%s291 + $0x190] sm:$0xff]
        %v394 = vld [vmem:[%s291 + $0x198] sm:$0xff]
        %v395 = vld [vmem:[%s291 + $0x1a0] sm:$0xff]
        %v396 = vld [vmem:[%s291 + $0x1a8] sm:$0xff]
        %v397 = vld [vmem:[%s291 + $0x1b0] sm:$0xff]
        %v398 = vld [vmem:[%s291 + $0x1b8] sm:$0xff]
        %v399 = vld [vmem:[%s291 + $0x1c0] sm:$0xff]
        %v400 = vld [vmem:[%s291 + $0x1c8] sm:$0xff]
        %v401 = vld [vmem:[%s291 + $0x1d0] sm:$0xff]
        %v402 = vld [vmem:[%s291 + $0x1d8] sm:$0xff]
        %v403 = vld [vmem:[%s291 + $0x1e0] sm:$0xff]
        %v404 = vld [vmem:[%s291 + $0x1e8] sm:$0xff]
        %v405 = vld [vmem:[%s291 + $0x1f0] sm:$0xff]
        %v406 = vld [vmem:[%s291 + $0x1f8] sm:$0xff]
        %v407 = vpack.c.bf16 %v344, %v343
        %v408 = vpack.c.bf16 %v346, %v345
        %v409 = vpack.c.bf16 %v348, %v347
        %v410 = vpack.c.bf16 %v350, %v349
        %v411 = vpack.c.bf16 %v352, %v351
        %v412 = vpack.c.bf16 %v354, %v353
        %v413 = vpack.c.bf16 %v356, %v355
        %v414 = vpack.c.bf16 %v358, %v357
        %v415 = vpack.c.bf16 %v360, %v359
        %v416 = vpack.c.bf16 %v362, %v361
        %v417 = vpack.c.bf16 %v364, %v363
        %v418 = vpack.c.bf16 %v366, %v365
        %v419 = vpack.c.bf16 %v368, %v367
        %v420 = vpack.c.bf16 %v370, %v369
        %v421 = vpack.c.bf16 %v372, %v371
        %v422 = vpack.c.bf16 %v374, %v373
        %v423 = vpack.c.bf16 %v376, %v375
        %v424 = vpack.c.bf16 %v378, %v377
        %v425 = vpack.c.bf16 %v380, %v379
        %v426 = vpack.c.bf16 %v382, %v381
        %v427 = vpack.c.bf16 %v384, %v383
        %v428 = vpack.c.bf16 %v386, %v385
        %v429 = vpack.c.bf16 %v388, %v387
        %v430 = vpack.c.bf16 %v390, %v389
        %v431 = vpack.c.bf16 %v392, %v391
        %v432 = vpack.c.bf16 %v394, %v393
        %v433 = vpack.c.bf16 %v396, %v395
        %v434 = vpack.c.bf16 %v398, %v397
        %v435 = vpack.c.bf16 %v400, %v399
        %v436 = vpack.c.bf16 %v402, %v401
        %v437 = vpack.c.bf16 %v404, %v403
        %v438 = vpack.c.bf16 %v406, %v405
        %v439 = vld [vmem:[%s1] sm:$0xf]
        %v440 = vld [vmem:[%s1 + $0x4] sm:$0xf]
        %v441 = vld [vmem:[%s1 + $0x8] sm:$0xf]
        %v442 = vld [vmem:[%s1 + $0xc] sm:$0xf]
        %v443 = vld [vmem:[%s1 + $0x10] sm:$0xf]
        %v444 = vld [vmem:[%s1 + $0x14] sm:$0xf]
        %v445 = vld [vmem:[%s1 + $0x18] sm:$0xf]
        %v446 = vld [vmem:[%s1 + $0x1c] sm:$0xf]
        %v455 = vunpack.c.l.b16 %v439
        %v456 = vunpack.c.l.b16 %v440
        %v457 = vunpack.c.l.b16 %v441
        %v458 = vunpack.c.l.b16 %v442
        %v459 = vunpack.c.l.b16 %v443
        %v460 = vunpack.c.l.b16 %v444
        %v461 = vunpack.c.l.b16 %v445
        %v462 = vunpack.c.l.b16 %v446
        %v463 = vpack.c.b16 %v456, %v455
        %v464 = vpack.c.b16 %v458, %v457
        %v465 = vpack.c.b16 %v460, %v459
        %v466 = vpack.c.b16 %v462, %v461
        %vm471 = vcmask 523264
        %v473 = vsel %vm471, %v407, 0
        %v476 = vsel %vm471, %v408, 0
        %v479 = vsel %vm471, %v409, 0
        %v482 = vsel %vm471, %v410, 0
        %v485 = vsel %vm471, %v411, 0
        %v488 = vsel %vm471, %v412, 0
        %v491 = vsel %vm471, %v413, 0
        %v494 = vsel %vm471, %v414, 0
        %v497 = vsel %vm471, %v415, 0
        %v500 = vsel %vm471, %v416, 0
        %v503 = vsel %vm471, %v417, 0
        %v506 = vsel %vm471, %v418, 0
        %v509 = vsel %vm471, %v419, 0
        %v512 = vsel %vm471, %v420, 0
        %v515 = vsel %vm471, %v421, 0
        %v518 = vsel %vm471, %v422, 0
        %v521 = vsel %vm471, %v423, 0
        %v524 = vsel %vm471, %v424, 0
        %v527 = vsel %vm471, %v425, 0
        %v530 = vsel %vm471, %v426, 0
        %v533 = vsel %vm471, %v427, 0
        %v536 = vsel %vm471, %v428, 0
        %v539 = vsel %vm471, %v429, 0
        %v542 = vsel %vm471, %v430, 0
        %v545 = vsel %vm471, %v431, 0
        %v548 = vsel %vm471, %v432, 0
        %v551 = vsel %vm471, %v433, 0
        %v554 = vsel %vm471, %v434, 0
        %v557 = vsel %vm471, %v435, 0
        %v560 = vsel %vm471, %v436, 0
        %v563 = vsel %vm471, %v437, 0
        %v566 = vsel %vm471, %v438, 0
        %568 = vmatprep.subr.bf16.mxu0 0
        %569 = vmatpush1.bf16.msra.mxu0 0
        %570 = vmatprep.subr.bf16.mxu0 0
        %571 = vmatpush1.bf16.msra.mxu0 0
        %572 = vmatprep.subr.bf16.mxu0 0
        %573 = vmatpush1.bf16.msra.mxu0 0
        %574 = vmatprep.subr.bf16.mxu0 0
        %575 = vmatpush1.bf16.msra.mxu0 0
        %576 = vmatprep.subr.bf16.mxu0 0
        %577 = vmatpush1.bf16.msra.mxu0 %v466
        %578 = vmatprep.subr.bf16.mxu0 0
        %579 = vmatpush1.bf16.msra.mxu0 %v465
        %580 = vmatprep.subr.bf16.mxu0 0
        %581 = vmatpush1.bf16.msra.mxu0 %v464
        %582 = vmatprep.subr.bf16.mxu0 0
        %583 = vmatpush1.bf16.msra.mxu0 %v463
        %584 = vmatprep.subr.bf16.mxu0 0
        %585 = vmatpush2.bf16.msra.mxu0 0
        %586 = vmatprep.subr.bf16.mxu0 0
        %587 = vmatpush2.bf16.msra.mxu0 0
        %588 = vmatprep.subr.bf16.mxu0 0
        %589 = vmatpush2.bf16.msra.mxu0 0
        %590 = vmatprep.subr.bf16.mxu0 0
        %591 = vmatpush2.bf16.msra.mxu0 0
        %592 = vmatprep.subr.bf16.mxu0 0
        %593 = vmatpush2.bf16.msra.mxu0 0
        %594 = vmatprep.subr.bf16.mxu0 0
        %595 = vmatpush2.bf16.msra.mxu0 0
        %596 = vmatprep.subr.bf16.mxu0 0
        %597 = vmatpush2.bf16.msra.mxu0 0
        %598 = vmatprep.subr.bf16.mxu0 0
        %599 = vmatpush2.bf16.msra.mxu0 0
        %600 = vmatprep.mubr.bf16.mxu0 0
        %601 = vmatmul.mubr.bf16.gmra.mxu0 %v473
        %v602 = vpop.f32.mrf.mxu0
        %v603 = vadd.f32 0.0, %v602
        %v604 = vpop.f32.mrf.mxu0
        %v605 = vpop.f32.mrf.mxu0
        %v606 = vadd.f32 0.0, %v605
        %v607 = vpop.f32.mrf.mxu0
        %608 = vmatprep.mubr.bf16.mxu0 0
        %609 = vmatmul.mubr.bf16.gmra.mxu0 %v476
        %v610 = vpop.f32.mrf.mxu0
        %v611 = vadd.f32 0.0, %v610
        %v612 = vpop.f32.mrf.mxu0
        %v613 = vpop.f32.mrf.mxu0
        %v614 = vadd.f32 0.0, %v613
        %v615 = vpop.f32.mrf.mxu0
        %616 = vmatprep.mubr.bf16.mxu0 0
        %617 = vmatmul.mubr.bf16.gmra.mxu0 %v479
        %v618 = vpop.f32.mrf.mxu0
        %v619 = vadd.f32 0.0, %v618
        %v620 = vpop.f32.mrf.mxu0
        %v621 = vpop.f32.mrf.mxu0
        %v622 = vadd.f32 0.0, %v621
        %v623 = vpop.f32.mrf.mxu0
        %624 = vmatprep.mubr.bf16.mxu0 0
        %625 = vmatmul.mubr.bf16.gmra.mxu0 %v482
        %v626 = vpop.f32.mrf.mxu0
        %v627 = vadd.f32 0.0, %v626
        %v628 = vpop.f32.mrf.mxu0
        %v629 = vpop.f32.mrf.mxu0
        %v630 = vadd.f32 0.0, %v629
        %v631 = vpop.f32.mrf.mxu0
        %632 = vmatprep.mubr.bf16.mxu0 0
        %633 = vmatmul.mubr.bf16.gmra.mxu0 %v485
        %v634 = vpop.f32.mrf.mxu0
        %v635 = vadd.f32 0.0, %v634
        %v636 = vpop.f32.mrf.mxu0
        %v637 = vpop.f32.mrf.mxu0
        %v638 = vadd.f32 0.0, %v637
        %v639 = vpop.f32.mrf.mxu0
        %640 = vmatprep.mubr.bf16.mxu0 0
        %641 = vmatmul.mubr.bf16.gmra.mxu0 %v488
        %v642 = vpop.f32.mrf.mxu0
        %v643 = vadd.f32 0.0, %v642
        %v644 = vpop.f32.mrf.mxu0
        %v645 = vpop.f32.mrf.mxu0
        %v646 = vadd.f32 0.0, %v645
        %v647 = vpop.f32.mrf.mxu0
        %648 = vmatprep.mubr.bf16.mxu0 0
        %649 = vmatmul.mubr.bf16.gmra.mxu0 %v491
        %v650 = vpop.f32.mrf.mxu0
        %v651 = vadd.f32 0.0, %v650
        %v652 = vpop.f32.mrf.mxu0
        %v653 = vpop.f32.mrf.mxu0
        %v654 = vadd.f32 0.0, %v653
        %v655 = vpop.f32.mrf.mxu0
        %656 = vmatprep.mubr.bf16.mxu0 0
        %657 = vmatmul.mubr.bf16.gmra.mxu0 %v494
        %v658 = vpop.f32.mrf.mxu0
        %v659 = vadd.f32 0.0, %v658
        %v660 = vpop.f32.mrf.mxu0
        %v661 = vpop.f32.mrf.mxu0
        %v662 = vadd.f32 0.0, %v661
        %v663 = vpop.f32.mrf.mxu0
        %664 = vmatprep.mubr.bf16.mxu0 0
        %665 = vmatmul.mubr.bf16.gmra.mxu0 %v497
        %v666 = vpop.f32.mrf.mxu0
        %v667 = vadd.f32 0.0, %v666
        %v668 = vpop.f32.mrf.mxu0
        %v669 = vpop.f32.mrf.mxu0
        %v670 = vadd.f32 0.0, %v669
        %v671 = vpop.f32.mrf.mxu0
        %672 = vmatprep.mubr.bf16.mxu0 0
        %673 = vmatmul.mubr.bf16.gmra.mxu0 %v500
        %v674 = vpop.f32.mrf.mxu0
        %v675 = vadd.f32 0.0, %v674
        %v676 = vpop.f32.mrf.mxu0
        %v677 = vpop.f32.mrf.mxu0
        %v678 = vadd.f32 0.0, %v677
        %v679 = vpop.f32.mrf.mxu0
        %680 = vmatprep.mubr.bf16.mxu0 0
        %681 = vmatmul.mubr.bf16.gmra.mxu0 %v503
        %v682 = vpop.f32.mrf.mxu0
        %v683 = vadd.f32 0.0, %v682
        %v684 = vpop.f32.mrf.mxu0
        %v685 = vpop.f32.mrf.mxu0
        %v686 = vadd.f32 0.0, %v685
        %v687 = vpop.f32.mrf.mxu0
        %688 = vmatprep.mubr.bf16.mxu0 0
        %689 = vmatmul.mubr.bf16.gmra.mxu0 %v506
        %v690 = vpop.f32.mrf.mxu0
        %v691 = vadd.f32 0.0, %v690
        %v692 = vpop.f32.mrf.mxu0
        %v693 = vpop.f32.mrf.mxu0
        %v694 = vadd.f32 0.0, %v693
        %v695 = vpop.f32.mrf.mxu0
        %696 = vmatprep.mubr.bf16.mxu0 0
        %697 = vmatmul.mubr.bf16.gmra.mxu0 %v509
        %v698 = vpop.f32.mrf.mxu0
        %v699 = vadd.f32 0.0, %v698
        %v700 = vpop.f32.mrf.mxu0
        %v701 = vpop.f32.mrf.mxu0
        %v702 = vadd.f32 0.0, %v701
        %v703 = vpop.f32.mrf.mxu0
        %704 = vmatprep.mubr.bf16.mxu0 0
        %705 = vmatmul.mubr.bf16.gmra.mxu0 %v512
        %v706 = vpop.f32.mrf.mxu0
        %v707 = vadd.f32 0.0, %v706
        %v708 = vpop.f32.mrf.mxu0
        %v709 = vpop.f32.mrf.mxu0
        %v710 = vadd.f32 0.0, %v709
        %v711 = vpop.f32.mrf.mxu0
        %712 = vmatprep.mubr.bf16.mxu0 0
        %713 = vmatmul.mubr.bf16.gmra.mxu0 %v515
        %v714 = vpop.f32.mrf.mxu0
        %v715 = vadd.f32 0.0, %v714
        %v716 = vpop.f32.mrf.mxu0
        %v717 = vpop.f32.mrf.mxu0
        %v718 = vadd.f32 0.0, %v717
        %v719 = vpop.f32.mrf.mxu0
        %720 = vmatprep.mubr.bf16.mxu0 0
        %721 = vmatmul.mubr.bf16.gmra.mxu0 %v518
        %v722 = vpop.f32.mrf.mxu0
        %v723 = vadd.f32 0.0, %v722
        %v724 = vpop.f32.mrf.mxu0
        %v725 = vpop.f32.mrf.mxu0
        %v726 = vadd.f32 0.0, %v725
        %v727 = vpop.f32.mrf.mxu0
        %728 = vmatprep.mubr.bf16.mxu0 0
        %729 = vmatmul.mubr.bf16.gmra.mxu0 %v521
        %v730 = vpop.f32.mrf.mxu0
        %v731 = vadd.f32 0.0, %v730
        %v732 = vpop.f32.mrf.mxu0
        %v733 = vpop.f32.mrf.mxu0
        %v734 = vadd.f32 0.0, %v733
        %v735 = vpop.f32.mrf.mxu0
        %736 = vmatprep.mubr.bf16.mxu0 0
        %737 = vmatmul.mubr.bf16.gmra.mxu0 %v524
        %v738 = vpop.f32.mrf.mxu0
        %v739 = vadd.f32 0.0, %v738
        %v740 = vpop.f32.mrf.mxu0
        %v741 = vpop.f32.mrf.mxu0
        %v742 = vadd.f32 0.0, %v741
        %v743 = vpop.f32.mrf.mxu0
        %744 = vmatprep.mubr.bf16.mxu0 0
        %745 = vmatmul.mubr.bf16.gmra.mxu0 %v527
        %v746 = vpop.f32.mrf.mxu0
        %v747 = vadd.f32 0.0, %v746
        %v748 = vpop.f32.mrf.mxu0
        %v749 = vpop.f32.mrf.mxu0
        %v750 = vadd.f32 0.0, %v749
        %v751 = vpop.f32.mrf.mxu0
        %752 = vmatprep.mubr.bf16.mxu0 0
        %753 = vmatmul.mubr.bf16.gmra.mxu0 %v530
        %v754 = vpop.f32.mrf.mxu0
        %v755 = vadd.f32 0.0, %v754
        %v756 = vpop.f32.mrf.mxu0
        %v757 = vpop.f32.mrf.mxu0
        %v758 = vadd.f32 0.0, %v757
        %v759 = vpop.f32.mrf.mxu0
        %760 = vmatprep.mubr.bf16.mxu0 0
        %761 = vmatmul.mubr.bf16.gmra.mxu0 %v533
        %v762 = vpop.f32.mrf.mxu0
        %v763 = vadd.f32 0.0, %v762
        %v764 = vpop.f32.mrf.mxu0
        %v765 = vpop.f32.mrf.mxu0
        %v766 = vadd.f32 0.0, %v765
        %v767 = vpop.f32.mrf.mxu0
        %768 = vmatprep.mubr.bf16.mxu0 0
        %769 = vmatmul.mubr.bf16.gmra.mxu0 %v536
        %v770 = vpop.f32.mrf.mxu0
        %v771 = vadd.f32 0.0, %v770
        %v772 = vpop.f32.mrf.mxu0
        %v773 = vpop.f32.mrf.mxu0
        %v774 = vadd.f32 0.0, %v773
        %v775 = vpop.f32.mrf.mxu0
        %776 = vmatprep.mubr.bf16.mxu0 0
        %777 = vmatmul.mubr.bf16.gmra.mxu0 %v539
        %v778 = vpop.f32.mrf.mxu0
        %v779 = vadd.f32 0.0, %v778
        %v780 = vpop.f32.mrf.mxu0
        %v781 = vpop.f32.mrf.mxu0
        %v782 = vadd.f32 0.0, %v781
        %v783 = vpop.f32.mrf.mxu0
        %784 = vmatprep.mubr.bf16.mxu0 0
        %785 = vmatmul.mubr.bf16.gmra.mxu0 %v542
        %v786 = vpop.f32.mrf.mxu0
        %v787 = vadd.f32 0.0, %v786
        %v788 = vpop.f32.mrf.mxu0
        %v789 = vpop.f32.mrf.mxu0
        %v790 = vadd.f32 0.0, %v789
        %v791 = vpop.f32.mrf.mxu0
        %792 = vmatprep.mubr.bf16.mxu0 0
        %793 = vmatmul.mubr.bf16.gmra.mxu0 %v545
        %v794 = vpop.f32.mrf.mxu0
        %v795 = vadd.f32 0.0, %v794
        %v796 = vpop.f32.mrf.mxu0
        %v797 = vpop.f32.mrf.mxu0
        %v798 = vadd.f32 0.0, %v797
        %v799 = vpop.f32.mrf.mxu0
        %800 = vmatprep.mubr.bf16.mxu0 0
        %801 = vmatmul.mubr.bf16.gmra.mxu0 %v548
        %v802 = vpop.f32.mrf.mxu0
        %v803 = vadd.f32 0.0, %v802
        %v804 = vpop.f32.mrf.mxu0
        %v805 = vpop.f32.mrf.mxu0
        %v806 = vadd.f32 0.0, %v805
        %v807 = vpop.f32.mrf.mxu0
        %808 = vmatprep.mubr.bf16.mxu0 0
        %809 = vmatmul.mubr.bf16.gmra.mxu0 %v551
        %v810 = vpop.f32.mrf.mxu0
        %v811 = vadd.f32 0.0, %v810
        %v812 = vpop.f32.mrf.mxu0
        %v813 = vpop.f32.mrf.mxu0
        %v814 = vadd.f32 0.0, %v813
        %v815 = vpop.f32.mrf.mxu0
        %816 = vmatprep.mubr.bf16.mxu0 0
        %817 = vmatmul.mubr.bf16.gmra.mxu0 %v554
        %v818 = vpop.f32.mrf.mxu0
        %v819 = vadd.f32 0.0, %v818
        %v820 = vpop.f32.mrf.mxu0
        %v821 = vpop.f32.mrf.mxu0
        %v822 = vadd.f32 0.0, %v821
        %v823 = vpop.f32.mrf.mxu0
        %824 = vmatprep.mubr.bf16.mxu0 0
        %825 = vmatmul.mubr.bf16.gmra.mxu0 %v557
        %v826 = vpop.f32.mrf.mxu0
        %v827 = vadd.f32 0.0, %v826
        %v828 = vpop.f32.mrf.mxu0
        %v829 = vpop.f32.mrf.mxu0
        %v830 = vadd.f32 0.0, %v829
        %v831 = vpop.f32.mrf.mxu0
        %832 = vmatprep.mubr.bf16.mxu0 0
        %833 = vmatmul.mubr.bf16.gmra.mxu0 %v560
        %v834 = vpop.f32.mrf.mxu0
        %v835 = vadd.f32 0.0, %v834
        %v836 = vpop.f32.mrf.mxu0
        %v837 = vpop.f32.mrf.mxu0
        %v838 = vadd.f32 0.0, %v837
        %v839 = vpop.f32.mrf.mxu0
        %840 = vmatprep.mubr.bf16.mxu0 0
        %841 = vmatmul.mubr.bf16.gmra.mxu0 %v563
        %v842 = vpop.f32.mrf.mxu0
        %v843 = vadd.f32 0.0, %v842
        %v844 = vpop.f32.mrf.mxu0
        %v845 = vpop.f32.mrf.mxu0
        %v846 = vadd.f32 0.0, %v845
        %v847 = vpop.f32.mrf.mxu0
        %848 = vmatprep.mubr.bf16.mxu0 0
        %849 = vmatmul.mubr.bf16.gmra.mxu0 %v566
        %v850 = vpop.f32.mrf.mxu0
        %v851 = vadd.f32 0.0, %v850
        %v852 = vpop.f32.mrf.mxu0
        %v853 = vpop.f32.mrf.mxu0
        %v854 = vadd.f32 0.0, %v853
        %v855 = vpop.f32.mrf.mxu0
        %856 = vdwg.mxu0
        %v857 = vld [vmem:[%s3] sm:$0x1]
        %v859 = vlaneseq
        %v860 = vshrl.u32 %v859, 7
        %v861 = vsub.s32 0, %v860
        %v862 = vrot.slane %v857, %v861
        %v864 = vmul.f32 %v603, %v862
        %v865 = vmul.f32 %v606, %v862
        %v866 = vmul.f32 %v611, %v862
        %v867 = vmul.f32 %v614, %v862
        %v868 = vmul.f32 %v619, %v862
        %v869 = vmul.f32 %v622, %v862
        %v870 = vmul.f32 %v627, %v862
        %v871 = vmul.f32 %v630, %v862
        %v872 = vmul.f32 %v635, %v862
        %v873 = vmul.f32 %v638, %v862
        %v874 = vmul.f32 %v643, %v862
        %v875 = vmul.f32 %v646, %v862
        %v876 = vmul.f32 %v651, %v862
        %v877 = vmul.f32 %v654, %v862
        %v878 = vmul.f32 %v659, %v862
        %v879 = vmul.f32 %v662, %v862
        %v880 = vmul.f32 %v667, %v862
        %v881 = vmul.f32 %v670, %v862
        %v882 = vmul.f32 %v675, %v862
        %v883 = vmul.f32 %v678, %v862
        %v884 = vmul.f32 %v683, %v862
        %v885 = vmul.f32 %v686, %v862
        %v886 = vmul.f32 %v691, %v862
        %v887 = vmul.f32 %v694, %v862
        %v888 = vmul.f32 %v699, %v862
        %v889 = vmul.f32 %v702, %v862
        %v890 = vmul.f32 %v707, %v862
        %v891 = vmul.f32 %v710, %v862
        %v892 = vmul.f32 %v715, %v862
        %v893 = vmul.f32 %v718, %v862
        %v894 = vmul.f32 %v723, %v862
        %v895 = vmul.f32 %v726, %v862
        %v896 = vmul.f32 %v731, %v862
        %v897 = vmul.f32 %v734, %v862
        %v898 = vmul.f32 %v739, %v862
        %v899 = vmul.f32 %v742, %v862
        %v900 = vmul.f32 %v747, %v862
        %v901 = vmul.f32 %v750, %v862
        %v902 = vmul.f32 %v755, %v862
        %v903 = vmul.f32 %v758, %v862
        %v904 = vmul.f32 %v763, %v862
        %v905 = vmul.f32 %v766, %v862
        %v906 = vmul.f32 %v771, %v862
        %v907 = vmul.f32 %v774, %v862
        %v908 = vmul.f32 %v779, %v862
        %v909 = vmul.f32 %v782, %v862
        %v910 = vmul.f32 %v787, %v862
        %v911 = vmul.f32 %v790, %v862
        %v912 = vmul.f32 %v795, %v862
        %v913 = vmul.f32 %v798, %v862
        %v914 = vmul.f32 %v803, %v862
        %v915 = vmul.f32 %v806, %v862
        %v916 = vmul.f32 %v811, %v862
        %v917 = vmul.f32 %v814, %v862
        %v918 = vmul.f32 %v819, %v862
        %v919 = vmul.f32 %v822, %v862
        %v920 = vmul.f32 %v827, %v862
        %v921 = vmul.f32 %v830, %v862
        %v922 = vmul.f32 %v835, %v862
        %v923 = vmul.f32 %v838, %v862
        %v924 = vmul.f32 %v843, %v862
        %v925 = vmul.f32 %v846, %v862
        %v926 = vmul.f32 %v851, %v862
        %v927 = vmul.f32 %v854, %v862
        %v928 = vld [vmem:[%s4] sm:$0x1]
        %v930 = vlaneseq
        %v931 = vshrl.u32 %v930, 7
        %v932 = vsub.s32 0, %v931
        %v933 = vrot.slane %v928, %v932
        %v935 = vadd.f32 %v864, %v933
        %v936 = vadd.f32 %v865, %v933
        %v937 = vadd.f32 %v866, %v933
        %v938 = vadd.f32 %v867, %v933
        %v939 = vadd.f32 %v868, %v933
        %v940 = vadd.f32 %v869, %v933
        %v941 = vadd.f32 %v870, %v933
        %v942 = vadd.f32 %v871, %v933
        %v943 = vadd.f32 %v872, %v933
        %v944 = vadd.f32 %v873, %v933
        %v945 = vadd.f32 %v874, %v933
        %v946 = vadd.f32 %v875, %v933
        %v947 = vadd.f32 %v876, %v933
        %v948 = vadd.f32 %v877, %v933
        %v949 = vadd.f32 %v878, %v933
        %v950 = vadd.f32 %v879, %v933
        %v951 = vadd.f32 %v880, %v933
        %v952 = vadd.f32 %v881, %v933
        %v953 = vadd.f32 %v882, %v933
        %v954 = vadd.f32 %v883, %v933
        %v955 = vadd.f32 %v884, %v933
        %v956 = vadd.f32 %v885, %v933
        %v957 = vadd.f32 %v886, %v933
        %v958 = vadd.f32 %v887, %v933
        %v959 = vadd.f32 %v888, %v933
        %v960 = vadd.f32 %v889, %v933
        %v961 = vadd.f32 %v890, %v933
        %v962 = vadd.f32 %v891, %v933
        %v963 = vadd.f32 %v892, %v933
        %v964 = vadd.f32 %v893, %v933
        %v965 = vadd.f32 %v894, %v933
        %v966 = vadd.f32 %v895, %v933
        %v967 = vadd.f32 %v896, %v933
        %v968 = vadd.f32 %v897, %v933
        %v969 = vadd.f32 %v898, %v933
        %v970 = vadd.f32 %v899, %v933
        %v971 = vadd.f32 %v900, %v933
        %v972 = vadd.f32 %v901, %v933
        %v973 = vadd.f32 %v902, %v933
        %v974 = vadd.f32 %v903, %v933
        %v975 = vadd.f32 %v904, %v933
        %v976 = vadd.f32 %v905, %v933
        %v977 = vadd.f32 %v906, %v933
        %v978 = vadd.f32 %v907, %v933
        %v979 = vadd.f32 %v908, %v933
        %v980 = vadd.f32 %v909, %v933
        %v981 = vadd.f32 %v910, %v933
        %v982 = vadd.f32 %v911, %v933
        %v983 = vadd.f32 %v912, %v933
        %v984 = vadd.f32 %v913, %v933
        %v985 = vadd.f32 %v914, %v933
        %v986 = vadd.f32 %v915, %v933
        %v987 = vadd.f32 %v916, %v933
        %v988 = vadd.f32 %v917, %v933
        %v989 = vadd.f32 %v918, %v933
        %v990 = vadd.f32 %v919, %v933
        %v991 = vadd.f32 %v920, %v933
        %v992 = vadd.f32 %v921, %v933
        %v993 = vadd.f32 %v922, %v933
        %v994 = vadd.f32 %v923, %v933
        %v995 = vadd.f32 %v924, %v933
        %v996 = vadd.f32 %v925, %v933
        %v997 = vadd.f32 %v926, %v933
        %v998 = vadd.f32 %v927, %v933
        %v999 = vmax.f32 %v935, 0.0
        %v1000 = vmax.f32 %v936, 0.0
        %v1001 = vmax.f32 %v937, 0.0
        %v1002 = vmax.f32 %v938, 0.0
        %v1003 = vmax.f32 %v939, 0.0
        %v1004 = vmax.f32 %v940, 0.0
        %v1005 = vmax.f32 %v941, 0.0
        %v1006 = vmax.f32 %v942, 0.0
        %v1007 = vmax.f32 %v943, 0.0
        %v1008 = vmax.f32 %v944, 0.0
        %v1009 = vmax.f32 %v945, 0.0
        %v1010 = vmax.f32 %v946, 0.0
        %v1011 = vmax.f32 %v947, 0.0
        %v1012 = vmax.f32 %v948, 0.0
        %v1013 = vmax.f32 %v949, 0.0
        %v1014 = vmax.f32 %v950, 0.0
        %v1015 = vmax.f32 %v951, 0.0
        %v1016 = vmax.f32 %v952, 0.0
        %v1017 = vmax.f32 %v953, 0.0
        %v1018 = vmax.f32 %v954, 0.0
        %v1019 = vmax.f32 %v955, 0.0
        %v1020 = vmax.f32 %v956, 0.0
        %v1021 = vmax.f32 %v957, 0.0
        %v1022 = vmax.f32 %v958, 0.0
        %v1023 = vmax.f32 %v959, 0.0
        %v1024 = vmax.f32 %v960, 0.0
        %v1025 = vmax.f32 %v961, 0.0
        %v1026 = vmax.f32 %v962, 0.0
        %v1027 = vmax.f32 %v963, 0.0
        %v1028 = vmax.f32 %v964, 0.0
        %v1029 = vmax.f32 %v965, 0.0
        %v1030 = vmax.f32 %v966, 0.0
        %v1031 = vmax.f32 %v967, 0.0
        %v1032 = vmax.f32 %v968, 0.0
        %v1033 = vmax.f32 %v969, 0.0
        %v1034 = vmax.f32 %v970, 0.0
        %v1035 = vmax.f32 %v971, 0.0
        %v1036 = vmax.f32 %v972, 0.0
        %v1037 = vmax.f32 %v973, 0.0
        %v1038 = vmax.f32 %v974, 0.0
        %v1039 = vmax.f32 %v975, 0.0
        %v1040 = vmax.f32 %v976, 0.0
        %v1041 = vmax.f32 %v977, 0.0
        %v1042 = vmax.f32 %v978, 0.0
        %v1043 = vmax.f32 %v979, 0.0
        %v1044 = vmax.f32 %v980, 0.0
        %v1045 = vmax.f32 %v981, 0.0
        %v1046 = vmax.f32 %v982, 0.0
        %v1047 = vmax.f32 %v983, 0.0
        %v1048 = vmax.f32 %v984, 0.0
        %v1049 = vmax.f32 %v985, 0.0
        %v1050 = vmax.f32 %v986, 0.0
        %v1051 = vmax.f32 %v987, 0.0
        %v1052 = vmax.f32 %v988, 0.0
        %v1053 = vmax.f32 %v989, 0.0
        %v1054 = vmax.f32 %v990, 0.0
        %v1055 = vmax.f32 %v991, 0.0
        %v1056 = vmax.f32 %v992, 0.0
        %v1057 = vmax.f32 %v993, 0.0
        %v1058 = vmax.f32 %v994, 0.0
        %v1059 = vmax.f32 %v995, 0.0
        %v1060 = vmax.f32 %v996, 0.0
        %v1061 = vmax.f32 %v997, 0.0
        %v1062 = vmax.f32 %v998, 0.0
        %v1063 = vpack.c.bf16 %v1000, %v999
        %v1064 = vpack.c.bf16 %v1002, %v1001
        %v1065 = vpack.c.bf16 %v1004, %v1003
        %v1066 = vpack.c.bf16 %v1006, %v1005
        %v1067 = vpack.c.bf16 %v1008, %v1007
        %v1068 = vpack.c.bf16 %v1010, %v1009
        %v1069 = vpack.c.bf16 %v1012, %v1011
        %v1070 = vpack.c.bf16 %v1014, %v1013
        %v1071 = vpack.c.bf16 %v1016, %v1015
        %v1072 = vpack.c.bf16 %v1018, %v1017
        %v1073 = vpack.c.bf16 %v1020, %v1019
        %v1074 = vpack.c.bf16 %v1022, %v1021
        %v1075 = vpack.c.bf16 %v1024, %v1023
        %v1076 = vpack.c.bf16 %v1026, %v1025
        %v1077 = vpack.c.bf16 %v1028, %v1027
        %v1078 = vpack.c.bf16 %v1030, %v1029
        %v1079 = vpack.c.bf16 %v1032, %v1031
        %v1080 = vpack.c.bf16 %v1034, %v1033
        %v1081 = vpack.c.bf16 %v1036, %v1035
        %v1082 = vpack.c.bf16 %v1038, %v1037
        %v1083 = vpack.c.bf16 %v1040, %v1039
        %v1084 = vpack.c.bf16 %v1042, %v1041
        %v1085 = vpack.c.bf16 %v1044, %v1043
        %v1086 = vpack.c.bf16 %v1046, %v1045
        %v1087 = vpack.c.bf16 %v1048, %v1047
        %v1088 = vpack.c.bf16 %v1050, %v1049
        %v1089 = vpack.c.bf16 %v1052, %v1051
        %v1090 = vpack.c.bf16 %v1054, %v1053
        %v1091 = vpack.c.bf16 %v1056, %v1055
        %v1092 = vpack.c.bf16 %v1058, %v1057
        %v1093 = vpack.c.bf16 %v1060, %v1059
        %v1094 = vpack.c.bf16 %v1062, %v1061
        %v1127 = vunpack.c.l.b16 %v1063
        %v1128 = vunpack.c.h.b16 %v1063
        %v1129 = vunpack.c.l.b16 %v1064
        %v1130 = vunpack.c.h.b16 %v1064
        %v1131 = vunpack.c.l.b16 %v1065
        %v1132 = vunpack.c.h.b16 %v1065
        %v1133 = vunpack.c.l.b16 %v1066
        %v1134 = vunpack.c.h.b16 %v1066
        %v1135 = vunpack.c.l.b16 %v1067
        %v1136 = vunpack.c.h.b16 %v1067
        %v1137 = vunpack.c.l.b16 %v1068
        %v1138 = vunpack.c.h.b16 %v1068
        %v1139 = vunpack.c.l.b16 %v1069
        %v1140 = vunpack.c.h.b16 %v1069
        %v1141 = vunpack.c.l.b16 %v1070
        %v1142 = vunpack.c.h.b16 %v1070
        %v1143 = vunpack.c.l.b16 %v1071
        %v1144 = vunpack.c.h.b16 %v1071
        %v1145 = vunpack.c.l.b16 %v1072
        %v1146 = vunpack.c.h.b16 %v1072
        %v1147 = vunpack.c.l.b16 %v1073
        %v1148 = vunpack.c.h.b16 %v1073
        %v1149 = vunpack.c.l.b16 %v1074
        %v1150 = vunpack.c.h.b16 %v1074
        %v1151 = vunpack.c.l.b16 %v1075
        %v1152 = vunpack.c.h.b16 %v1075
        %v1153 = vunpack.c.l.b16 %v1076
        %v1154 = vunpack.c.h.b16 %v1076
        %v1155 = vunpack.c.l.b16 %v1077
        %v1156 = vunpack.c.h.b16 %v1077
        %v1157 = vunpack.c.l.b16 %v1078
        %v1158 = vunpack.c.h.b16 %v1078
        %v1159 = vunpack.c.l.b16 %v1079
        %v1160 = vunpack.c.h.b16 %v1079
        %v1161 = vunpack.c.l.b16 %v1080
        %v1162 = vunpack.c.h.b16 %v1080
        %v1163 = vunpack.c.l.b16 %v1081
        %v1164 = vunpack.c.h.b16 %v1081
        %v1165 = vunpack.c.l.b16 %v1082
        %v1166 = vunpack.c.h.b16 %v1082
        %v1167 = vunpack.c.l.b16 %v1083
        %v1168 = vunpack.c.h.b16 %v1083
        %v1169 = vunpack.c.l.b16 %v1084
        %v1170 = vunpack.c.h.b16 %v1084
        %v1171 = vunpack.c.l.b16 %v1085
        %v1172 = vunpack.c.h.b16 %v1085
        %v1173 = vunpack.c.l.b16 %v1086
        %v1174 = vunpack.c.h.b16 %v1086
        %v1175 = vunpack.c.l.b16 %v1087
        %v1176 = vunpack.c.h.b16 %v1087
        %v1177 = vunpack.c.l.b16 %v1088
        %v1178 = vunpack.c.h.b16 %v1088
        %v1179 = vunpack.c.l.b16 %v1089
        %v1180 = vunpack.c.h.b16 %v1089
        %v1181 = vunpack.c.l.b16 %v1090
        %v1182 = vunpack.c.h.b16 %v1090
        %v1183 = vunpack.c.l.b16 %v1091
        %v1184 = vunpack.c.h.b16 %v1091
        %v1185 = vunpack.c.l.b16 %v1092
        %v1186 = vunpack.c.h.b16 %v1092
        %v1187 = vunpack.c.l.b16 %v1093
        %v1188 = vunpack.c.h.b16 %v1093
        %v1189 = vunpack.c.l.b16 %v1094
        %v1190 = vunpack.c.h.b16 %v1094
        %v1191 = vpack.c.b16 %v1127, %v1127
        %v1192 = vpack.c.b16 %v1128, %v1128
        %v1193 = vpack.c.b16 %v1129, %v1129
        %v1194 = vpack.c.b16 %v1130, %v1130
        %v1195 = vpack.c.b16 %v1131, %v1131
        %v1196 = vpack.c.b16 %v1132, %v1132
        %v1197 = vpack.c.b16 %v1133, %v1133
        %v1198 = vpack.c.b16 %v1134, %v1134
        %v1199 = vpack.c.b16 %v1135, %v1135
        %v1200 = vpack.c.b16 %v1136, %v1136
        %v1201 = vpack.c.b16 %v1137, %v1137
        %v1202 = vpack.c.b16 %v1138, %v1138
        %v1203 = vpack.c.b16 %v1139, %v1139
        %v1204 = vpack.c.b16 %v1140, %v1140
        %v1205 = vpack.c.b16 %v1141, %v1141
        %v1206 = vpack.c.b16 %v1142, %v1142
        %v1207 = vpack.c.b16 %v1143, %v1143
        %v1208 = vpack.c.b16 %v1144, %v1144
        %v1209 = vpack.c.b16 %v1145, %v1145
        %v1210 = vpack.c.b16 %v1146, %v1146
        %v1211 = vpack.c.b16 %v1147, %v1147
        %v1212 = vpack.c.b16 %v1148, %v1148
        %v1213 = vpack.c.b16 %v1149, %v1149
        %v1214 = vpack.c.b16 %v1150, %v1150
        %v1215 = vpack.c.b16 %v1151, %v1151
        %v1216 = vpack.c.b16 %v1152, %v1152
        %v1217 = vpack.c.b16 %v1153, %v1153
        %v1218 = vpack.c.b16 %v1154, %v1154
        %v1219 = vpack.c.b16 %v1155, %v1155
        %v1220 = vpack.c.b16 %v1156, %v1156
        %v1221 = vpack.c.b16 %v1157, %v1157
        %v1222 = vpack.c.b16 %v1158, %v1158
        %v1223 = vpack.c.b16 %v1159, %v1159
        %v1224 = vpack.c.b16 %v1160, %v1160
        %v1225 = vpack.c.b16 %v1161, %v1161
        %v1226 = vpack.c.b16 %v1162, %v1162
        %v1227 = vpack.c.b16 %v1163, %v1163
        %v1228 = vpack.c.b16 %v1164, %v1164
        %v1229 = vpack.c.b16 %v1165, %v1165
        %v1230 = vpack.c.b16 %v1166, %v1166
        %v1231 = vpack.c.b16 %v1167, %v1167
        %v1232 = vpack.c.b16 %v1168, %v1168
        %v1233 = vpack.c.b16 %v1169, %v1169
        %v1234 = vpack.c.b16 %v1170, %v1170
        %v1235 = vpack.c.b16 %v1171, %v1171
        %v1236 = vpack.c.b16 %v1172, %v1172
        %v1237 = vpack.c.b16 %v1173, %v1173
        %v1238 = vpack.c.b16 %v1174, %v1174
        %v1239 = vpack.c.b16 %v1175, %v1175
        %v1240 = vpack.c.b16 %v1176, %v1176
        %v1241 = vpack.c.b16 %v1177, %v1177
        %v1242 = vpack.c.b16 %v1178, %v1178
        %v1243 = vpack.c.b16 %v1179, %v1179
        %v1244 = vpack.c.b16 %v1180, %v1180
        %v1245 = vpack.c.b16 %v1181, %v1181
        %v1246 = vpack.c.b16 %v1182, %v1182
        %v1247 = vpack.c.b16 %v1183, %v1183
        %v1248 = vpack.c.b16 %v1184, %v1184
        %v1249 = vpack.c.b16 %v1185, %v1185
        %v1250 = vpack.c.b16 %v1186, %v1186
        %v1251 = vpack.c.b16 %v1187, %v1187
        %v1252 = vpack.c.b16 %v1188, %v1188
        %v1253 = vpack.c.b16 %v1189, %v1189
        %v1254 = vpack.c.b16 %v1190, %v1190
        %vm1319 = vcmask 60416
        %1320 = vst.msk [vmem:[%s334] sm:$0xf] %vm1319, %v1191
        %1321 = vst.msk [vmem:[%s334 + $0x4] sm:$0xf] %vm1319, %v1192
        %1322 = vst.msk [vmem:[%s334 + $0x8] sm:$0xf] %vm1319, %v1193
        %1323 = vst.msk [vmem:[%s334 + $0xc] sm:$0xf] %vm1319, %v1194
        %1324 = vst.msk [vmem:[%s334 + $0x10] sm:$0xf] %vm1319, %v1195
        %1325 = vst.msk [vmem:[%s334 + $0x14] sm:$0xf] %vm1319, %v1196
        %1326 = vst.msk [vmem:[%s334 + $0x18] sm:$0xf] %vm1319, %v1197
        %1327 = vst.msk [vmem:[%s334 + $0x1c] sm:$0xf] %vm1319, %v1198
        %1328 = vst.msk [vmem:[%s334 + $0x20] sm:$0xf] %vm1319, %v1199
        %1329 = vst.msk [vmem:[%s334 + $0x24] sm:$0xf] %vm1319, %v1200
        %1330 = vst.msk [vmem:[%s334 + $0x28] sm:$0xf] %vm1319, %v1201
        %1331 = vst.msk [vmem:[%s334 + $0x2c] sm:$0xf] %vm1319, %v1202
        %1332 = vst.msk [vmem:[%s334 + $0x30] sm:$0xf] %vm1319, %v1203
        %1333 = vst.msk [vmem:[%s334 + $0x34] sm:$0xf] %vm1319, %v1204
        %1334 = vst.msk [vmem:[%s334 + $0x38] sm:$0xf] %vm1319, %v1205
        %1335 = vst.msk [vmem:[%s334 + $0x3c] sm:$0xf] %vm1319, %v1206
        %1336 = vst.msk [vmem:[%s334 + $0x40] sm:$0xf] %vm1319, %v1207
        %1337 = vst.msk [vmem:[%s334 + $0x44] sm:$0xf] %vm1319, %v1208
        %1338 = vst.msk [vmem:[%s334 + $0x48] sm:$0xf] %vm1319, %v1209
        %1339 = vst.msk [vmem:[%s334 + $0x4c] sm:$0xf] %vm1319, %v1210
        %1340 = vst.msk [vmem:[%s334 + $0x50] sm:$0xf] %vm1319, %v1211
        %1341 = vst.msk [vmem:[%s334 + $0x54] sm:$0xf] %vm1319, %v1212
        %1342 = vst.msk [vmem:[%s334 + $0x58] sm:$0xf] %vm1319, %v1213
        %1343 = vst.msk [vmem:[%s334 + $0x5c] sm:$0xf] %vm1319, %v1214
        %1344 = vst.msk [vmem:[%s334 + $0x60] sm:$0xf] %vm1319, %v1215
        %1345 = vst.msk [vmem:[%s334 + $0x64] sm:$0xf] %vm1319, %v1216
        %1346 = vst.msk [vmem:[%s334 + $0x68] sm:$0xf] %vm1319, %v1217
        %1347 = vst.msk [vmem:[%s334 + $0x6c] sm:$0xf] %vm1319, %v1218
        %1348 = vst.msk [vmem:[%s334 + $0x70] sm:$0xf] %vm1319, %v1219
        %1349 = vst.msk [vmem:[%s334 + $0x74] sm:$0xf] %vm1319, %v1220
        %1350 = vst.msk [vmem:[%s334 + $0x78] sm:$0xf] %vm1319, %v1221
        %1351 = vst.msk [vmem:[%s334 + $0x7c] sm:$0xf] %vm1319, %v1222
        %1352 = vst.msk [vmem:[%s334 + $0x80] sm:$0xf] %vm1319, %v1223
        %1353 = vst.msk [vmem:[%s334 + $0x84] sm:$0xf] %vm1319, %v1224
        %1354 = vst.msk [vmem:[%s334 + $0x88] sm:$0xf] %vm1319, %v1225
        %1355 = vst.msk [vmem:[%s334 + $0x8c] sm:$0xf] %vm1319, %v1226
        %1356 = vst.msk [vmem:[%s334 + $0x90] sm:$0xf] %vm1319, %v1227
        %1357 = vst.msk [vmem:[%s334 + $0x94] sm:$0xf] %vm1319, %v1228
        %1358 = vst.msk [vmem:[%s334 + $0x98] sm:$0xf] %vm1319, %v1229
        %1359 = vst.msk [vmem:[%s334 + $0x9c] sm:$0xf] %vm1319, %v1230
        %1360 = vst.msk [vmem:[%s334 + $0xa0] sm:$0xf] %vm1319, %v1231
        %1361 = vst.msk [vmem:[%s334 + $0xa4] sm:$0xf] %vm1319, %v1232
        %1362 = vst.msk [vmem:[%s334 + $0xa8] sm:$0xf] %vm1319, %v1233
        %1363 = vst.msk [vmem:[%s334 + $0xac] sm:$0xf] %vm1319, %v1234
        %1364 = vst.msk [vmem:[%s334 + $0xb0] sm:$0xf] %vm1319, %v1235
        %1365 = vst.msk [vmem:[%s334 + $0xb4] sm:$0xf] %vm1319, %v1236
        %1366 = vst.msk [vmem:[%s334 + $0xb8] sm:$0xf] %vm1319, %v1237
        %1367 = vst.msk [vmem:[%s334 + $0xbc] sm:$0xf] %vm1319, %v1238
        %1368 = vst.msk [vmem:[%s334 + $0xc0] sm:$0xf] %vm1319, %v1239
        %1369 = vst.msk [vmem:[%s334 + $0xc4] sm:$0xf] %vm1319, %v1240
        %1370 = vst.msk [vmem:[%s334 + $0xc8] sm:$0xf] %vm1319, %v1241
        %1371 = vst.msk [vmem:[%s334 + $0xcc] sm:$0xf] %vm1319, %v1242
        %1372 = vst.msk [vmem:[%s334 + $0xd0] sm:$0xf] %vm1319, %v1243
        %1373 = vst.msk [vmem:[%s334 + $0xd4] sm:$0xf] %vm1319, %v1244
        %1374 = vst.msk [vmem:[%s334 + $0xd8] sm:$0xf] %vm1319, %v1245
        %1375 = vst.msk [vmem:[%s334 + $0xdc] sm:$0xf] %vm1319, %v1246
        %1376 = vst.msk [vmem:[%s334 + $0xe0] sm:$0xf] %vm1319, %v1247
        %1377 = vst.msk [vmem:[%s334 + $0xe4] sm:$0xf] %vm1319, %v1248
        %1378 = vst.msk [vmem:[%s334 + $0xe8] sm:$0xf] %vm1319, %v1249
        %1379 = vst.msk [vmem:[%s334 + $0xec] sm:$0xf] %vm1319, %v1250
        %1380 = vst.msk [vmem:[%s334 + $0xf0] sm:$0xf] %vm1319, %v1251
        %1381 = vst.msk [vmem:[%s334 + $0xf4] sm:$0xf] %vm1319, %v1252
        %1382 = vst.msk [vmem:[%s334 + $0xf8] sm:$0xf] %vm1319, %v1253
        %1383 = vst.msk [vmem:[%s334 + $0xfc] sm:$0xf] %vm1319, %v1254
        %v1384 = vld [vmem:[%s2] sm:$0xf]
        %v1385 = vld [vmem:[%s2 + $0x4] sm:$0xf]
        %v1386 = vld [vmem:[%s2 + $0x8] sm:$0xf]
        %v1387 = vld [vmem:[%s2 + $0xc] sm:$0xf]
        %v1388 = vld [vmem:[%s2 + $0x10] sm:$0xf]
        %v1389 = vld [vmem:[%s2 + $0x14] sm:$0xf]
        %v1390 = vld [vmem:[%s2 + $0x18] sm:$0xf]
        %v1391 = vld [vmem:[%s2 + $0x1c] sm:$0xf]
        %v1400 = vunpack.c.l.b16 %v1384
        %v1401 = vunpack.c.l.b16 %v1385
        %v1402 = vunpack.c.l.b16 %v1386
        %v1403 = vunpack.c.l.b16 %v1387
        %v1404 = vunpack.c.l.b16 %v1388
        %v1405 = vunpack.c.l.b16 %v1389
        %v1406 = vunpack.c.l.b16 %v1390
        %v1407 = vunpack.c.l.b16 %v1391
        %v1408 = vpack.c.b16 %v1401, %v1400
        %v1409 = vpack.c.b16 %v1403, %v1402
        %v1410 = vpack.c.b16 %v1405, %v1404
        %v1411 = vpack.c.b16 %v1407, %v1406
        %1416 = vmatprep.subr.bf16.mxu0 0
        %1417 = vmatpush1.bf16.msra.mxu0 0
        %1418 = vmatprep.subr.bf16.mxu0 0
        %1419 = vmatpush1.bf16.msra.mxu0 0
        %1420 = vmatprep.subr.bf16.mxu0 0
        %1421 = vmatpush1.bf16.msra.mxu0 0
        %1422 = vmatprep.subr.bf16.mxu0 0
        %1423 = vmatpush1.bf16.msra.mxu0 0
        %1424 = vmatprep.subr.bf16.mxu0 0
        %1425 = vmatpush1.bf16.msra.mxu0 %v1411
        %1426 = vmatprep.subr.bf16.mxu0 0
        %1427 = vmatpush1.bf16.msra.mxu0 %v1410
        %1428 = vmatprep.subr.bf16.mxu0 0
        %1429 = vmatpush1.bf16.msra.mxu0 %v1409
        %1430 = vmatprep.subr.bf16.mxu0 0
        %1431 = vmatpush1.bf16.msra.mxu0 %v1408
        %1432 = vmatprep.subr.bf16.mxu0 0
        %1433 = vmatpush2.bf16.msra.mxu0 0
        %1434 = vmatprep.subr.bf16.mxu0 0
        %1435 = vmatpush2.bf16.msra.mxu0 0
        %1436 = vmatprep.subr.bf16.mxu0 0
        %1437 = vmatpush2.bf16.msra.mxu0 0
        %1438 = vmatprep.subr.bf16.mxu0 0
        %1439 = vmatpush2.bf16.msra.mxu0 0
        %1440 = vmatprep.subr.bf16.mxu0 0
        %1441 = vmatpush2.bf16.msra.mxu0 0
        %1442 = vmatprep.subr.bf16.mxu0 0
        %1443 = vmatpush2.bf16.msra.mxu0 0
        %1444 = vmatprep.subr.bf16.mxu0 0
        %1445 = vmatpush2.bf16.msra.mxu0 0
        %1446 = vmatprep.subr.bf16.mxu0 0
        %1447 = vmatpush2.bf16.msra.mxu0 0
        %1448 = vmatprep.mubr.bf16.mxu0 0
        %1449 = vmatmul.mubr.bf16.gmra.mxu0 %v473
        %v1450 = vpop.f32.mrf.mxu0
        %v1451 = vadd.f32 0.0, %v1450
        %v1452 = vpop.f32.mrf.mxu0
        %v1453 = vpop.f32.mrf.mxu0
        %v1454 = vadd.f32 0.0, %v1453
        %v1455 = vpop.f32.mrf.mxu0
        %1456 = vmatprep.mubr.bf16.mxu0 0
        %1457 = vmatmul.mubr.bf16.gmra.mxu0 %v476
        %v1458 = vpop.f32.mrf.mxu0
        %v1459 = vadd.f32 0.0, %v1458
        %v1460 = vpop.f32.mrf.mxu0
        %v1461 = vpop.f32.mrf.mxu0
        %v1462 = vadd.f32 0.0, %v1461
        %v1463 = vpop.f32.mrf.mxu0
        %1464 = vmatprep.mubr.bf16.mxu0 0
        %1465 = vmatmul.mubr.bf16.gmra.mxu0 %v479
        %v1466 = vpop.f32.mrf.mxu0
        %v1467 = vadd.f32 0.0, %v1466
        %v1468 = vpop.f32.mrf.mxu0
        %v1469 = vpop.f32.mrf.mxu0
        %v1470 = vadd.f32 0.0, %v1469
        %v1471 = vpop.f32.mrf.mxu0
        %1472 = vmatprep.mubr.bf16.mxu0 0
        %1473 = vmatmul.mubr.bf16.gmra.mxu0 %v482
        %v1474 = vpop.f32.mrf.mxu0
        %v1475 = vadd.f32 0.0, %v1474
        %v1476 = vpop.f32.mrf.mxu0
        %v1477 = vpop.f32.mrf.mxu0
        %v1478 = vadd.f32 0.0, %v1477
        %v1479 = vpop.f32.mrf.mxu0
        %1480 = vmatprep.mubr.bf16.mxu0 0
        %1481 = vmatmul.mubr.bf16.gmra.mxu0 %v485
        %v1482 = vpop.f32.mrf.mxu0
        %v1483 = vadd.f32 0.0, %v1482
        %v1484 = vpop.f32.mrf.mxu0
        %v1485 = vpop.f32.mrf.mxu0
        %v1486 = vadd.f32 0.0, %v1485
        %v1487 = vpop.f32.mrf.mxu0
        %1488 = vmatprep.mubr.bf16.mxu0 0
        %1489 = vmatmul.mubr.bf16.gmra.mxu0 %v488
        %v1490 = vpop.f32.mrf.mxu0
        %v1491 = vadd.f32 0.0, %v1490
        %v1492 = vpop.f32.mrf.mxu0
        %v1493 = vpop.f32.mrf.mxu0
        %v1494 = vadd.f32 0.0, %v1493
        %v1495 = vpop.f32.mrf.mxu0
        %1496 = vmatprep.mubr.bf16.mxu0 0
        %1497 = vmatmul.mubr.bf16.gmra.mxu0 %v491
        %v1498 = vpop.f32.mrf.mxu0
        %v1499 = vadd.f32 0.0, %v1498
        %v1500 = vpop.f32.mrf.mxu0
        %v1501 = vpop.f32.mrf.mxu0
        %v1502 = vadd.f32 0.0, %v1501
        %v1503 = vpop.f32.mrf.mxu0
        %1504 = vmatprep.mubr.bf16.mxu0 0
        %1505 = vmatmul.mubr.bf16.gmra.mxu0 %v494
        %v1506 = vpop.f32.mrf.mxu0
        %v1507 = vadd.f32 0.0, %v1506
        %v1508 = vpop.f32.mrf.mxu0
        %v1509 = vpop.f32.mrf.mxu0
        %v1510 = vadd.f32 0.0, %v1509
        %v1511 = vpop.f32.mrf.mxu0
        %1512 = vmatprep.mubr.bf16.mxu0 0
        %1513 = vmatmul.mubr.bf16.gmra.mxu0 %v497
        %v1514 = vpop.f32.mrf.mxu0
        %v1515 = vadd.f32 0.0, %v1514
        %v1516 = vpop.f32.mrf.mxu0
        %v1517 = vpop.f32.mrf.mxu0
        %v1518 = vadd.f32 0.0, %v1517
        %v1519 = vpop.f32.mrf.mxu0
        %1520 = vmatprep.mubr.bf16.mxu0 0
        %1521 = vmatmul.mubr.bf16.gmra.mxu0 %v500
        %v1522 = vpop.f32.mrf.mxu0
        %v1523 = vadd.f32 0.0, %v1522
        %v1524 = vpop.f32.mrf.mxu0
        %v1525 = vpop.f32.mrf.mxu0
        %v1526 = vadd.f32 0.0, %v1525
        %v1527 = vpop.f32.mrf.mxu0
        %1528 = vmatprep.mubr.bf16.mxu0 0
        %1529 = vmatmul.mubr.bf16.gmra.mxu0 %v503
        %v1530 = vpop.f32.mrf.mxu0
        %v1531 = vadd.f32 0.0, %v1530
        %v1532 = vpop.f32.mrf.mxu0
        %v1533 = vpop.f32.mrf.mxu0
        %v1534 = vadd.f32 0.0, %v1533
        %v1535 = vpop.f32.mrf.mxu0
        %1536 = vmatprep.mubr.bf16.mxu0 0
        %1537 = vmatmul.mubr.bf16.gmra.mxu0 %v506
        %v1538 = vpop.f32.mrf.mxu0
        %v1539 = vadd.f32 0.0, %v1538
        %v1540 = vpop.f32.mrf.mxu0
        %v1541 = vpop.f32.mrf.mxu0
        %v1542 = vadd.f32 0.0, %v1541
        %v1543 = vpop.f32.mrf.mxu0
        %1544 = vmatprep.mubr.bf16.mxu0 0
        %1545 = vmatmul.mubr.bf16.gmra.mxu0 %v509
        %v1546 = vpop.f32.mrf.mxu0
        %v1547 = vadd.f32 0.0, %v1546
        %v1548 = vpop.f32.mrf.mxu0
        %v1549 = vpop.f32.mrf.mxu0
        %v1550 = vadd.f32 0.0, %v1549
        %v1551 = vpop.f32.mrf.mxu0
        %1552 = vmatprep.mubr.bf16.mxu0 0
        %1553 = vmatmul.mubr.bf16.gmra.mxu0 %v512
        %v1554 = vpop.f32.mrf.mxu0
        %v1555 = vadd.f32 0.0, %v1554
        %v1556 = vpop.f32.mrf.mxu0
        %v1557 = vpop.f32.mrf.mxu0
        %v1558 = vadd.f32 0.0, %v1557
        %v1559 = vpop.f32.mrf.mxu0
        %1560 = vmatprep.mubr.bf16.mxu0 0
        %1561 = vmatmul.mubr.bf16.gmra.mxu0 %v515
        %v1562 = vpop.f32.mrf.mxu0
        %v1563 = vadd.f32 0.0, %v1562
        %v1564 = vpop.f32.mrf.mxu0
        %v1565 = vpop.f32.mrf.mxu0
        %v1566 = vadd.f32 0.0, %v1565
        %v1567 = vpop.f32.mrf.mxu0
        %1568 = vmatprep.mubr.bf16.mxu0 0
        %1569 = vmatmul.mubr.bf16.gmra.mxu0 %v518
        %v1570 = vpop.f32.mrf.mxu0
        %v1571 = vadd.f32 0.0, %v1570
        %v1572 = vpop.f32.mrf.mxu0
        %v1573 = vpop.f32.mrf.mxu0
        %v1574 = vadd.f32 0.0, %v1573
        %v1575 = vpop.f32.mrf.mxu0
        %1576 = vmatprep.mubr.bf16.mxu0 0
        %1577 = vmatmul.mubr.bf16.gmra.mxu0 %v521
        %v1578 = vpop.f32.mrf.mxu0
        %v1579 = vadd.f32 0.0, %v1578
        %v1580 = vpop.f32.mrf.mxu0
        %v1581 = vpop.f32.mrf.mxu0
        %v1582 = vadd.f32 0.0, %v1581
        %v1583 = vpop.f32.mrf.mxu0
        %1584 = vmatprep.mubr.bf16.mxu0 0
        %1585 = vmatmul.mubr.bf16.gmra.mxu0 %v524
        %v1586 = vpop.f32.mrf.mxu0
        %v1587 = vadd.f32 0.0, %v1586
        %v1588 = vpop.f32.mrf.mxu0
        %v1589 = vpop.f32.mrf.mxu0
        %v1590 = vadd.f32 0.0, %v1589
        %v1591 = vpop.f32.mrf.mxu0
        %1592 = vmatprep.mubr.bf16.mxu0 0
        %1593 = vmatmul.mubr.bf16.gmra.mxu0 %v527
        %v1594 = vpop.f32.mrf.mxu0
        %v1595 = vadd.f32 0.0, %v1594
        %v1596 = vpop.f32.mrf.mxu0
        %v1597 = vpop.f32.mrf.mxu0
        %v1598 = vadd.f32 0.0, %v1597
        %v1599 = vpop.f32.mrf.mxu0
        %1600 = vmatprep.mubr.bf16.mxu0 0
        %1601 = vmatmul.mubr.bf16.gmra.mxu0 %v530
        %v1602 = vpop.f32.mrf.mxu0
        %v1603 = vadd.f32 0.0, %v1602
        %v1604 = vpop.f32.mrf.mxu0
        %v1605 = vpop.f32.mrf.mxu0
        %v1606 = vadd.f32 0.0, %v1605
        %v1607 = vpop.f32.mrf.mxu0
        %1608 = vmatprep.mubr.bf16.mxu0 0
        %1609 = vmatmul.mubr.bf16.gmra.mxu0 %v533
        %v1610 = vpop.f32.mrf.mxu0
        %v1611 = vadd.f32 0.0, %v1610
        %v1612 = vpop.f32.mrf.mxu0
        %v1613 = vpop.f32.mrf.mxu0
        %v1614 = vadd.f32 0.0, %v1613
        %v1615 = vpop.f32.mrf.mxu0
        %1616 = vmatprep.mubr.bf16.mxu0 0
        %1617 = vmatmul.mubr.bf16.gmra.mxu0 %v536
        %v1618 = vpop.f32.mrf.mxu0
        %v1619 = vadd.f32 0.0, %v1618
        %v1620 = vpop.f32.mrf.mxu0
        %v1621 = vpop.f32.mrf.mxu0
        %v1622 = vadd.f32 0.0, %v1621
        %v1623 = vpop.f32.mrf.mxu0
        %1624 = vmatprep.mubr.bf16.mxu0 0
        %1625 = vmatmul.mubr.bf16.gmra.mxu0 %v539
        %v1626 = vpop.f32.mrf.mxu0
        %v1627 = vadd.f32 0.0, %v1626
        %v1628 = vpop.f32.mrf.mxu0
        %v1629 = vpop.f32.mrf.mxu0
        %v1630 = vadd.f32 0.0, %v1629
        %v1631 = vpop.f32.mrf.mxu0
        %1632 = vmatprep.mubr.bf16.mxu0 0
        %1633 = vmatmul.mubr.bf16.gmra.mxu0 %v542
        %v1634 = vpop.f32.mrf.mxu0
        %v1635 = vadd.f32 0.0, %v1634
        %v1636 = vpop.f32.mrf.mxu0
        %v1637 = vpop.f32.mrf.mxu0
        %v1638 = vadd.f32 0.0, %v1637
        %v1639 = vpop.f32.mrf.mxu0
        %1640 = vmatprep.mubr.bf16.mxu0 0
        %1641 = vmatmul.mubr.bf16.gmra.mxu0 %v545
        %v1642 = vpop.f32.mrf.mxu0
        %v1643 = vadd.f32 0.0, %v1642
        %v1644 = vpop.f32.mrf.mxu0
        %v1645 = vpop.f32.mrf.mxu0
        %v1646 = vadd.f32 0.0, %v1645
        %v1647 = vpop.f32.mrf.mxu0
        %1648 = vmatprep.mubr.bf16.mxu0 0
        %1649 = vmatmul.mubr.bf16.gmra.mxu0 %v548
        %v1650 = vpop.f32.mrf.mxu0
        %v1651 = vadd.f32 0.0, %v1650
        %v1652 = vpop.f32.mrf.mxu0
        %v1653 = vpop.f32.mrf.mxu0
        %v1654 = vadd.f32 0.0, %v1653
        %v1655 = vpop.f32.mrf.mxu0
        %1656 = vmatprep.mubr.bf16.mxu0 0
        %1657 = vmatmul.mubr.bf16.gmra.mxu0 %v551
        %v1658 = vpop.f32.mrf.mxu0
        %v1659 = vadd.f32 0.0, %v1658
        %v1660 = vpop.f32.mrf.mxu0
        %v1661 = vpop.f32.mrf.mxu0
        %v1662 = vadd.f32 0.0, %v1661
        %v1663 = vpop.f32.mrf.mxu0
        %1664 = vmatprep.mubr.bf16.mxu0 0
        %1665 = vmatmul.mubr.bf16.gmra.mxu0 %v554
        %v1666 = vpop.f32.mrf.mxu0
        %v1667 = vadd.f32 0.0, %v1666
        %v1668 = vpop.f32.mrf.mxu0
        %v1669 = vpop.f32.mrf.mxu0
        %v1670 = vadd.f32 0.0, %v1669
        %v1671 = vpop.f32.mrf.mxu0
        %1672 = vmatprep.mubr.bf16.mxu0 0
        %1673 = vmatmul.mubr.bf16.gmra.mxu0 %v557
        %v1674 = vpop.f32.mrf.mxu0
        %v1675 = vadd.f32 0.0, %v1674
        %v1676 = vpop.f32.mrf.mxu0
        %v1677 = vpop.f32.mrf.mxu0
        %v1678 = vadd.f32 0.0, %v1677
        %v1679 = vpop.f32.mrf.mxu0
        %1680 = vmatprep.mubr.bf16.mxu0 0
        %1681 = vmatmul.mubr.bf16.gmra.mxu0 %v560
        %v1682 = vpop.f32.mrf.mxu0
        %v1683 = vadd.f32 0.0, %v1682
        %v1684 = vpop.f32.mrf.mxu0
        %v1685 = vpop.f32.mrf.mxu0
        %v1686 = vadd.f32 0.0, %v1685
        %v1687 = vpop.f32.mrf.mxu0
        %1688 = vmatprep.mubr.bf16.mxu0 0
        %1689 = vmatmul.mubr.bf16.gmra.mxu0 %v563
        %v1690 = vpop.f32.mrf.mxu0
        %v1691 = vadd.f32 0.0, %v1690
        %v1692 = vpop.f32.mrf.mxu0
        %v1693 = vpop.f32.mrf.mxu0
        %v1694 = vadd.f32 0.0, %v1693
        %v1695 = vpop.f32.mrf.mxu0
        %1696 = vmatprep.mubr.bf16.mxu0 0
        %1697 = vmatmul.mubr.bf16.gmra.mxu0 %v566
        %v1698 = vpop.f32.mrf.mxu0
        %v1699 = vadd.f32 0.0, %v1698
        %v1700 = vpop.f32.mrf.mxu0
        %v1701 = vpop.f32.mrf.mxu0
        %v1702 = vadd.f32 0.0, %v1701
        %v1703 = vpop.f32.mrf.mxu0
        %1704 = vdwg.mxu0
        %v1705 = vld [vmem:[%s5] sm:$0x1]
        %v1707 = vlaneseq
        %v1708 = vshrl.u32 %v1707, 7
        %v1709 = vsub.s32 0, %v1708
        %v1710 = vrot.slane %v1705, %v1709
        %v1712 = vmul.f32 %v1451, %v1710
        %v1713 = vmul.f32 %v1454, %v1710
        %v1714 = vmul.f32 %v1459, %v1710
        %v1715 = vmul.f32 %v1462, %v1710
        %v1716 = vmul.f32 %v1467, %v1710
        %v1717 = vmul.f32 %v1470, %v1710
        %v1718 = vmul.f32 %v1475, %v1710
        %v1719 = vmul.f32 %v1478, %v1710
        %v1720 = vmul.f32 %v1483, %v1710
        %v1721 = vmul.f32 %v1486, %v1710
        %v1722 = vmul.f32 %v1491, %v1710
        %v1723 = vmul.f32 %v1494, %v1710
        %v1724 = vmul.f32 %v1499, %v1710
        %v1725 = vmul.f32 %v1502, %v1710
        %v1726 = vmul.f32 %v1507, %v1710
        %v1727 = vmul.f32 %v1510, %v1710
        %v1728 = vmul.f32 %v1515, %v1710
        %v1729 = vmul.f32 %v1518, %v1710
        %v1730 = vmul.f32 %v1523, %v1710
        %v1731 = vmul.f32 %v1526, %v1710
        %v1732 = vmul.f32 %v1531, %v1710
        %v1733 = vmul.f32 %v1534, %v1710
        %v1734 = vmul.f32 %v1539, %v1710
        %v1735 = vmul.f32 %v1542, %v1710
        %v1736 = vmul.f32 %v1547, %v1710
        %v1737 = vmul.f32 %v1550, %v1710
        %v1738 = vmul.f32 %v1555, %v1710
        %v1739 = vmul.f32 %v1558, %v1710
        %v1740 = vmul.f32 %v1563, %v1710
        %v1741 = vmul.f32 %v1566, %v1710
        %v1742 = vmul.f32 %v1571, %v1710
        %v1743 = vmul.f32 %v1574, %v1710
        %v1744 = vmul.f32 %v1579, %v1710
        %v1745 = vmul.f32 %v1582, %v1710
        %v1746 = vmul.f32 %v1587, %v1710
        %v1747 = vmul.f32 %v1590, %v1710
        %v1748 = vmul.f32 %v1595, %v1710
        %v1749 = vmul.f32 %v1598, %v1710
        %v1750 = vmul.f32 %v1603, %v1710
        %v1751 = vmul.f32 %v1606, %v1710
        %v1752 = vmul.f32 %v1611, %v1710
        %v1753 = vmul.f32 %v1614, %v1710
        %v1754 = vmul.f32 %v1619, %v1710
        %v1755 = vmul.f32 %v1622, %v1710
        %v1756 = vmul.f32 %v1627, %v1710
        %v1757 = vmul.f32 %v1630, %v1710
        %v1758 = vmul.f32 %v1635, %v1710
        %v1759 = vmul.f32 %v1638, %v1710
        %v1760 = vmul.f32 %v1643, %v1710
        %v1761 = vmul.f32 %v1646, %v1710
        %v1762 = vmul.f32 %v1651, %v1710
        %v1763 = vmul.f32 %v1654, %v1710
        %v1764 = vmul.f32 %v1659, %v1710
        %v1765 = vmul.f32 %v1662, %v1710
        %v1766 = vmul.f32 %v1667, %v1710
        %v1767 = vmul.f32 %v1670, %v1710
        %v1768 = vmul.f32 %v1675, %v1710
        %v1769 = vmul.f32 %v1678, %v1710
        %v1770 = vmul.f32 %v1683, %v1710
        %v1771 = vmul.f32 %v1686, %v1710
        %v1772 = vmul.f32 %v1691, %v1710
        %v1773 = vmul.f32 %v1694, %v1710
        %v1774 = vmul.f32 %v1699, %v1710
        %v1775 = vmul.f32 %v1702, %v1710
        %v1776 = vld [vmem:[%s6] sm:$0x1]
        %v1778 = vlaneseq
        %v1779 = vshrl.u32 %v1778, 7
        %v1780 = vsub.s32 0, %v1779
        %v1781 = vrot.slane %v1776, %v1780
        %v1783 = vadd.f32 %v1712, %v1781
        %v1784 = vadd.f32 %v1713, %v1781
        %v1785 = vadd.f32 %v1714, %v1781
        %v1786 = vadd.f32 %v1715, %v1781
        %v1787 = vadd.f32 %v1716, %v1781
        %v1788 = vadd.f32 %v1717, %v1781
        %v1789 = vadd.f32 %v1718, %v1781
        %v1790 = vadd.f32 %v1719, %v1781
        %v1791 = vadd.f32 %v1720, %v1781
        %v1792 = vadd.f32 %v1721, %v1781
        %v1793 = vadd.f32 %v1722, %v1781
        %v1794 = vadd.f32 %v1723, %v1781
        %v1795 = vadd.f32 %v1724, %v1781
        %v1796 = vadd.f32 %v1725, %v1781
        %v1797 = vadd.f32 %v1726, %v1781
        %v1798 = vadd.f32 %v1727, %v1781
        %v1799 = vadd.f32 %v1728, %v1781
        %v1800 = vadd.f32 %v1729, %v1781
        %v1801 = vadd.f32 %v1730, %v1781
        %v1802 = vadd.f32 %v1731, %v1781
        %v1803 = vadd.f32 %v1732, %v1781
        %v1804 = vadd.f32 %v1733, %v1781
        %v1805 = vadd.f32 %v1734, %v1781
        %v1806 = vadd.f32 %v1735, %v1781
        %v1807 = vadd.f32 %v1736, %v1781
        %v1808 = vadd.f32 %v1737, %v1781
        %v1809 = vadd.f32 %v1738, %v1781
        %v1810 = vadd.f32 %v1739, %v1781
        %v1811 = vadd.f32 %v1740, %v1781
        %v1812 = vadd.f32 %v1741, %v1781
        %v1813 = vadd.f32 %v1742, %v1781
        %v1814 = vadd.f32 %v1743, %v1781
        %v1815 = vadd.f32 %v1744, %v1781
        %v1816 = vadd.f32 %v1745, %v1781
        %v1817 = vadd.f32 %v1746, %v1781
        %v1818 = vadd.f32 %v1747, %v1781
        %v1819 = vadd.f32 %v1748, %v1781
        %v1820 = vadd.f32 %v1749, %v1781
        %v1821 = vadd.f32 %v1750, %v1781
        %v1822 = vadd.f32 %v1751, %v1781
        %v1823 = vadd.f32 %v1752, %v1781
        %v1824 = vadd.f32 %v1753, %v1781
        %v1825 = vadd.f32 %v1754, %v1781
        %v1826 = vadd.f32 %v1755, %v1781
        %v1827 = vadd.f32 %v1756, %v1781
        %v1828 = vadd.f32 %v1757, %v1781
        %v1829 = vadd.f32 %v1758, %v1781
        %v1830 = vadd.f32 %v1759, %v1781
        %v1831 = vadd.f32 %v1760, %v1781
        %v1832 = vadd.f32 %v1761, %v1781
        %v1833 = vadd.f32 %v1762, %v1781
        %v1834 = vadd.f32 %v1763, %v1781
        %v1835 = vadd.f32 %v1764, %v1781
        %v1836 = vadd.f32 %v1765, %v1781
        %v1837 = vadd.f32 %v1766, %v1781
        %v1838 = vadd.f32 %v1767, %v1781
        %v1839 = vadd.f32 %v1768, %v1781
        %v1840 = vadd.f32 %v1769, %v1781
        %v1841 = vadd.f32 %v1770, %v1781
        %v1842 = vadd.f32 %v1771, %v1781
        %v1843 = vadd.f32 %v1772, %v1781
        %v1844 = vadd.f32 %v1773, %v1781
        %v1845 = vadd.f32 %v1774, %v1781
        %v1846 = vadd.f32 %v1775, %v1781
        %v1847 = vmax.f32 %v1783, 0.0
        %v1848 = vmax.f32 %v1784, 0.0
        %v1849 = vmax.f32 %v1785, 0.0
        %v1850 = vmax.f32 %v1786, 0.0
        %v1851 = vmax.f32 %v1787, 0.0
        %v1852 = vmax.f32 %v1788, 0.0
        %v1853 = vmax.f32 %v1789, 0.0
        %v1854 = vmax.f32 %v1790, 0.0
        %v1855 = vmax.f32 %v1791, 0.0
        %v1856 = vmax.f32 %v1792, 0.0
        %v1857 = vmax.f32 %v1793, 0.0
        %v1858 = vmax.f32 %v1794, 0.0
        %v1859 = vmax.f32 %v1795, 0.0
        %v1860 = vmax.f32 %v1796, 0.0
        %v1861 = vmax.f32 %v1797, 0.0
        %v1862 = vmax.f32 %v1798, 0.0
        %v1863 = vmax.f32 %v1799, 0.0
        %v1864 = vmax.f32 %v1800, 0.0
        %v1865 = vmax.f32 %v1801, 0.0
        %v1866 = vmax.f32 %v1802, 0.0
        %v1867 = vmax.f32 %v1803, 0.0
        %v1868 = vmax.f32 %v1804, 0.0
        %v1869 = vmax.f32 %v1805, 0.0
        %v1870 = vmax.f32 %v1806, 0.0
        %v1871 = vmax.f32 %v1807, 0.0
        %v1872 = vmax.f32 %v1808, 0.0
        %v1873 = vmax.f32 %v1809, 0.0
        %v1874 = vmax.f32 %v1810, 0.0
        %v1875 = vmax.f32 %v1811, 0.0
        %v1876 = vmax.f32 %v1812, 0.0
        %v1877 = vmax.f32 %v1813, 0.0
        %v1878 = vmax.f32 %v1814, 0.0
        %v1879 = vmax.f32 %v1815, 0.0
        %v1880 = vmax.f32 %v1816, 0.0
        %v1881 = vmax.f32 %v1817, 0.0
        %v1882 = vmax.f32 %v1818, 0.0
        %v1883 = vmax.f32 %v1819, 0.0
        %v1884 = vmax.f32 %v1820, 0.0
        %v1885 = vmax.f32 %v1821, 0.0
        %v1886 = vmax.f32 %v1822, 0.0
        %v1887 = vmax.f32 %v1823, 0.0
        %v1888 = vmax.f32 %v1824, 0.0
        %v1889 = vmax.f32 %v1825, 0.0
        %v1890 = vmax.f32 %v1826, 0.0
        %v1891 = vmax.f32 %v1827, 0.0
        %v1892 = vmax.f32 %v1828, 0.0
        %v1893 = vmax.f32 %v1829, 0.0
        %v1894 = vmax.f32 %v1830, 0.0
        %v1895 = vmax.f32 %v1831, 0.0
        %v1896 = vmax.f32 %v1832, 0.0
        %v1897 = vmax.f32 %v1833, 0.0
        %v1898 = vmax.f32 %v1834, 0.0
        %v1899 = vmax.f32 %v1835, 0.0
        %v1900 = vmax.f32 %v1836, 0.0
        %v1901 = vmax.f32 %v1837, 0.0
        %v1902 = vmax.f32 %v1838, 0.0
        %v1903 = vmax.f32 %v1839, 0.0
        %v1904 = vmax.f32 %v1840, 0.0
        %v1905 = vmax.f32 %v1841, 0.0
        %v1906 = vmax.f32 %v1842, 0.0
        %v1907 = vmax.f32 %v1843, 0.0
        %v1908 = vmax.f32 %v1844, 0.0
        %v1909 = vmax.f32 %v1845, 0.0
        %v1910 = vmax.f32 %v1846, 0.0
        %v1911 = vpack.c.bf16 %v1848, %v1847
        %v1912 = vpack.c.bf16 %v1850, %v1849
        %v1913 = vpack.c.bf16 %v1852, %v1851
        %v1914 = vpack.c.bf16 %v1854, %v1853
        %v1915 = vpack.c.bf16 %v1856, %v1855
        %v1916 = vpack.c.bf16 %v1858, %v1857
        %v1917 = vpack.c.bf16 %v1860, %v1859
        %v1918 = vpack.c.bf16 %v1862, %v1861
        %v1919 = vpack.c.bf16 %v1864, %v1863
        %v1920 = vpack.c.bf16 %v1866, %v1865
        %v1921 = vpack.c.bf16 %v1868, %v1867
        %v1922 = vpack.c.bf16 %v1870, %v1869
        %v1923 = vpack.c.bf16 %v1872, %v1871
        %v1924 = vpack.c.bf16 %v1874, %v1873
        %v1925 = vpack.c.bf16 %v1876, %v1875
        %v1926 = vpack.c.bf16 %v1878, %v1877
        %v1927 = vpack.c.bf16 %v1880, %v1879
        %v1928 = vpack.c.bf16 %v1882, %v1881
        %v1929 = vpack.c.bf16 %v1884, %v1883
        %v1930 = vpack.c.bf16 %v1886, %v1885
        %v1931 = vpack.c.bf16 %v1888, %v1887
        %v1932 = vpack.c.bf16 %v1890, %v1889
        %v1933 = vpack.c.bf16 %v1892, %v1891
        %v1934 = vpack.c.bf16 %v1894, %v1893
        %v1935 = vpack.c.bf16 %v1896, %v1895
        %v1936 = vpack.c.bf16 %v1898, %v1897
        %v1937 = vpack.c.bf16 %v1900, %v1899
        %v1938 = vpack.c.bf16 %v1902, %v1901
        %v1939 = vpack.c.bf16 %v1904, %v1903
        %v1940 = vpack.c.bf16 %v1906, %v1905
        %v1941 = vpack.c.bf16 %v1908, %v1907
        %v1942 = vpack.c.bf16 %v1910, %v1909
        %v1975 = vunpack.c.l.b16 %v1911
        %v1976 = vunpack.c.h.b16 %v1911
        %v1977 = vunpack.c.l.b16 %v1912
        %v1978 = vunpack.c.h.b16 %v1912
        %v1979 = vunpack.c.l.b16 %v1913
        %v1980 = vunpack.c.h.b16 %v1913
        %v1981 = vunpack.c.l.b16 %v1914
        %v1982 = vunpack.c.h.b16 %v1914
        %v1983 = vunpack.c.l.b16 %v1915
        %v1984 = vunpack.c.h.b16 %v1915
        %v1985 = vunpack.c.l.b16 %v1916
        %v1986 = vunpack.c.h.b16 %v1916
        %v1987 = vunpack.c.l.b16 %v1917
        %v1988 = vunpack.c.h.b16 %v1917
        %v1989 = vunpack.c.l.b16 %v1918
        %v1990 = vunpack.c.h.b16 %v1918
        %v1991 = vunpack.c.l.b16 %v1919
        %v1992 = vunpack.c.h.b16 %v1919
        %v1993 = vunpack.c.l.b16 %v1920
        %v1994 = vunpack.c.h.b16 %v1920
        %v1995 = vunpack.c.l.b16 %v1921
        %v1996 = vunpack.c.h.b16 %v1921
        %v1997 = vunpack.c.l.b16 %v1922
        %v1998 = vunpack.c.h.b16 %v1922
        %v1999 = vunpack.c.l.b16 %v1923
        %v2000 = vunpack.c.h.b16 %v1923
        %v2001 = vunpack.c.l.b16 %v1924
        %v2002 = vunpack.c.h.b16 %v1924
        %v2003 = vunpack.c.l.b16 %v1925
        %v2004 = vunpack.c.h.b16 %v1925
        %v2005 = vunpack.c.l.b16 %v1926
        %v2006 = vunpack.c.h.b16 %v1926
        %v2007 = vunpack.c.l.b16 %v1927
        %v2008 = vunpack.c.h.b16 %v1927
        %v2009 = vunpack.c.l.b16 %v1928
        %v2010 = vunpack.c.h.b16 %v1928
        %v2011 = vunpack.c.l.b16 %v1929
        %v2012 = vunpack.c.h.b16 %v1929
        %v2013 = vunpack.c.l.b16 %v1930
        %v2014 = vunpack.c.h.b16 %v1930
        %v2015 = vunpack.c.l.b16 %v1931
        %v2016 = vunpack.c.h.b16 %v1931
        %v2017 = vunpack.c.l.b16 %v1932
        %v2018 = vunpack.c.h.b16 %v1932
        %v2019 = vunpack.c.l.b16 %v1933
        %v2020 = vunpack.c.h.b16 %v1933
        %v2021 = vunpack.c.l.b16 %v1934
        %v2022 = vunpack.c.h.b16 %v1934
        %v2023 = vunpack.c.l.b16 %v1935
        %v2024 = vunpack.c.h.b16 %v1935
        %v2025 = vunpack.c.l.b16 %v1936
        %v2026 = vunpack.c.h.b16 %v1936
        %v2027 = vunpack.c.l.b16 %v1937
        %v2028 = vunpack.c.h.b16 %v1937
        %v2029 = vunpack.c.l.b16 %v1938
        %v2030 = vunpack.c.h.b16 %v1938
        %v2031 = vunpack.c.l.b16 %v1939
        %v2032 = vunpack.c.h.b16 %v1939
        %v2033 = vunpack.c.l.b16 %v1940
        %v2034 = vunpack.c.h.b16 %v1940
        %v2035 = vunpack.c.l.b16 %v1941
        %v2036 = vunpack.c.h.b16 %v1941
        %v2037 = vunpack.c.l.b16 %v1942
        %v2038 = vunpack.c.h.b16 %v1942
        %v2039 = vpack.c.b16 %v1975, %v1975
        %v2040 = vpack.c.b16 %v1976, %v1976
        %v2041 = vpack.c.b16 %v1977, %v1977
        %v2042 = vpack.c.b16 %v1978, %v1978
        %v2043 = vpack.c.b16 %v1979, %v1979
        %v2044 = vpack.c.b16 %v1980, %v1980
        %v2045 = vpack.c.b16 %v1981, %v1981
        %v2046 = vpack.c.b16 %v1982, %v1982
        %v2047 = vpack.c.b16 %v1983, %v1983
        %v2048 = vpack.c.b16 %v1984, %v1984
        %v2049 = vpack.c.b16 %v1985, %v1985
        %v2050 = vpack.c.b16 %v1986, %v1986
        %v2051 = vpack.c.b16 %v1987, %v1987
        %v2052 = vpack.c.b16 %v1988, %v1988
        %v2053 = vpack.c.b16 %v1989, %v1989
        %v2054 = vpack.c.b16 %v1990, %v1990
        %v2055 = vpack.c.b16 %v1991, %v1991
        %v2056 = vpack.c.b16 %v1992, %v1992
        %v2057 = vpack.c.b16 %v1993, %v1993
        %v2058 = vpack.c.b16 %v1994, %v1994
        %v2059 = vpack.c.b16 %v1995, %v1995
        %v2060 = vpack.c.b16 %v1996, %v1996
        %v2061 = vpack.c.b16 %v1997, %v1997
        %v2062 = vpack.c.b16 %v1998, %v1998
        %v2063 = vpack.c.b16 %v1999, %v1999
        %v2064 = vpack.c.b16 %v2000, %v2000
        %v2065 = vpack.c.b16 %v2001, %v2001
        %v2066 = vpack.c.b16 %v2002, %v2002
        %v2067 = vpack.c.b16 %v2003, %v2003
        %v2068 = vpack.c.b16 %v2004, %v2004
        %v2069 = vpack.c.b16 %v2005, %v2005
        %v2070 = vpack.c.b16 %v2006, %v2006
        %v2071 = vpack.c.b16 %v2007, %v2007
        %v2072 = vpack.c.b16 %v2008, %v2008
        %v2073 = vpack.c.b16 %v2009, %v2009
        %v2074 = vpack.c.b16 %v2010, %v2010
        %v2075 = vpack.c.b16 %v2011, %v2011
        %v2076 = vpack.c.b16 %v2012, %v2012
        %v2077 = vpack.c.b16 %v2013, %v2013
        %v2078 = vpack.c.b16 %v2014, %v2014
        %v2079 = vpack.c.b16 %v2015, %v2015
        %v2080 = vpack.c.b16 %v2016, %v2016
        %v2081 = vpack.c.b16 %v2017, %v2017
        %v2082 = vpack.c.b16 %v2018, %v2018
        %v2083 = vpack.c.b16 %v2019, %v2019
        %v2084 = vpack.c.b16 %v2020, %v2020
        %v2085 = vpack.c.b16 %v2021, %v2021
        %v2086 = vpack.c.b16 %v2022, %v2022
        %v2087 = vpack.c.b16 %v2023, %v2023
        %v2088 = vpack.c.b16 %v2024, %v2024
        %v2089 = vpack.c.b16 %v2025, %v2025
        %v2090 = vpack.c.b16 %v2026, %v2026
        %v2091 = vpack.c.b16 %v2027, %v2027
        %v2092 = vpack.c.b16 %v2028, %v2028
        %v2093 = vpack.c.b16 %v2029, %v2029
        %v2094 = vpack.c.b16 %v2030, %v2030
        %v2095 = vpack.c.b16 %v2031, %v2031
        %v2096 = vpack.c.b16 %v2032, %v2032
        %v2097 = vpack.c.b16 %v2033, %v2033
        %v2098 = vpack.c.b16 %v2034, %v2034
        %v2099 = vpack.c.b16 %v2035, %v2035
        %v2100 = vpack.c.b16 %v2036, %v2036
        %v2101 = vpack.c.b16 %v2037, %v2037
        %v2102 = vpack.c.b16 %v2038, %v2038
        %2167 = vst.msk [vmem:[%s340] sm:$0xf] %vm1319, %v2039
        %2168 = vst.msk [vmem:[%s340 + $0x4] sm:$0xf] %vm1319, %v2040
        %2169 = vst.msk [vmem:[%s340 + $0x8] sm:$0xf] %vm1319, %v2041
        %2170 = vst.msk [vmem:[%s340 + $0xc] sm:$0xf] %vm1319, %v2042
        %2171 = vst.msk [vmem:[%s340 + $0x10] sm:$0xf] %vm1319, %v2043
        %2172 = vst.msk [vmem:[%s340 + $0x14] sm:$0xf] %vm1319, %v2044
        %2173 = vst.msk [vmem:[%s340 + $0x18] sm:$0xf] %vm1319, %v2045
        %2174 = vst.msk [vmem:[%s340 + $0x1c] sm:$0xf] %vm1319, %v2046
        %2175 = vst.msk [vmem:[%s340 + $0x20] sm:$0xf] %vm1319, %v2047
        %2176 = vst.msk [vmem:[%s340 + $0x24] sm:$0xf] %vm1319, %v2048
        %2177 = vst.msk [vmem:[%s340 + $0x28] sm:$0xf] %vm1319, %v2049
        %2178 = vst.msk [vmem:[%s340 + $0x2c] sm:$0xf] %vm1319, %v2050
        %2179 = vst.msk [vmem:[%s340 + $0x30] sm:$0xf] %vm1319, %v2051
        %2180 = vst.msk [vmem:[%s340 + $0x34] sm:$0xf] %vm1319, %v2052
        %2181 = vst.msk [vmem:[%s340 + $0x38] sm:$0xf] %vm1319, %v2053
        %2182 = vst.msk [vmem:[%s340 + $0x3c] sm:$0xf] %vm1319, %v2054
        %2183 = vst.msk [vmem:[%s340 + $0x40] sm:$0xf] %vm1319, %v2055
        %2184 = vst.msk [vmem:[%s340 + $0x44] sm:$0xf] %vm1319, %v2056
        %2185 = vst.msk [vmem:[%s340 + $0x48] sm:$0xf] %vm1319, %v2057
        %2186 = vst.msk [vmem:[%s340 + $0x4c] sm:$0xf] %vm1319, %v2058
        %2187 = vst.msk [vmem:[%s340 + $0x50] sm:$0xf] %vm1319, %v2059
        %2188 = vst.msk [vmem:[%s340 + $0x54] sm:$0xf] %vm1319, %v2060
        %2189 = vst.msk [vmem:[%s340 + $0x58] sm:$0xf] %vm1319, %v2061
        %2190 = vst.msk [vmem:[%s340 + $0x5c] sm:$0xf] %vm1319, %v2062
        %2191 = vst.msk [vmem:[%s340 + $0x60] sm:$0xf] %vm1319, %v2063
        %2192 = vst.msk [vmem:[%s340 + $0x64] sm:$0xf] %vm1319, %v2064
        %2193 = vst.msk [vmem:[%s340 + $0x68] sm:$0xf] %vm1319, %v2065
        %2194 = vst.msk [vmem:[%s340 + $0x6c] sm:$0xf] %vm1319, %v2066
        %2195 = vst.msk [vmem:[%s340 + $0x70] sm:$0xf] %vm1319, %v2067
        %2196 = vst.msk [vmem:[%s340 + $0x74] sm:$0xf] %vm1319, %v2068
        %2197 = vst.msk [vmem:[%s340 + $0x78] sm:$0xf] %vm1319, %v2069
        %2198 = vst.msk [vmem:[%s340 + $0x7c] sm:$0xf] %vm1319, %v2070
        %2199 = vst.msk [vmem:[%s340 + $0x80] sm:$0xf] %vm1319, %v2071
        %2200 = vst.msk [vmem:[%s340 + $0x84] sm:$0xf] %vm1319, %v2072
        %2201 = vst.msk [vmem:[%s340 + $0x88] sm:$0xf] %vm1319, %v2073
        %2202 = vst.msk [vmem:[%s340 + $0x8c] sm:$0xf] %vm1319, %v2074
        %2203 = vst.msk [vmem:[%s340 + $0x90] sm:$0xf] %vm1319, %v2075
        %2204 = vst.msk [vmem:[%s340 + $0x94] sm:$0xf] %vm1319, %v2076
        %2205 = vst.msk [vmem:[%s340 + $0x98] sm:$0xf] %vm1319, %v2077
        %2206 = vst.msk [vmem:[%s340 + $0x9c] sm:$0xf] %vm1319, %v2078
        %2207 = vst.msk [vmem:[%s340 + $0xa0] sm:$0xf] %vm1319, %v2079
        %2208 = vst.msk [vmem:[%s340 + $0xa4] sm:$0xf] %vm1319, %v2080
        %2209 = vst.msk [vmem:[%s340 + $0xa8] sm:$0xf] %vm1319, %v2081
        %2210 = vst.msk [vmem:[%s340 + $0xac] sm:$0xf] %vm1319, %v2082
        %2211 = vst.msk [vmem:[%s340 + $0xb0] sm:$0xf] %vm1319, %v2083
        %2212 = vst.msk [vmem:[%s340 + $0xb4] sm:$0xf] %vm1319, %v2084
        %2213 = vst.msk [vmem:[%s340 + $0xb8] sm:$0xf] %vm1319, %v2085
        %2214 = vst.msk [vmem:[%s340 + $0xbc] sm:$0xf] %vm1319, %v2086
        %2215 = vst.msk [vmem:[%s340 + $0xc0] sm:$0xf] %vm1319, %v2087
        %2216 = vst.msk [vmem:[%s340 + $0xc4] sm:$0xf] %vm1319, %v2088
        %2217 = vst.msk [vmem:[%s340 + $0xc8] sm:$0xf] %vm1319, %v2089
        %2218 = vst.msk [vmem:[%s340 + $0xcc] sm:$0xf] %vm1319, %v2090
        %2219 = vst.msk [vmem:[%s340 + $0xd0] sm:$0xf] %vm1319, %v2091
        %2220 = vst.msk [vmem:[%s340 + $0xd4] sm:$0xf] %vm1319, %v2092
        %2221 = vst.msk [vmem:[%s340 + $0xd8] sm:$0xf] %vm1319, %v2093
        %2222 = vst.msk [vmem:[%s340 + $0xdc] sm:$0xf] %vm1319, %v2094
        %2223 = vst.msk [vmem:[%s340 + $0xe0] sm:$0xf] %vm1319, %v2095
        %2224 = vst.msk [vmem:[%s340 + $0xe4] sm:$0xf] %vm1319, %v2096
        %2225 = vst.msk [vmem:[%s340 + $0xe8] sm:$0xf] %vm1319, %v2097
        %2226 = vst.msk [vmem:[%s340 + $0xec] sm:$0xf] %vm1319, %v2098
        %2227 = vst.msk [vmem:[%s340 + $0xf0] sm:$0xf] %vm1319, %v2099
        %2228 = vst.msk [vmem:[%s340 + $0xf4] sm:$0xf] %vm1319, %v2100
        %2229 = vst.msk [vmem:[%s340 + $0xf8] sm:$0xf] %vm1319, %v2101
        %2230 = vst.msk [vmem:[%s340 + $0xfc] sm:$0xf] %vm1319, %v2102
        %s2231 = smul.u32 64, %s23
        %p2232 = scmp.lt.s32.totalorder %s2231, 127
        %s2233 = scalar_select %p2232, %s2231, 127
        %s2234 = smul.addr %s2233, 4
        %s2235 = scalar_lea.vmem %s7, %s2234
        %s2236 = smul.u32 64, %s23
        %p2237 = scmp.lt.s32.totalorder %s2236, 127
        %s2238 = scalar_select %p2237, %s2236, 127
        %s2239 = smul.addr %s2238, 4
        %s2240 = scalar_lea.vmem %s8, %s2239
        // Predicated region
        $region53: #{bottleneck_forward.3} parent=47 // pred_check
          %p2241 = pneg %p193
        $region54: #{bottleneck_forward.3} parent=47 // pred_check_branch
          %2243 = sbr.rel (%p2241) target = $region56
        $region55: #{bottleneck_forward.3} parent=47 // pred_region
          %s2244 = smul.u32 64, %s23
        $region56: #{bottleneck_forward.3} parent=47 // pred_fallthru
          _
        // Predicated region
        $region57: #{bottleneck_forward.3} parent=47 // pred_check
          %p2245 = pneg %p219
        $region58: #{bottleneck_forward.3} parent=47 // pred_check_branch
          %2247 = sbr.rel (%p2245) target = $region60
        $region59: #{bottleneck_forward.3} parent=47 // pred_region
          %s2248 = smul.u32 64, %s23
        $region60: #{bottleneck_forward.3} parent=47 // pred_fallthru
          _
      $region48: #{bottleneck_forward.3} parent=5 // pred_fallthru
        _
      %p2249 = scmp.le.s32.totalorder 2, %s18
      // Predicated region
      $region61: #{bottleneck_forward.3} parent=5 // pred_check
        %p2250 = pneg %p2249
      $region62: #{bottleneck_forward.3} parent=5 // pred_check_branch
        %2252 = sbr.rel (%p2250) target = $region64
      $region63: #{bottleneck_forward.3} parent=5 // pred_region
        %s2253 = ssub.s32 %s18, 2
        // Predicated region
        $region65: #{bottleneck_forward.3} parent=63 // pred_check
          %p2254 = pneg %p199
        $region66: #{bottleneck_forward.3} parent=63 // pred_check_branch
          %2256 = sbr.rel (%p2254) target = $region68
        $region67: #{bottleneck_forward.3} parent=63 // pred_region
          %s2257 = smul.u32 64, %s24
          %p2258 = scmp.lt.s32.totalorder %s2257, 127
          %s2259 = scalar_select %p2258, %s2257, 127
          %s2260 = smul.addr %s2259, 4
          %s2261 = scalar_lea.vmem %s7, %s2260
        $region68: #{bottleneck_forward.3} parent=63 // pred_fallthru
          _
        // Predicated region
        $region69: #{bottleneck_forward.3} parent=63 // pred_check
          %p2262 = pneg %p225
        $region70: #{bottleneck_forward.3} parent=63 // pred_check_branch
          %2264 = sbr.rel (%p2262) target = $region72
        $region71: #{bottleneck_forward.3} parent=63 // pred_region
          %s2265 = smul.u32 64, %s24
          %p2266 = scmp.lt.s32.totalorder %s2265, 127
          %s2267 = scalar_select %p2266, %s2265, 127
          %s2268 = smul.addr %s2267, 4
          %s2269 = scalar_lea.vmem %s8, %s2268
        $region72: #{bottleneck_forward.3} parent=63 // pred_fallthru
          _
      $region64: #{bottleneck_forward.3} parent=5 // pred_fallthru
        _
    $region6: #{bottleneck_forward.3} parent=1 // loop_footer
      %s22 = sadd.s32 1, %s18
    $region7: #{bottleneck_forward.3} parent=1 // loop_footer_branch
      %17 = sbr.rel target = $region3
    $region8: #{bottleneck_forward.3} parent=1 // loop_exit
      _
    %2270 = vsyncpa [#allocation3], 1
    %s2271 = scalar_lea.sflag [#allocation3], 1
    %2272 = vsyncpa %s2271, 1

// kernel: bottleneck_forward.4
$region0: #{bottleneck_forward.4}
  #allocation0 [shape = 'u32[]', space=smem, size = 0x4, offset = 0x4, fixed_abs, tag = 'smem constant byte address 0x4 - core index']
  #allocation1 [shape = 'u32[144,128]{1,0:T(1,128)}', space=vmem, size = 0x12000, scoped, tag = 'internal scratch']
  %s0 = inlined_call_operand.vmem [shape: bf16[4,18,18,8], index: 0, kind: input, shape index: {}]
  %s1 = inlined_call_operand.vmem [shape: bf16[4,256,8], index: 1, kind: input, shape index: {}]
  %s2 = inlined_call_operand.vmem [shape: bf16[72,16], index: 2, kind: input, shape index: {}]
  %s3 = inlined_call_operand.vmem [shape: bf16[8,16], index: 3, kind: input, shape index: {}]
  %s4 = inlined_call_operand.vmem [shape: f32[1,16], index: 4, kind: input, shape index: {}]
  %s5 = inlined_call_operand.vmem [shape: f32[1,16], index: 5, kind: input, shape index: {}]
  %s6 = inlined_call_operand.vmem [shape: f32[1,16], index: 6, kind: input, shape index: {}]
  %s7 = inlined_call_operand.vmem [shape: f32[1,16], index: 7, kind: input, shape index: {}]
  %s8 = inlined_call_operand.vmem [shape: f32[1,16], index: 8, kind: input, shape index: {}]
  %s9 = inlined_call_operand.vmem [shape: f32[1,16], index: 9, kind: input, shape index: {}]
  %s10 = inlined_call_operand.vmem [shape: bf16[4,256,16], index: 10, kind: output, shape index: {}]
  %s11 = sld [smem:[#allocation0]]
  $region73: #{bottleneck_forward.4} parent=0
    _
  %s13 = ssub.s32 1, %s11
  %s14 = scalar_select 0, %s13, %s11
  loop: start=0, step=1, limit=6
  $region2: #{bottleneck_forward.4} parent=0 // loop_pre_header
    _
  $region3: #{bottleneck_forward.4} parent=0 // loop_header
    %s16 = sphi 0, %s20
    %p17 = scmp.ge.s32.totalorder %s16, 6
    %s26 = sphi 0, %s28
    %s29 = sphi 0, %s26
    %s30 = sphi 0, %s29
    %s46 = sphi 0, %s30
    %s52 = sphi 0, %s54
    %s55 = sphi 0, %s52
    %s56 = sphi 0, %s55
    %s72 = sphi 0, %s56
    %s76 = sphi 0, %s76
    %s78 = sphi 0, %s76
    %s79 = sphi 0, %s78
    %s93 = sphi 0, %s79
    %s97 = sphi 0, %s97
    %s99 = sphi 0, %s97
    %s100 = sphi 0, %s99
    %s114 = sphi 0, %s100
    %s118 = sphi 0, %s118
    %s120 = sphi 0, %s118
    %s121 = sphi 0, %s120
    %s135 = sphi 0, %s121
    %s139 = sphi 0, %s139
    %s141 = sphi 0, %s139
    %s142 = sphi 0, %s141
    %s156 = sphi 0, %s142
    %s160 = sphi 0, %s160
    %s162 = sphi 0, %s160
    %s163 = sphi 0, %s162
    %s177 = sphi 0, %s163
    %s181 = sphi 0, %s181
    %s183 = sphi 0, %s181
    %s184 = sphi 0, %s183
    %s198 = sphi 0, %s184
    %s202 = sphi 0, %s202
    %s204 = sphi 0, %s202
    %s205 = sphi 0, %s204
    %s219 = sphi 0, %s205
    %s223 = sphi 0, %s223
    %s225 = sphi 0, %s223
    %s226 = sphi 0, %s225
    %s240 = sphi 0, %s226
    %s246 = sphi 0, %s248
    %s249 = sphi 0, %s246
    %s250 = sphi 0, %s249
    %s266 = sphi 0, %s250
  $region4: #{bottleneck_forward.4} parent=0 // loop_header_branch
    %19 = sbr.rel (%p17) target = $region8
  $region5: #{bottleneck_forward.4} parent=0 // loop_body
    %s21 = ssub.s32 %s16, 1
    %s22 = ssub.s32 %s16, 2
    %s23 = sadd.s32 %s16, 1
    %s24 = ssub.s32 %s16, %s23
    %p25 = scmp.eq.s32.totalorder %s24, 0
    %s27 = sadd.s32 %s26, 1
    %s28 = scalar_select %p25, %s26, %s27
    %p31 = pneg %p25
    %p32 = scmp.eq.s32.totalorder %s16, 3
    %p33 = por %p31, %p32
    %p34 = scmp.ne.s32.totalorder %s26, %s29
    %p35 = scmp.eq.s32.totalorder %s16, 0
    %p36 = por %p34, %p35
    %p37 = scmp.ne.s32.totalorder %s26, %s29
    %p38 = scmp.eq.s32.totalorder %s21, 3
    %p39 = por %p37, %p38
    %p40 = scmp.ne.s32.totalorder %s29, %s30
    %p41 = scmp.eq.s32.totalorder %s21, 0
    %p42 = por %p40, %p41
    %p43 = scmp.ne.s32.totalorder %s29, %s30
    %p44 = scmp.eq.s32.totalorder %s22, 3
    %p45 = por %p43, %p44
    %p47 = scmp.ne.s32.totalorder %s30, %s46
    %p48 = scmp.eq.s32.totalorder %s22, 0
    %p49 = por %p47, %p48
    %s50 = ssub.s32 %s16, %s23
    %p51 = scmp.eq.s32.totalorder %s50, 0
    %s53 = sadd.s32 %s52, 1
    %s54 = scalar_select %p51, %s52, %s53
    %p57 = pneg %p51
    %p58 = scmp.eq.s32.totalorder %s16, 3
    %p59 = por %p57, %p58
    %p60 = scmp.ne.s32.totalorder %s52, %s55
    %p61 = scmp.eq.s32.totalorder %s16, 0
    %p62 = por %p60, %p61
    %p63 = scmp.ne.s32.totalorder %s52, %s55
    %p64 = scmp.eq.s32.totalorder %s21, 3
    %p65 = por %p63, %p64
    %p66 = scmp.ne.s32.totalorder %s55, %s56
    %p67 = scmp.eq.s32.totalorder %s21, 0
    %p68 = por %p66, %p67
    %p69 = scmp.ne.s32.totalorder %s55, %s56
    %p70 = scmp.eq.s32.totalorder %s22, 3
    %p71 = por %p69, %p70
    %p73 = scmp.ne.s32.totalorder %s56, %s72
    %p74 = scmp.eq.s32.totalorder %s22, 0
    %p75 = por %p73, %p74
    %s77 = sadd.s32 %s76, 1
    %p80 = scmp.eq.s32.totalorder %s16, 3
    %p81 = scmp.ne.s32.totalorder %s76, %s78
    %p82 = scmp.eq.s32.totalorder %s16, 0
    %p83 = por %p81, %p82
    %p84 = scmp.ne.s32.totalorder %s76, %s78
    %p85 = scmp.eq.s32.totalorder %s21, 3
    %p86 = por %p84, %p85
    %p87 = scmp.ne.s32.totalorder %s78, %s79
    %p88 = scmp.eq.s32.totalorder %s21, 0
    %p89 = por %p87, %p88
    %p90 = scmp.ne.s32.totalorder %s78, %s79
    %p91 = scmp.eq.s32.totalorder %s22, 3
    %p92 = por %p90, %p91
    %p94 = scmp.ne.s32.totalorder %s79, %s93
    %p95 = scmp.eq.s32.totalorder %s22, 0
    %p96 = por %p94, %p95
    %s98 = sadd.s32 %s97, 1
    %p101 = scmp.eq.s32.totalorder %s16, 3
    %p102 = scmp.ne.s32.totalorder %s97, %s99
    %p103 = scmp.eq.s32.totalorder %s16, 0
    %p104 = por %p102, %p103
    %p105 = scmp.ne.s32.totalorder %s97, %s99
    %p106 = scmp.eq.s32.totalorder %s21, 3
    %p107 = por %p105, %p106
    %p108 = scmp.ne.s32.totalorder %s99, %s100
    %p109 = scmp.eq.s32.totalorder %s21, 0
    %p110 = por %p108, %p109
    %p111 = scmp.ne.s32.totalorder %s99, %s100
    %p112 = scmp.eq.s32.totalorder %s22, 3
    %p113 = por %p111, %p112
    %p115 = scmp.ne.s32.totalorder %s100, %s114
    %p116 = scmp.eq.s32.totalorder %s22, 0
    %p117 = por %p115, %p116
    %s119 = sadd.s32 %s118, 1
    %p122 = scmp.eq.s32.totalorder %s16, 3
    %p123 = scmp.ne.s32.totalorder %s118, %s120
    %p124 = scmp.eq.s32.totalorder %s16, 0
    %p125 = por %p123, %p124
    %p126 = scmp.ne.s32.totalorder %s118, %s120
    %p127 = scmp.eq.s32.totalorder %s21, 3
    %p128 = por %p126, %p127
    %p129 = scmp.ne.s32.totalorder %s120, %s121
    %p130 = scmp.eq.s32.totalorder %s21, 0
    %p131 = por %p129, %p130
    %p132 = scmp.ne.s32.totalorder %s120, %s121
    %p133 = scmp.eq.s32.totalorder %s22, 3
    %p134 = por %p132, %p133
    %p136 = scmp.ne.s32.totalorder %s121, %s135
    %p137 = scmp.eq.s32.totalorder %s22, 0
    %p138 = por %p136, %p137
    %s140 = sadd.s32 %s139, 1
    %p143 = scmp.eq.s32.totalorder %s16, 3
    %p144 = scmp.ne.s32.totalorder %s139, %s141
    %p145 = scmp.eq.s32.totalorder %s16, 0
    %p146 = por %p144, %p145
    %p147 = scmp.ne.s32.totalorder %s139, %s141
    %p148 = scmp.eq.s32.totalorder %s21, 3
    %p149 = por %p147, %p148
    %p150 = scmp.ne.s32.totalorder %s141, %s142
    %p151 = scmp.eq.s32.totalorder %s21, 0
    %p152 = por %p150, %p151
    %p153 = scmp.ne.s32.totalorder %s141, %s142
    %p154 = scmp.eq.s32.totalorder %s22, 3
    %p155 = por %p153, %p154
    %p157 = scmp.ne.s32.totalorder %s142, %s156
    %p158 = scmp.eq.s32.totalorder %s22, 0
    %p159 = por %p157, %p158
    %s161 = sadd.s32 %s160, 1
    %p164 = scmp.eq.s32.totalorder %s16, 3
    %p165 = scmp.ne.s32.totalorder %s160, %s162
    %p166 = scmp.eq.s32.totalorder %s16, 0
    %p167 = por %p165, %p166
    %p168 = scmp.ne.s32.totalorder %s160, %s162
    %p169 = scmp.eq.s32.totalorder %s21, 3
    %p170 = por %p168, %p169
    %p171 = scmp.ne.s32.totalorder %s162, %s163
    %p172 = scmp.eq.s32.totalorder %s21, 0
    %p173 = por %p171, %p172
    %p174 = scmp.ne.s32.totalorder %s162, %s163
    %p175 = scmp.eq.s32.totalorder %s22, 3
    %p176 = por %p174, %p175
    %p178 = scmp.ne.s32.totalorder %s163, %s177
    %p179 = scmp.eq.s32.totalorder %s22, 0
    %p180 = por %p178, %p179
    %s182 = sadd.s32 %s181, 1
    %p185 = scmp.eq.s32.totalorder %s16, 3
    %p186 = scmp.ne.s32.totalorder %s181, %s183
    %p187 = scmp.eq.s32.totalorder %s16, 0
    %p188 = por %p186, %p187
    %p189 = scmp.ne.s32.totalorder %s181, %s183
    %p190 = scmp.eq.s32.totalorder %s21, 3
    %p191 = por %p189, %p190
    %p192 = scmp.ne.s32.totalorder %s183, %s184
    %p193 = scmp.eq.s32.totalorder %s21, 0
    %p194 = por %p192, %p193
    %p195 = scmp.ne.s32.totalorder %s183, %s184
    %p196 = scmp.eq.s32.totalorder %s22, 3
    %p197 = por %p195, %p196
    %p199 = scmp.ne.s32.totalorder %s184, %s198
    %p200 = scmp.eq.s32.totalorder %s22, 0
    %p201 = por %p199, %p200
    %s203 = sadd.s32 %s202, 1
    %p206 = scmp.eq.s32.totalorder %s16, 3
    %p207 = scmp.ne.s32.totalorder %s202, %s204
    %p208 = scmp.eq.s32.totalorder %s16, 0
    %p209 = por %p207, %p208
    %p210 = scmp.ne.s32.totalorder %s202, %s204
    %p211 = scmp.eq.s32.totalorder %s21, 3
    %p212 = por %p210, %p211
    %p213 = scmp.ne.s32.totalorder %s204, %s205
    %p214 = scmp.eq.s32.totalorder %s21, 0
    %p215 = por %p213, %p214
    %p216 = scmp.ne.s32.totalorder %s204, %s205
    %p217 = scmp.eq.s32.totalorder %s22, 3
    %p218 = por %p216, %p217
    %p220 = scmp.ne.s32.totalorder %s205, %s219
    %p221 = scmp.eq.s32.totalorder %s22, 0
    %p222 = por %p220, %p221
    %s224 = sadd.s32 %s223, 1
    %p227 = scmp.eq.s32.totalorder %s16, 3
    %p228 = scmp.ne.s32.totalorder %s223, %s225
    %p229 = scmp.eq.s32.totalorder %s16, 0
    %p230 = por %p228, %p229
    %p231 = scmp.ne.s32.totalorder %s223, %s225
    %p232 = scmp.eq.s32.totalorder %s21, 3
    %p233 = por %p231, %p232
    %p234 = scmp.ne.s32.totalorder %s225, %s226
    %p235 = scmp.eq.s32.totalorder %s21, 0
    %p236 = por %p234, %p235
    %p237 = scmp.ne.s32.totalorder %s225, %s226
    %p238 = scmp.eq.s32.totalorder %s22, 3
    %p239 = por %p237, %p238
    %p241 = scmp.ne.s32.totalorder %s226, %s240
    %p242 = scmp.eq.s32.totalorder %s22, 0
    %p243 = por %p241, %p242
    %s244 = ssub.s32 %s16, %s23
    %p245 = scmp.eq.s32.totalorder %s244, 0
    %s247 = sadd.s32 %s246, 1
    %s248 = scalar_select %p245, %s246, %s247
    %p251 = pneg %p245
    %p252 = scmp.eq.s32.totalorder %s16, 3
    %p253 = por %p251, %p252
    %p254 = scmp.ne.s32.totalorder %s246, %s249
    %p255 = scmp.eq.s32.totalorder %s16, 0
    %p256 = por %p254, %p255
    %p257 = scmp.ne.s32.totalorder %s246, %s249
    %p258 = scmp.eq.s32.totalorder %s21, 3
    %p259 = por %p257, %p258
    %p260 = scmp.ne.s32.totalorder %s249, %s250
    %p261 = scmp.eq.s32.totalorder %s21, 0
    %p262 = por %p260, %p261
    %p263 = scmp.ne.s32.totalorder %s249, %s250
    %p264 = scmp.eq.s32.totalorder %s22, 3
    %p265 = por %p263, %p264
    %p267 = scmp.ne.s32.totalorder %s250, %s266
    %p268 = scmp.eq.s32.totalorder %s22, 0
    %p269 = por %p267, %p268
    %p270 = scmp.le.s32.totalorder 1, %s16
    %p271 = scmp.lt.s32.totalorder %s16, 5
    %p272 = pnand %p270, %p271
    %p273 = pneg %p272
    // Predicated region
    $region9: #{bottleneck_forward.4} parent=5 // pred_check
      _
    $region10: #{bottleneck_forward.4} parent=5 // pred_check_branch
      %275 = sbr.rel (%p272) target = $region12
    $region11: #{bottleneck_forward.4} parent=5 // pred_region
      %s276 = ssub.s32 %s16, 1
      // Predicated region
      $region13: #{bottleneck_forward.4} parent=11 // pred_check
        %p277 = pneg %p89
      $region14: #{bottleneck_forward.4} parent=11 // pred_check_branch
        %279 = sbr.rel (%p277) target = $region16
      $region15: #{bottleneck_forward.4} parent=11 // pred_region
        _
      $region16: #{bottleneck_forward.4} parent=11 // pred_fallthru
        _
      // Predicated region
      $region17: #{bottleneck_forward.4} parent=11 // pred_check
        %p280 = pneg %p110
      $region18: #{bottleneck_forward.4} parent=11 // pred_check_branch
        %282 = sbr.rel (%p280) target = $region20
      $region19: #{bottleneck_forward.4} parent=11 // pred_region
        _
      $region20: #{bottleneck_forward.4} parent=11 // pred_fallthru
        _
      // Predicated region
      $region21: #{bottleneck_forward.4} parent=11 // pred_check
        %p283 = pneg %p131
      $region22: #{bottleneck_forward.4} parent=11 // pred_check_branch
        %285 = sbr.rel (%p283) target = $region24
      $region23: #{bottleneck_forward.4} parent=11 // pred_region
        _
      $region24: #{bottleneck_forward.4} parent=11 // pred_fallthru
        _
      // Predicated region
      $region25: #{bottleneck_forward.4} parent=11 // pred_check
        %p286 = pneg %p152
      $region26: #{bottleneck_forward.4} parent=11 // pred_check_branch
        %288 = sbr.rel (%p286) target = $region28
      $region27: #{bottleneck_forward.4} parent=11 // pred_region
        _
      $region28: #{bottleneck_forward.4} parent=11 // pred_fallthru
        _
      // Predicated region
      $region29: #{bottleneck_forward.4} parent=11 // pred_check
        %p289 = pneg %p173
      $region30: #{bottleneck_forward.4} parent=11 // pred_check_branch
        %291 = sbr.rel (%p289) target = $region32
      $region31: #{bottleneck_forward.4} parent=11 // pred_region
        _
      $region32: #{bottleneck_forward.4} parent=11 // pred_fallthru
        _
      // Predicated region
      $region33: #{bottleneck_forward.4} parent=11 // pred_check
        %p292 = pneg %p194
      $region34: #{bottleneck_forward.4} parent=11 // pred_check_branch
        %294 = sbr.rel (%p292) target = $region36
      $region35: #{bottleneck_forward.4} parent=11 // pred_region
        _
      $region36: #{bottleneck_forward.4} parent=11 // pred_fallthru
        _
      // Predicated region
      $region37: #{bottleneck_forward.4} parent=11 // pred_check
        %p295 = pneg %p215
      $region38: #{bottleneck_forward.4} parent=11 // pred_check_branch
        %297 = sbr.rel (%p295) target = $region40
      $region39: #{bottleneck_forward.4} parent=11 // pred_region
        _
      $region40: #{bottleneck_forward.4} parent=11 // pred_fallthru
        _
      // Predicated region
      $region41: #{bottleneck_forward.4} parent=11 // pred_check
        %p298 = pneg %p236
      $region42: #{bottleneck_forward.4} parent=11 // pred_check_branch
        %300 = sbr.rel (%p298) target = $region44
      $region43: #{bottleneck_forward.4} parent=11 // pred_region
        _
      $region44: #{bottleneck_forward.4} parent=11 // pred_fallthru
        _
    $region12: #{bottleneck_forward.4} parent=5 // pred_fallthru
      _
    %p301 = scmp.lt.s32.totalorder %s16, 4
    // Predicated region
    $region45: #{bottleneck_forward.4} parent=5 // pred_check
      %p302 = pneg %p301
    $region46: #{bottleneck_forward.4} parent=5 // pred_check_branch
      %304 = sbr.rel (%p302) target = $region48
    $region47: #{bottleneck_forward.4} parent=5 // pred_region
      // Predicated region
      $region49: #{bottleneck_forward.4} parent=47 // pred_check
        %p305 = pneg %p36
      $region50: #{bottleneck_forward.4} parent=47 // pred_check_branch
        %307 = sbr.rel (%p305) target = $region52
      $region51: #{bottleneck_forward.4} parent=47 // pred_region
        %p308 = scmp.lt.s32.totalorder %s16, 3
        %s309 = scalar_select %p308, %s16, 3
        %s310 = smul.addr %s309, 54
        %s311 = smul.addr %s310, 4
        %s312 = scalar_lea.vmem %s0, %s311
      $region52: #{bottleneck_forward.4} parent=47 // pred_fallthru
        _
      // Predicated region
      $region53: #{bottleneck_forward.4} parent=47 // pred_check
        %p313 = pneg %p62
      $region54: #{bottleneck_forward.4} parent=47 // pred_check_branch
        %315 = sbr.rel (%p313) target = $region56
      $region55: #{bottleneck_forward.4} parent=47 // pred_region
        %p316 = scmp.lt.s32.totalorder %s16, 3
        %s317 = scalar_select %p316, %s16, 3
        %s318 = smul.addr %s317, 32
        %s319 = smul.addr %s318, 4
        %s320 = scalar_lea.vmem %s1, %s319
      $region56: #{bottleneck_forward.4} parent=47 // pred_fallthru
        _
    $region48: #{bottleneck_forward.4} parent=5 // pred_fallthru
      _
    %p321 = scmp.le.s32.totalorder 1, %s16
    %p322 = scmp.lt.s32.totalorder %s16, 5
    %p323 = pnand %p321, %p322
    %p324 = pneg %p323
    // Predicated region
    $region57: #{bottleneck_forward.4} parent=5 // pred_check
      _
    $region58: #{bottleneck_forward.4} parent=5 // pred_check_branch
      %326 = sbr.rel (%p323) target = $region60
    $region59: #{bottleneck_forward.4} parent=5 // pred_region
      %s327 = ssub.s32 %s16, 1
      %p328 = scmp.lt.s32.totalorder %s21, 3
      %s329 = scalar_select %p328, %s21, 3
      %s330 = smul.addr %s329, 54
      %s331 = smul.addr %s330, 4
      %s332 = scalar_lea.vmem %s0, %s331
      %p333 = pneg %p42
      %p334 = pneg %p39
      %p335 = scmp.lt.s32.totalorder %s21, 3
      %s336 = scalar_select %p335, %s21, 3
      %s337 = smul.addr %s336, 32
      %s338 = smul.addr %s337, 4
      %s339 = scalar_lea.vmem %s1, %s338
      %p340 = pneg %p68
      %p341 = pneg %p65
      %p342 = pneg %p89
      %p343 = pneg %p86
      %p344 = pneg %p110
      %p345 = pneg %p107
      %p346 = pneg %p131
      %p347 = pneg %p128
      %p348 = pneg %p152
      %p349 = pneg %p149
      %p350 = pneg %p173
      %p351 = pneg %p170
      %p352 = pneg %p194
      %p353 = pneg %p191
      %p354 = pneg %p215
      %p355 = pneg %p212
      %p356 = pneg %p236
      %p357 = pneg %p233
      %p358 = pneg %p262
      %p359 = pneg %p259
      %p360 = scmp.lt.s32.totalorder %s21, 3
      %s361 = scalar_select %p360, %s21, 3
      %s362 = smul.addr %s361, 32
      %s363 = smul.addr %s362, 4
      %s364 = scalar_lea.vmem %s10, %s363
      %p365 = scmp.lt.s32.totalorder %s21, 3
      %s366 = scalar_select %p365, %s21, 3
      %s367 = smul.addr %s366, 54
      %s368 = smul.addr %s367, 4
      %s369 = scalar_lea.vmem %s0, %s368
      %p370 = scmp.lt.s32.totalorder %s21, 3
      %s371 = scalar_select %p370, %s21, 3
      %s372 = smul.addr %s371, 32
      %s373 = smul.addr %s372, 4
      %s374 = scalar_lea.vmem %s1, %s373
      %p375 = scmp.lt.s32.totalorder %s21, 3
      %s376 = scalar_select %p375, %s21, 3
      %s377 = smul.addr %s376, 32
      %s378 = smul.addr %s377, 4
      %s379 = scalar_lea.vmem %s10, %s378
      %v381 = vld [vmem:[%s369] sm:$0xf]
      %v382 = vld [vmem:[%s369 + $0x4] sm:$0xf]
      %v383 = vld [vmem:[%s369 + $0x8] sm:$0x1]
      %v384 = vld [vmem:[%s369 + $0xc] sm:$0xf]
      %v385 = vld [vmem:[%s369 + $0x10] sm:$0xf]
      %v386 = vld [vmem:[%s369 + $0x14] sm:$0x1]
      %v387 = vld [vmem:[%s369 + $0x18] sm:$0xf]
      %v388 = vld [vmem:[%s369 + $0x1c] sm:$0xf]
      %v389 = vld [vmem:[%s369 + $0x20] sm:$0x1]
      %v390 = vld [vmem:[%s369 + $0x24] sm:$0xf]
      %v391 = vld [vmem:[%s369 + $0x28] sm:$0xf]
      %v392 = vld [vmem:[%s369 + $0x2c] sm:$0x1]
      %v393 = vld [vmem:[%s369 + $0x30] sm:$0xf]
      %v394 = vld [vmem:[%s369 + $0x34] sm:$0xf]
      %v395 = vld [vmem:[%s369 + $0x38] sm:$0x1]
      %v396 = vld [vmem:[%s369 + $0x3c] sm:$0xf]
      %v397 = vld [vmem:[%s369 + $0x40] sm:$0xf]
      %v398 = vld [vmem:[%s369 + $0x44] sm:$0x1]
      %v399 = vld [vmem:[%s369 + $0x48] sm:$0xf]
      %v400 = vld [vmem:[%s369 + $0x4c] sm:$0xf]
      %v401 = vld [vmem:[%s369 + $0x50] sm:$0x1]
      %v402 = vld [vmem:[%s369 + $0x54] sm:$0xf]
      %v403 = vld [vmem:[%s369 + $0x58] sm:$0xf]
      %v404 = vld [vmem:[%s369 + $0x5c] sm:$0x1]
      %v405 = vld [vmem:[%s369 + $0x60] sm:$0xf]
      %v406 = vld [vmem:[%s369 + $0x64] sm:$0xf]
      %v407 = vld [vmem:[%s369 + $0x68] sm:$0x1]
      %v408 = vld [vmem:[%s369 + $0x6c] sm:$0xf]
      %v409 = vld [vmem:[%s369 + $0x70] sm:$0xf]
      %v410 = vld [vmem:[%s369 + $0x74] sm:$0x1]
      %v411 = vld [vmem:[%s369 + $0x78] sm:$0xf]
      %v412 = vld [vmem:[%s369 + $0x7c] sm:$0xf]
      %v413 = vld [vmem:[%s369 + $0x80] sm:$0x1]
      %v414 = vld [vmem:[%s369 + $0x84] sm:$0xf]
      %v415 = vld [vmem:[%s369 + $0x88] sm:$0xf]
      %v416 = vld [vmem:[%s369 + $0x8c] sm:$0x1]
      %v417 = vld [vmem:[%s369 + $0x90] sm:$0xf]
      %v418 = vld [vmem:[%s369 + $0x94] sm:$0xf]
      %v419 = vld [vmem:[%s369 + $0x98] sm:$0x1]
      %v420 = vld [vmem:[%s369 + $0x9c] sm:$0xf]
      %v421 = vld [vmem:[%s369 + $0xa0] sm:$0xf]
      %v422 = vld [vmem:[%s369 + $0xa4] sm:$0x1]
      %v423 = vld [vmem:[%s369 + $0xa8] sm:$0xf]
      %v424 = vld [vmem:[%s369 + $0xac] sm:$0xf]
      %v425 = vld [vmem:[%s369 + $0xb0] sm:$0x1]
      %v426 = vld [vmem:[%s369 + $0xb4] sm:$0xf]
      %v427 = vld [vmem:[%s369 + $0xb8] sm:$0xf]
      %v428 = vld [vmem:[%s369 + $0xbc] sm:$0x1]
      %v429 = vld [vmem:[%s369 + $0xc0] sm:$0xf]
      %v430 = vld [vmem:[%s369 + $0xc4] sm:$0xf]
      %v431 = vld [vmem:[%s369 + $0xc8] sm:$0x1]
      %v432 = vld [vmem:[%s369 + $0xcc] sm:$0xf]
      %v433 = vld [vmem:[%s369 + $0xd0] sm:$0xf]
      %v434 = vld [vmem:[%s369 + $0xd4] sm:$0x1]
      %v467 = vunpack.c.l.b16 %v381
      %v468 = vunpack.c.l.b16 %v382
      %v469 = vunpack.c.l.b16 %v384
      %v470 = vunpack.c.l.b16 %v385
      %v471 = vunpack.c.l.b16 %v387
      %v472 = vunpack.c.l.b16 %v388
      %v473 = vunpack.c.l.b16 %v390
      %v474 = vunpack.c.l.b16 %v391
      %v475 = vunpack.c.l.b16 %v393
      %v476 = vunpack.c.l.b16 %v394
      %v477 = vunpack.c.l.b16 %v396
      %v478 = vunpack.c.l.b16 %v397
      %v479 = vunpack.c.l.b16 %v399
      %v480 = vunpack.c.l.b16 %v400
      %v481 = vunpack.c.l.b16 %v402
      %v482 = vunpack.c.l.b16 %v403
      %v483 = vunpack.c.l.b16 %v405
      %v484 = vunpack.c.l.b16 %v406
      %v485 = vunpack.c.l.b16 %v408
      %v486 = vunpack.c.l.b16 %v409
      %v487 = vunpack.c.l.b16 %v411
      %v488 = vunpack.c.l.b16 %v412
      %v489 = vunpack.c.l.b16 %v414
      %v490 = vunpack.c.l.b16 %v415
      %v491 = vunpack.c.l.b16 %v417
      %v492 = vunpack.c.l.b16 %v418
      %v493 = vunpack.c.l.b16 %v420
      %v494 = vunpack.c.l.b16 %v421
      %v495 = vunpack.c.l.b16 %v423
      %v496 = vunpack.c.l.b16 %v424
      %v497 = vunpack.c.l.b16 %v426
      %v498 = vunpack.c.l.b16 %v427
      %v499 = vpack.c.b16 %v468, %v467
      %v500 = vpack.c.b16 %v470, %v469
      %v501 = vpack.c.b16 %v472, %v471
      %v502 = vpack.c.b16 %v474, %v473
      %v503 = vpack.c.b16 %v476, %v475
      %v504 = vpack.c.b16 %v478, %v477
      %v505 = vpack.c.b16 %v480, %v479
      %v506 = vpack.c.b16 %v482, %v481
      %v507 = vpack.c.b16 %v484, %v483
      %v508 = vpack.c.b16 %v486, %v485
      %v509 = vpack.c.b16 %v488, %v487
      %v510 = vpack.c.b16 %v490, %v489
      %v511 = vpack.c.b16 %v492, %v491
      %v512 = vpack.c.b16 %v494, %v493
      %v513 = vpack.c.b16 %v496, %v495
      %v514 = vpack.c.b16 %v498, %v497
      %v531 = vunpack.c.l.b16 %v383
      %v532 = vunpack.c.l.b16 %v386
      %v533 = vunpack.c.l.b16 %v389
      %v534 = vunpack.c.l.b16 %v392
      %v535 = vunpack.c.l.b16 %v395
      %v536 = vunpack.c.l.b16 %v398
      %v537 = vunpack.c.l.b16 %v401
      %v538 = vunpack.c.l.b16 %v404
      %v539 = vunpack.c.l.b16 %v407
      %v540 = vunpack.c.l.b16 %v410
      %v541 = vunpack.c.l.b16 %v413
      %v542 = vunpack.c.l.b16 %v416
      %v543 = vunpack.c.l.b16 %v419
      %v544 = vunpack.c.l.b16 %v422
      %v545 = vunpack.c.l.b16 %v425
      %v546 = vunpack.c.l.b16 %v428
      %v547 = vpack.c.b16 %v531, %v531
      %v548 = vpack.c.b16 %v532, %v532
      %v549 = vpack.c.b16 %v533, %v533
      %v550 = vpack.c.b16 %v534, %v534
      %v551 = vpack.c.b16 %v535, %v535
      %v552 = vpack.c.b16 %v536, %v536
      %v553 = vpack.c.b16 %v537, %v537
      %v554 = vpack.c.b16 %v538, %v538
      %v555 = vpack.c.b16 %v539, %v539
      %v556 = vpack.c.b16 %v540, %v540
      %v557 = vpack.c.b16 %v541, %v541
      %v558 = vpack.c.b16 %v542, %v542
      %v559 = vpack.c.b16 %v543, %v543
      %v560 = vpack.c.b16 %v544, %v544
      %v561 = vpack.c.b16 %v545, %v545
      %v562 = vpack.c.b16 %v546, %v546
      %vm563 = vsmask.f32 7424
      %v565 = vshrl.u32 %v499, 16
      %v567 = vshll.u32 %v499, 16
      %v569 = vrot.slane %v567, 1
      %v570 = vor.u32 %v565, %v569
      %v572 = vshll.u32 %v547, 16
      %v574 = vrot.slane %v572, 1
      %v575 = vsel %vm563, %v570, %v574
      %v577 = vshrl.u32 %v500, 16
      %v579 = vshll.u32 %v500, 16
      %v581 = vrot.slane %v579, 1
      %v582 = vor.u32 %v577, %v581
      %v584 = vshll.u32 %v548, 16
      %v586 = vrot.slane %v584, 1
      %v587 = vsel %vm563, %v582, %v586
      %v589 = vshrl.u32 %v501, 16
      %v591 = vshll.u32 %v501, 16
      %v593 = vrot.slane %v591, 1
      %v594 = vor.u32 %v589, %v593
      %v596 = vshll.u32 %v549, 16
      %v598 = vrot.slane %v596, 1
      %v599 = vsel %vm563, %v594, %v598
      %v601 = vshrl.u32 %v502, 16
      %v603 = vshll.u32 %v502, 16
      %v605 = vrot.slane %v603, 1
      %v606 = vor.u32 %v601, %v605
      %v608 = vshll.u32 %v550, 16
      %v610 = vrot.slane %v608, 1
      %v611 = vsel %vm563, %v606, %v610
      %v613 = vshrl.u32 %v503, 16
      %v615 = vshll.u32 %v503, 16
      %v617 = vrot.slane %v615, 1
      %v618 = vor.u32 %v613, %v617
      %v620 = vshll.u32 %v551, 16
      %v622 = vrot.slane %v620, 1
      %v623 = vsel %vm563, %v618, %v622
      %v625 = vshrl.u32 %v504, 16
      %v627 = vshll.u32 %v504, 16
      %v629 = vrot.slane %v627, 1
      %v630 = vor.u32 %v625, %v629
      %v632 = vshll.u32 %v552, 16
      %v634 = vrot.slane %v632, 1
      %v635 = vsel %vm563, %v630, %v634
      %v637 = vshrl.u32 %v505, 16
      %v639 = vshll.u32 %v505, 16
      %v641 = vrot.slane %v639, 1
      %v642 = vor.u32 %v637, %v641
      %v644 = vshll.u32 %v553, 16
      %v646 = vrot.slane %v644, 1
      %v647 = vsel %vm563, %v642, %v646
      %v649 = vshrl.u32 %v506, 16
      %v651 = vshll.u32 %v506, 16
      %v653 = vrot.slane %v651, 1
      %v654 = vor.u32 %v649, %v653
      %v656 = vshll.u32 %v554, 16
      %v658 = vrot.slane %v656, 1
      %v659 = vsel %vm563, %v654, %v658
      %v661 = vshrl.u32 %v507, 16
      %v663 = vshll.u32 %v507, 16
      %v665 = vrot.slane %v663, 1
      %v666 = vor.u32 %v661, %v665
      %v668 = vshll.u32 %v555, 16
      %v670 = vrot.slane %v668, 1
      %v671 = vsel %vm563, %v666, %v670
      %v673 = vshrl.u32 %v508, 16
      %v675 = vshll.u32 %v508, 16
      %v677 = vrot.slane %v675, 1
      %v678 = vor.u32 %v673, %v677
      %v680 = vshll.u32 %v556, 16
      %v682 = vrot.slane %v680, 1
      %v683 = vsel %vm563, %v678, %v682
      %v685 = vshrl.u32 %v509, 16
      %v687 = vshll.u32 %v509, 16
      %v689 = vrot.slane %v687, 1
      %v690 = vor.u32 %v685, %v689
      %v692 = vshll.u32 %v557, 16
      %v694 = vrot.slane %v692, 1
      %v695 = vsel %vm563, %v690, %v694
      %v697 = vshrl.u32 %v510, 16
      %v699 = vshll.u32 %v510, 16
      %v701 = vrot.slane %v699, 1
      %v702 = vor.u32 %v697, %v701
      %v704 = vshll.u32 %v558, 16
      %v706 = vrot.slane %v704, 1
      %v707 = vsel %vm563, %v702, %v706
      %v709 = vshrl.u32 %v511, 16
      %v711 = vshll.u32 %v511, 16
      %v713 = vrot.slane %v711, 1
      %v714 = vor.u32 %v709, %v713
      %v716 = vshll.u32 %v559, 16
      %v718 = vrot.slane %v716, 1
      %v719 = vsel %vm563, %v714, %v718
      %v721 = vshrl.u32 %v512, 16
      %v723 = vshll.u32 %v512, 16
      %v725 = vrot.slane %v723, 1
      %v726 = vor.u32 %v721, %v725
      %v728 = vshll.u32 %v560, 16
      %v730 = vrot.slane %v728, 1
      %v731 = vsel %vm563, %v726, %v730
      %v733 = vshrl.u32 %v513, 16
      %v735 = vshll.u32 %v513, 16
      %v737 = vrot.slane %v735, 1
      %v738 = vor.u32 %v733, %v737
      %v740 = vshll.u32 %v561, 16
      %v742 = vrot.slane %v740, 1
      %v743 = vsel %vm563, %v738, %v742
      %v745 = vshrl.u32 %v514, 16
      %v747 = vshll.u32 %v514, 16
      %v749 = vrot.slane %v747, 1
      %v750 = vor.u32 %v745, %v749
      %v752 = vshll.u32 %v562, 16
      %v754 = vrot.slane %v752, 1
      %v755 = vsel %vm563, %v750, %v754
      %756 = vrot.lane.b32.xlu0 %v575, 8
      %v757 = vpop.permute.xlu0 %756
      %758 = vrot.lane.b32.xlu0 %v587, 8
      %v759 = vpop.permute.xlu0 %758
      %760 = vrot.lane.b32.xlu0 %v599, 8
      %v761 = vpop.permute.xlu0 %760
      %762 = vrot.lane.b32.xlu0 %v611, 8
      %v763 = vpop.permute.xlu0 %762
      %764 = vrot.lane.b32.xlu0 %v623, 8
      %v765 = vpop.permute.xlu0 %764
      %766 = vrot.lane.b32.xlu0 %v635, 8
      %v767 = vpop.permute.xlu0 %766
      %768 = vrot.lane.b32.xlu0 %v647, 8
      %v769 = vpop.permute.xlu0 %768
      %770 = vrot.lane.b32.xlu0 %v659, 8
      %v771 = vpop.permute.xlu0 %770
      %772 = vrot.lane.b32.xlu0 %v671, 8
      %v773 = vpop.permute.xlu0 %772
      %774 = vrot.lane.b32.xlu0 %v683, 8
      %v775 = vpop.permute.xlu0 %774
      %776 = vrot.lane.b32.xlu0 %v695, 8
      %v777 = vpop.permute.xlu0 %776
      %778 = vrot.lane.b32.xlu0 %v707, 8
      %v779 = vpop.permute.xlu0 %778
      %780 = vrot.lane.b32.xlu0 %v719, 8
      %v781 = vpop.permute.xlu0 %780
      %782 = vrot.lane.b32.xlu0 %v731, 8
      %v783 = vpop.permute.xlu0 %782
      %784 = vrot.lane.b32.xlu0 %v743, 8
      %v785 = vpop.permute.xlu0 %784
      %786 = vrot.lane.b32.xlu0 %v755, 8
      %v787 = vpop.permute.xlu0 %786
      %vm788 = vcmask 1046528
      %v789 = vrot.slane %v499, 1
      %v790 = vrot.slane %v547, 1
      %v791 = vsel %vm788, %v789, %v790
      %v792 = vrot.slane %v500, 1
      %v793 = vrot.slane %v548, 1
      %v794 = vsel %vm788, %v792, %v793
      %v795 = vrot.slane %v501, 1
      %v796 = vrot.slane %v549, 1
      %v797 = vsel %vm788, %v795, %v796
      %v798 = vrot.slane %v502, 1
      %v799 = vrot.slane %v550, 1
      %v800 = vsel %vm788, %v798, %v799
      %v801 = vrot.slane %v503, 1
      %v802 = vrot.slane %v551, 1
      %v803 = vsel %vm788, %v801, %v802
      %v804 = vrot.slane %v504, 1
      %v805 = vrot.slane %v552, 1
      %v806 = vsel %vm788, %v804, %v805
      %v807 = vrot.slane %v505, 1
      %v808 = vrot.slane %v553, 1
      %v809 = vsel %vm788, %v807, %v808
      %v810 = vrot.slane %v506, 1
      %v811 = vrot.slane %v554, 1
      %v812 = vsel %vm788, %v810, %v811
      %v813 = vrot.slane %v507, 1
      %v814 = vrot.slane %v555, 1
      %v815 = vsel %vm788, %v813, %v814
      %v816 = vrot.slane %v508, 1
      %v817 = vrot.slane %v556, 1
      %v818 = vsel %vm788, %v816, %v817
      %v819 = vrot.slane %v509, 1
      %v820 = vrot.slane %v557, 1
      %v821 = vsel %vm788, %v819, %v820
      %v822 = vrot.slane %v510, 1
      %v823 = vrot.slane %v558, 1
      %v824 = vsel %vm788, %v822, %v823
      %v825 = vrot.slane %v511, 1
      %v826 = vrot.slane %v559, 1
      %v827 = vsel %vm788, %v825, %v826
      %v828 = vrot.slane %v512, 1
      %v829 = vrot.slane %v560, 1
      %v830 = vsel %vm788, %v828, %v829
      %v831 = vrot.slane %v513, 1
      %v832 = vrot.slane %v561, 1
      %v833 = vsel %vm788, %v831, %v832
      %v834 = vrot.slane %v514, 1
      %v835 = vrot.slane %v562, 1
      %v836 = vsel %vm788, %v834, %v835
      %837 = vrot.lane.b32.xlu0 %v791, 16
      %v838 = vpop.permute.xlu0 %837
      %839 = vrot.lane.b32.xlu0 %v794, 16
      %v840 = vpop.permute.xlu0 %839
      %841 = vrot.lane.b32.xlu0 %v797, 16
      %v842 = vpop.permute.xlu0 %841
      %843 = vrot.lane.b32.xlu0 %v800, 16
      %v844 = vpop.permute.xlu0 %843
      %845 = vrot.lane.b32.xlu0 %v803, 16
      %v846 = vpop.permute.xlu0 %845
      %847 = vrot.lane.b32.xlu0 %v806, 16
      %v848 = vpop.permute.xlu0 %847
      %849 = vrot.lane.b32.xlu0 %v809, 16
      %v850 = vpop.permute.xlu0 %849
      %851 = vrot.lane.b32.xlu0 %v812, 16
      %v852 = vpop.permute.xlu0 %851
      %853 = vrot.lane.b32.xlu0 %v815, 16
      %v854 = vpop.permute.xlu0 %853
      %855 = vrot.lane.b32.xlu0 %v818, 16
      %v856 = vpop.permute.xlu0 %855
      %857 = vrot.lane.b32.xlu0 %v821, 16
      %v858 = vpop.permute.xlu0 %857
      %859 = vrot.lane.b32.xlu0 %v824, 16
      %v860 = vpop.permute.xlu0 %859
      %861 = vrot.lane.b32.xlu0 %v827, 16
      %v862 = vpop.permute.xlu0 %861
      %863 = vrot.lane.b32.xlu0 %v830, 16
      %v864 = vpop.permute.xlu0 %863
      %865 = vrot.lane.b32.xlu0 %v833, 16
      %v866 = vpop.permute.xlu0 %865
      %867 = vrot.lane.b32.xlu0 %v836, 16
      %v868 = vpop.permute.xlu0 %867
      %v871 = vunpack.c.l.b16 %v429
      %v872 = vunpack.c.l.b16 %v430
      %v873 = vpack.c.b16 %v872, %v871
      %874 = vrot.lane.b32.xlu0 %v500, 24
      %v875 = vpop.permute.xlu0 %874
      %876 = vrot.lane.b32.xlu0 %v501, 24
      %v877 = vpop.permute.xlu0 %876
      %878 = vrot.lane.b32.xlu0 %v502, 24
      %v879 = vpop.permute.xlu0 %878
      %880 = vrot.lane.b32.xlu0 %v503, 24
      %v881 = vpop.permute.xlu0 %880
      %882 = vrot.lane.b32.xlu0 %v504, 24
      %v883 = vpop.permute.xlu0 %882
      %884 = vrot.lane.b32.xlu0 %v505, 24
      %v885 = vpop.permute.xlu0 %884
      %886 = vrot.lane.b32.xlu0 %v506, 24
      %v887 = vpop.permute.xlu0 %886
      %888 = vrot.lane.b32.xlu0 %v507, 24
      %v889 = vpop.permute.xlu0 %888
      %890 = vrot.lane.b32.xlu0 %v508, 24
      %v891 = vpop.permute.xlu0 %890
      %892 = vrot.lane.b32.xlu0 %v509, 24
      %v893 = vpop.permute.xlu0 %892
      %894 = vrot.lane.b32.xlu0 %v510, 24
      %v895 = vpop.permute.xlu0 %894
      %896 = vrot.lane.b32.xlu0 %v511, 24
      %v897 = vpop.permute.xlu0 %896
      %898 = vrot.lane.b32.xlu0 %v512, 24
      %v899 = vpop.permute.xlu0 %898
      %900 = vrot.lane.b32.xlu0 %v513, 24
      %v901 = vpop.permute.xlu0 %900
      %902 = vrot.lane.b32.xlu0 %v514, 24
      %v903 = vpop.permute.xlu0 %902
      %904 = vrot.lane.b32.xlu0 %v873, 24
      %v905 = vpop.permute.xlu0 %904
      %v907 = vunpack.c.l.b16 %v431
      %v908 = vpack.c.b16 %v907, %v907
      %v910 = vshrl.u32 %v873, 16
      %v912 = vshll.u32 %v873, 16
      %v914 = vrot.slane %v912, 1
      %v915 = vor.u32 %v910, %v914
      %v917 = vshll.u32 %v908, 16
      %v919 = vrot.slane %v917, 1
      %v920 = vsel %vm563, %v915, %v919
      %921 = vrot.lane.b32.xlu0 %v587, 32
      %v922 = vpop.permute.xlu0 %921
      %923 = vrot.lane.b32.xlu0 %v599, 32
      %v924 = vpop.permute.xlu0 %923
      %925 = vrot.lane.b32.xlu0 %v611, 32
      %v926 = vpop.permute.xlu0 %925
      %927 = vrot.lane.b32.xlu0 %v623, 32
      %v928 = vpop.permute.xlu0 %927
      %929 = vrot.lane.b32.xlu0 %v635, 32
      %v930 = vpop.permute.xlu0 %929
      %931 = vrot.lane.b32.xlu0 %v647, 32
      %v932 = vpop.permute.xlu0 %931
      %933 = vrot.lane.b32.xlu0 %v659, 32
      %v934 = vpop.permute.xlu0 %933
      %935 = vrot.lane.b32.xlu0 %v671, 32
      %v936 = vpop.permute.xlu0 %935
      %937 = vrot.lane.b32.xlu0 %v683, 32
      %v938 = vpop.permute.xlu0 %937
      %939 = vrot.lane.b32.xlu0 %v695, 32
      %v940 = vpop.permute.xlu0 %939
      %941 = vrot.lane.b32.xlu0 %v707, 32
      %v942 = vpop.permute.xlu0 %941
      %943 = vrot.lane.b32.xlu0 %v719, 32
      %v944 = vpop.permute.xlu0 %943
      %945 = vrot.lane.b32.xlu0 %v731, 32
      %v946 = vpop.permute.xlu0 %945
      %947 = vrot.lane.b32.xlu0 %v743, 32
      %v948 = vpop.permute.xlu0 %947
      %949 = vrot.lane.b32.xlu0 %v755, 32
      %v950 = vpop.permute.xlu0 %949
      %951 = vrot.lane.b32.xlu0 %v920, 32
      %v952 = vpop.permute.xlu0 %951
      %v953 = vrot.slane %v873, 1
      %v954 = vrot.slane %v908, 1
      %v955 = vsel %vm788, %v953, %v954
      %956 = vrot.lane.b32.xlu0 %v794, 40
      %v957 = vpop.permute.xlu0 %956
      %958 = vrot.lane.b32.xlu0 %v797, 40
      %v959 = vpop.permute.xlu0 %958
      %960 = vrot.lane.b32.xlu0 %v800, 40
      %v961 = vpop.permute.xlu0 %960
      %962 = vrot.lane.b32.xlu0 %v803, 40
      %v963 = vpop.permute.xlu0 %962
      %964 = vrot.lane.b32.xlu0 %v806, 40
      %v965 = vpop.permute.xlu0 %964
      %966 = vrot.lane.b32.xlu0 %v809, 40
      %v967 = vpop.permute.xlu0 %966
      %968 = vrot.lane.b32.xlu0 %v812, 40
      %v969 = vpop.permute.xlu0 %968
      %970 = vrot.lane.b32.xlu0 %v815, 40
      %v971 = vpop.permute.xlu0 %970
      %972 = vrot.lane.b32.xlu0 %v818, 40
      %v973 = vpop.permute.xlu0 %972
      %974 = vrot.lane.b32.xlu0 %v821, 40
      %v975 = vpop.permute.xlu0 %974
      %976 = vrot.lane.b32.xlu0 %v824, 40
      %v977 = vpop.permute.xlu0 %976
      %978 = vrot.lane.b32.xlu0 %v827, 40
      %v979 = vpop.permute.xlu0 %978
      %980 = vrot.lane.b32.xlu0 %v830, 40
      %v981 = vpop.permute.xlu0 %980
      %982 = vrot.lane.b32.xlu0 %v833, 40
      %v983 = vpop.permute.xlu0 %982
      %984 = vrot.lane.b32.xlu0 %v836, 40
      %v985 = vpop.permute.xlu0 %984
      %986 = vrot.lane.b32.xlu0 %v955, 40
      %v987 = vpop.permute.xlu0 %986
      %v990 = vunpack.c.l.b16 %v432
      %v991 = vunpack.c.l.b16 %v433
      %v992 = vpack.c.b16 %v991, %v990
      %993 = vrot.lane.b32.xlu0 %v501, 48
      %v994 = vpop.permute.xlu0 %993
      %995 = vrot.lane.b32.xlu0 %v502, 48
      %v996 = vpop.permute.xlu0 %995
      %997 = vrot.lane.b32.xlu0 %v503, 48
      %v998 = vpop.permute.xlu0 %997
      %999 = vrot.lane.b32.xlu0 %v504, 48
      %v1000 = vpop.permute.xlu0 %999
      %1001 = vrot.lane.b32.xlu0 %v505, 48
      %v1002 = vpop.permute.xlu0 %1001
      %1003 = vrot.lane.b32.xlu0 %v506, 48
      %v1004 = vpop.permute.xlu0 %1003
      %1005 = vrot.lane.b32.xlu0 %v507, 48
      %v1006 = vpop.permute.xlu0 %1005
      %1007 = vrot.lane.b32.xlu0 %v508, 48
      %v1008 = vpop.permute.xlu0 %1007
      %1009 = vrot.lane.b32.xlu0 %v509, 48
      %v1010 = vpop.permute.xlu0 %1009
      %1011 = vrot.lane.b32.xlu0 %v510, 48
      %v1012 = vpop.permute.xlu0 %1011
      %1013 = vrot.lane.b32.xlu0 %v511, 48
      %v1014 = vpop.permute.xlu0 %1013
      %1015 = vrot.lane.b32.xlu0 %v512, 48
      %v1016 = vpop.permute.xlu0 %1015
      %1017 = vrot.lane.b32.xlu0 %v513, 48
      %v1018 = vpop.permute.xlu0 %1017
      %1019 = vrot.lane.b32.xlu0 %v514, 48
      %v1020 = vpop.permute.xlu0 %1019
      %1021 = vrot.lane.b32.xlu0 %v873, 48
      %v1022 = vpop.permute.xlu0 %1021
      %1023 = vrot.lane.b32.xlu0 %v992, 48
      %v1024 = vpop.permute.xlu0 %1023
      %v1026 = vunpack.c.l.b16 %v434
      %v1027 = vpack.c.b16 %v1026, %v1026
      %v1029 = vshrl.u32 %v992, 16
      %v1031 = vshll.u32 %v992, 16
      %v1033 = vrot.slane %v1031, 1
      %v1034 = vor.u32 %v1029, %v1033
      %v1036 = vshll.u32 %v1027, 16
      %v1038 = vrot.slane %v1036, 1
      %v1039 = vsel %vm563, %v1034, %v1038
      %1040 = vrot.lane.b32.xlu0 %v599, 56
      %v1041 = vpop.permute.xlu0 %1040
      %1042 = vrot.lane.b32.xlu0 %v611, 56
      %v1043 = vpop.permute.xlu0 %1042
      %1044 = vrot.lane.b32.xlu0 %v623, 56
      %v1045 = vpop.permute.xlu0 %1044
      %1046 = vrot.lane.b32.xlu0 %v635, 56
      %v1047 = vpop.permute.xlu0 %1046
      %1048 = vrot.lane.b32.xlu0 %v647, 56
      %v1049 = vpop.permute.xlu0 %1048
      %1050 = vrot.lane.b32.xlu0 %v659, 56
      %v1051 = vpop.permute.xlu0 %1050
      %1052 = vrot.lane.b32.xlu0 %v671, 56
      %v1053 = vpop.permute.xlu0 %1052
      %1054 = vrot.lane.b32.xlu0 %v683, 56
      %v1055 = vpop.permute.xlu0 %1054
      %1056 = vrot.lane.b32.xlu0 %v695, 56
      %v1057 = vpop.permute.xlu0 %1056
      %1058 = vrot.lane.b32.xlu0 %v707, 56
      %v1059 = vpop.permute.xlu0 %1058
      %1060 = vrot.lane.b32.xlu0 %v719, 56
      %v1061 = vpop.permute.xlu0 %1060
      %1062 = vrot.lane.b32.xlu0 %v731, 56
      %v1063 = vpop.permute.xlu0 %1062
      %1064 = vrot.lane.b32.xlu0 %v743, 56
      %v1065 = vpop.permute.xlu0 %1064
      %1066 = vrot.lane.b32.xlu0 %v755, 56
      %v1067 = vpop.permute.xlu0 %1066
      %1068 = vrot.lane.b32.xlu0 %v920, 56
      %v1069 = vpop.permute.xlu0 %1068
      %1070 = vrot.lane.b32.xlu0 %v1039, 56
      %v1071 = vpop.permute.xlu0 %1070
      %v1072 = vrot.slane %v992, 1
      %v1073 = vrot.slane %v1027, 1
      %v1074 = vsel %vm788, %v1072, %v1073
      %1075 = vrot.lane.b32.xlu0 %v797, 64
      %v1076 = vpop.permute.xlu0 %1075
      %1077 = vrot.lane.b32.xlu0 %v800, 64
      %v1078 = vpop.permute.xlu0 %1077
      %1079 = vrot.lane.b32.xlu0 %v803, 64
      %v1080 = vpop.permute.xlu0 %1079
      %1081 = vrot.lane.b32.xlu0 %v806, 64
      %v1082 = vpop.permute.xlu0 %1081
      %1083 = vrot.lane.b32.xlu0 %v809, 64
      %v1084 = vpop.permute.xlu0 %1083
      %1085 = vrot.lane.b32.xlu0 %v812, 64
      %v1086 = vpop.permute.xlu0 %1085
      %1087 = vrot.lane.b32.xlu0 %v815, 64
      %v1088 = vpop.permute.xlu0 %1087
      %1089 = vrot.lane.b32.xlu0 %v818, 64
      %v1090 = vpop.permute.xlu0 %1089
      %1091 = vrot.lane.b32.xlu0 %v821, 64
      %v1092 = vpop.permute.xlu0 %1091
      %1093 = vrot.lane.b32.xlu0 %v824, 64
      %v1094 = vpop.permute.xlu0 %1093
      %1095 = vrot.lane.b32.xlu0 %v827, 64
      %v1096 = vpop.permute.xlu0 %1095
      %1097 = vrot.lane.b32.xlu0 %v830, 64
      %v1098 = vpop.permute.xlu0 %1097
      %1099 = vrot.lane.b32.xlu0 %v833, 64
      %v1100 = vpop.permute.xlu0 %1099
      %1101 = vrot.lane.b32.xlu0 %v836, 64
      %v1102 = vpop.permute.xlu0 %1101
      %1103 = vrot.lane.b32.xlu0 %v955, 64
      %v1104 = vpop.permute.xlu0 %1103
      %1105 = vrot.lane.b32.xlu0 %v1074, 64
      %v1106 = vpop.permute.xlu0 %1105
      %vm1107 = vcmask 64512
      %v1109 = vsel %vm1107, %v499, %v757
      %v1111 = vsel %vm1107, %v500, %v759
      %v1113 = vsel %vm1107, %v501, %v761
      %v1115 = vsel %vm1107, %v502, %v763
      %v1117 = vsel %vm1107, %v503, %v765
      %v1119 = vsel %vm1107, %v504, %v767
      %v1121 = vsel %vm1107, %v505, %v769
      %v1123 = vsel %vm1107, %v506, %v771
      %v1125 = vsel %vm1107, %v507, %v773
      %v1127 = vsel %vm1107, %v508, %v775
      %v1129 = vsel %vm1107, %v509, %v777
      %v1131 = vsel %vm1107, %v510, %v779
      %v1133 = vsel %vm1107, %v511, %v781
      %v1135 = vsel %vm1107, %v512, %v783
      %v1137 = vsel %vm1107, %v513, %v785
      %v1139 = vsel %vm1107, %v514, %v787
      %vm1140 = vcmask 130048
      %v1142 = vsel %vm1140, %v1109, %v838
      %v1144 = vsel %vm1140, %v1111, %v840
      %v1146 = vsel %vm1140, %v1113, %v842
      %v1148 = vsel %vm1140, %v1115, %v844
      %v1150 = vsel %vm1140, %v1117, %v846
      %v1152 = vsel %vm1140, %v1119, %v848
      %v1154 = vsel %vm1140, %v1121, %v850
      %v1156 = vsel %vm1140, %v1123, %v852
      %v1158 = vsel %vm1140, %v1125, %v854
      %v1160 = vsel %vm1140, %v1127, %v856
      %v1162 = vsel %vm1140, %v1129, %v858
      %v1164 = vsel %vm1140, %v1131, %v860
      %v1166 = vsel %vm1140, %v1133, %v862
      %v1168 = vsel %vm1140, %v1135, %v864
      %v1170 = vsel %vm1140, %v1137, %v866
      %v1172 = vsel %vm1140, %v1139, %v868
      %vm1173 = vcmask 195584
      %v1175 = vsel %vm1173, %v1142, %v875
      %v1177 = vsel %vm1173, %v1144, %v877
      %v1179 = vsel %vm1173, %v1146, %v879
      %v1181 = vsel %vm1173, %v1148, %v881
      %v1183 = vsel %vm1173, %v1150, %v883
      %v1185 = vsel %vm1173, %v1152, %v885
      %v1187 = vsel %vm1173, %v1154, %v887
      %v1189 = vsel %vm1173, %v1156, %v889
      %v1191 = vsel %vm1173, %v1158, %v891
      %v1193 = vsel %vm1173, %v1160, %v893
      %v1195 = vsel %vm1173, %v1162, %v895
      %v1197 = vsel %vm1173, %v1164, %v897
      %v1199 = vsel %vm1173, %v1166, %v899
      %v1201 = vsel %vm1173, %v1168, %v901
      %v1203 = vsel %vm1173, %v1170, %v903
      %v1205 = vsel %vm1173, %v1172, %v905
      %vm1206 = vcmask 261120
      %v1208 = vsel %vm1206, %v1175, %v922
      %v1210 = vsel %vm1206, %v1177, %v924
      %v1212 = vsel %vm1206, %v1179, %v926
      %v1214 = vsel %vm1206, %v1181, %v928
      %v1216 = vsel %vm1206, %v1183, %v930
      %v1218 = vsel %vm1206, %v1185, %v932
      %v1220 = vsel %vm1206, %v1187, %v934
      %v1222 = vsel %vm1206, %v1189, %v936
      %v1224 = vsel %vm1206, %v1191, %v938
      %v1226 = vsel %vm1206, %v1193, %v940
      %v1228 = vsel %vm1206, %v1195, %v942
      %v1230 = vsel %vm1206, %v1197, %v944
      %v1232 = vsel %vm1206, %v1199, %v946
      %v1234 = vsel %vm1206, %v1201, %v948
      %v1236 = vsel %vm1206, %v1203, %v950
      %v1238 = vsel %vm1206, %v1205, %v952
      %vm1239 = vcmask 326656
      %v1241 = vsel %vm1239, %v1208, %v957
      %v1243 = vsel %vm1239, %v1210, %v959
      %v1245 = vsel %vm1239, %v1212, %v961
      %v1247 = vsel %vm1239, %v1214, %v963
      %v1249 = vsel %vm1239, %v1216, %v965
      %v1251 = vsel %vm1239, %v1218, %v967
      %v1253 = vsel %vm1239, %v1220, %v969
      %v1255 = vsel %vm1239, %v1222, %v971
      %v1257 = vsel %vm1239, %v1224, %v973
      %v1259 = vsel %vm1239, %v1226, %v975
      %v1261 = vsel %vm1239, %v1228, %v977
      %v1263 = vsel %vm1239, %v1230, %v979
      %v1265 = vsel %vm1239, %v1232, %v981
      %v1267 = vsel %vm1239, %v1234, %v983
      %v1269 = vsel %vm1239, %v1236, %v985
      %v1271 = vsel %vm1239, %v1238, %v987
      %vm1272 = vcmask 392192
      %v1274 = vsel %vm1272, %v1241, %v994
      %v1276 = vsel %vm1272, %v1243, %v996
      %v1278 = vsel %vm1272, %v1245, %v998
      %v1280 = vsel %vm1272, %v1247, %v1000
      %v1282 = vsel %vm1272, %v1249, %v1002
      %v1284 = vsel %vm1272, %v1251, %v1004
      %v1286 = vsel %vm1272, %v1253, %v1006
      %v1288 = vsel %vm1272, %v1255, %v1008
      %v1290 = vsel %vm1272, %v1257, %v1010
      %v1292 = vsel %vm1272, %v1259, %v1012
      %v1294 = vsel %vm1272, %v1261, %v1014
      %v1296 = vsel %vm1272, %v1263, %v1016
      %v1298 = vsel %vm1272, %v1265, %v1018
      %v1300 = vsel %vm1272, %v1267, %v1020
      %v1302 = vsel %vm1272, %v1269, %v1022
      %v1304 = vsel %vm1272, %v1271, %v1024
      %vm1305 = vcmask 457728
      %v1307 = vsel %vm1305, %v1274, %v1041
      %v1309 = vsel %vm1305, %v1276, %v1043
      %v1311 = vsel %vm1305, %v1278, %v1045
      %v1313 = vsel %vm1305, %v1280, %v1047
      %v1315 = vsel %vm1305, %v1282, %v1049
      %v1317 = vsel %vm1305, %v1284, %v1051
      %v1319 = vsel %vm1305, %v1286, %v1053
      %v1321 = vsel %vm1305, %v1288, %v1055
      %v1323 = vsel %vm1305, %v1290, %v1057
      %v1325 = vsel %vm1305, %v1292, %v1059
      %v1327 = vsel %vm1305, %v1294, %v1061
      %v1329 = vsel %vm1305, %v1296, %v1063
      %v1331 = vsel %vm1305, %v1298, %v1065
      %v1333 = vsel %vm1305, %v1300, %v1067
      %v1335 = vsel %vm1305, %v1302, %v1069
      %v1337 = vsel %vm1305, %v1304, %v1071
      %vm1338 = vcmask 523264
      %v1340 = vsel %vm1338, %v1307, %v1076
      %v1342 = vsel %vm1338, %v1309, %v1078
      %v1344 = vsel %vm1338, %v1311, %v1080
      %v1346 = vsel %vm1338, %v1313, %v1082
      %v1348 = vsel %vm1338, %v1315, %v1084
      %v1350 = vsel %vm1338, %v1317, %v1086
      %v1352 = vsel %vm1338, %v1319, %v1088
      %v1354 = vsel %vm1338, %v1321, %v1090
      %v1356 = vsel %vm1338, %v1323, %v1092
      %v1358 = vsel %vm1338, %v1325, %v1094
      %v1360 = vsel %vm1338, %v1327, %v1096
      %v1362 = vsel %vm1338, %v1329, %v1098
      %v1364 = vsel %vm1338, %v1331, %v1100
      %v1366 = vsel %vm1338, %v1333, %v1102
      %v1368 = vsel %vm1338, %v1335, %v1104
      %v1370 = vsel %vm1338, %v1337, %v1106
      %v1371 = vld [vmem:[%s2] sm:$0xf]
      %v1372 = vld [vmem:[%s2 + $0x4] sm:$0xf]
      %v1373 = vld [vmem:[%s2 + $0x8] sm:$0xf]
      %v1374 = vld [vmem:[%s2 + $0xc] sm:$0xf]
      %v1375 = vld [vmem:[%s2 + $0x10] sm:$0xf]
      %v1376 = vld [vmem:[%s2 + $0x14] sm:$0xf]
      %v1377 = vld [vmem:[%s2 + $0x18] sm:$0xf]
      %v1378 = vld [vmem:[%s2 + $0x1c] sm:$0xf]
      %v1379 = vld [vmem:[%s2 + $0x20] sm:$0xf]
      %v1389 = vunpack.c.l.b16 %v1371
      %v1390 = vunpack.c.l.b16 %v1372
      %v1391 = vunpack.c.l.b16 %v1373
      %v1392 = vunpack.c.l.b16 %v1374
      %v1393 = vunpack.c.l.b16 %v1375
      %v1394 = vunpack.c.l.b16 %v1376
      %v1395 = vunpack.c.l.b16 %v1377
      %v1396 = vunpack.c.l.b16 %v1378
      %v1397 = vunpack.c.l.b16 %v1379
      %v1398 = vpack.c.b16 %v1390, %v1389
      %v1399 = vpack.c.b16 %v1392, %v1391
      %v1400 = vpack.c.b16 %v1394, %v1393
      %v1401 = vpack.c.b16 %v1396, %v1395
      %v1402 = vpack.c.b16 %v1397, %v1397
      %vm1407 = vcmask 588800
      %v1408 = vsel %vm1407, %v1340, 0
      %v1410 = vsel %vm1407, %v1342, 0
      %v1412 = vsel %vm1407, %v1344, 0
      %v1414 = vsel %vm1407, %v1346, 0
      %v1416 = vsel %vm1407, %v1348, 0
      %v1418 = vsel %vm1407, %v1350, 0
      %v1420 = vsel %vm1407, %v1352, 0
      %v1422 = vsel %vm1407, %v1354, 0
      %v1424 = vsel %vm1407, %v1356, 0
      %v1426 = vsel %vm1407, %v1358, 0
      %v1428 = vsel %vm1407, %v1360, 0
      %v1430 = vsel %vm1407, %v1362, 0
      %v1432 = vsel %vm1407, %v1364, 0
      %v1434 = vsel %vm1407, %v1366, 0
      %v1436 = vsel %vm1407, %v1368, 0
      %v1438 = vsel %vm1407, %v1370, 0
      %vm1440 = vcmask 1043456
      %v1442 = vsel %vm1440, %v1402, 0
      %1444 = vmatprep.subr.bf16.mxu0 0
      %1445 = vmatpush1.bf16.msra.mxu0 0
      %1446 = vmatprep.subr.bf16.mxu0 0
      %1447 = vmatpush1.bf16.msra.mxu0 0
      %1448 = vmatprep.subr.bf16.mxu0 0
      %1449 = vmatpush1.bf16.msra.mxu0 0
      %1450 = vmatprep.subr.bf16.mxu0 0
      %1451 = vmatpush1.bf16.msra.mxu0 %v1442
      %1452 = vmatprep.subr.bf16.mxu0 0
      %1453 = vmatpush1.bf16.msra.mxu0 %v1401
      %1454 = vmatprep.subr.bf16.mxu0 0
      %1455 = vmatpush1.bf16.msra.mxu0 %v1400
      %1456 = vmatprep.subr.bf16.mxu0 0
      %1457 = vmatpush1.bf16.msra.mxu0 %v1399
      %1458 = vmatprep.subr.bf16.mxu0 0
      %1459 = vmatpush1.bf16.msra.mxu0 %v1398
      %1460 = vmatprep.subr.bf16.mxu0 0
      %1461 = vmatpush2.bf16.msra.mxu0 0
      %1462 = vmatprep.subr.bf16.mxu0 0
      %1463 = vmatpush2.bf16.msra.mxu0 0
      %1464 = vmatprep.subr.bf16.mxu0 0
      %1465 = vmatpush2.bf16.msra.mxu0 0
      %1466 = vmatprep.subr.bf16.mxu0 0
      %1467 = vmatpush2.bf16.msra.mxu0 0
      %1468 = vmatprep.subr.bf16.mxu0 0
      %1469 = vmatpush2.bf16.msra.mxu0 0
      %1470 = vmatprep.subr.bf16.mxu0 0
      %1471 = vmatpush2.bf16.msra.mxu0 0
      %1472 = vmatprep.subr.bf16.mxu0 0
      %1473 = vmatpush2.bf16.msra.mxu0 0
      %1474 = vmatprep.subr.bf16.mxu0 0
      %1475 = vmatpush2.bf16.msra.mxu0 0
      %1476 = vmatprep.mubr.bf16.mxu0 0
      %1477 = vmatmul.mubr.bf16.gmra.mxu0 %v1408
      %v1478 = vpop.f32.mrf.mxu0
      %v1479 = vadd.f32 0.0, %v1478
      %v1480 = vpop.f32.mrf.mxu0
      %v1481 = vpop.f32.mrf.mxu0
      %v1482 = vadd.f32 0.0, %v1481
      %v1483 = vpop.f32.mrf.mxu0
      %1484 = vmatprep.mubr.bf16.mxu0 0
      %1485 = vmatmul.mubr.bf16.gmra.mxu0 %v1410
      %v1486 = vpop.f32.mrf.mxu0
      %v1487 = vadd.f32 0.0, %v1486
      %v1488 = vpop.f32.mrf.mxu0
      %v1489 = vpop.f32.mrf.mxu0
      %v1490 = vadd.f32 0.0, %v1489
      %v1491 = vpop.f32.mrf.mxu0
      %1492 = vmatprep.mubr.bf16.mxu0 0
      %1493 = vmatmul.mubr.bf16.gmra.mxu0 %v1412
      %v1494 = vpop.f32.mrf.mxu0
      %v1495 = vadd.f32 0.0, %v1494
      %v1496 = vpop.f32.mrf.mxu0
      %v1497 = vpop.f32.mrf.mxu0
      %v1498 = vadd.f32 0.0, %v1497
      %v1499 = vpop.f32.mrf.mxu0
      %1500 = vmatprep.mubr.bf16.mxu0 0
      %1501 = vmatmul.mubr.bf16.gmra.mxu0 %v1414
      %v1502 = vpop.f32.mrf.mxu0
      %v1503 = vadd.f32 0.0, %v1502
      %v1504 = vpop.f32.mrf.mxu0
      %v1505 = vpop.f32.mrf.mxu0
      %v1506 = vadd.f32 0.0, %v1505
      %v1507 = vpop.f32.mrf.mxu0
      %1508 = vmatprep.mubr.bf16.mxu0 0
      %1509 = vmatmul.mubr.bf16.gmra.mxu0 %v1416
      %v1510 = vpop.f32.mrf.mxu0
      %v1511 = vadd.f32 0.0, %v1510
      %v1512 = vpop.f32.mrf.mxu0
      %v1513 = vpop.f32.mrf.mxu0
      %v1514 = vadd.f32 0.0, %v1513
      %v1515 = vpop.f32.mrf.mxu0
      %1516 = vmatprep.mubr.bf16.mxu0 0
      %1517 = vmatmul.mubr.bf16.gmra.mxu0 %v1418
      %v1518 = vpop.f32.mrf.mxu0
      %v1519 = vadd.f32 0.0, %v1518
      %v1520 = vpop.f32.mrf.mxu0
      %v1521 = vpop.f32.mrf.mxu0
      %v1522 = vadd.f32 0.0, %v1521
      %v1523 = vpop.f32.mrf.mxu0
      %1524 = vmatprep.mubr.bf16.mxu0 0
      %1525 = vmatmul.mubr.bf16.gmra.mxu0 %v1420
      %v1526 = vpop.f32.mrf.mxu0
      %v1527 = vadd.f32 0.0, %v1526
      %v1528 = vpop.f32.mrf.mxu0
      %v1529 = vpop.f32.mrf.mxu0
      %v1530 = vadd.f32 0.0, %v1529
      %v1531 = vpop.f32.mrf.mxu0
      %1532 = vmatprep.mubr.bf16.mxu0 0
      %1533 = vmatmul.mubr.bf16.gmra.mxu0 %v1422
      %v1534 = vpop.f32.mrf.mxu0
      %v1535 = vadd.f32 0.0, %v1534
      %v1536 = vpop.f32.mrf.mxu0
      %v1537 = vpop.f32.mrf.mxu0
      %v1538 = vadd.f32 0.0, %v1537
      %v1539 = vpop.f32.mrf.mxu0
      %1540 = vmatprep.mubr.bf16.mxu0 0
      %1541 = vmatmul.mubr.bf16.gmra.mxu0 %v1424
      %v1542 = vpop.f32.mrf.mxu0
      %v1543 = vadd.f32 0.0, %v1542
      %v1544 = vpop.f32.mrf.mxu0
      %v1545 = vpop.f32.mrf.mxu0
      %v1546 = vadd.f32 0.0, %v1545
      %v1547 = vpop.f32.mrf.mxu0
      %1548 = vmatprep.mubr.bf16.mxu0 0
      %1549 = vmatmul.mubr.bf16.gmra.mxu0 %v1426
      %v1550 = vpop.f32.mrf.mxu0
      %v1551 = vadd.f32 0.0, %v1550
      %v1552 = vpop.f32.mrf.mxu0
      %v1553 = vpop.f32.mrf.mxu0
      %v1554 = vadd.f32 0.0, %v1553
      %v1555 = vpop.f32.mrf.mxu0
      %1556 = vmatprep.mubr.bf16.mxu0 0
      %1557 = vmatmul.mubr.bf16.gmra.mxu0 %v1428
      %v1558 = vpop.f32.mrf.mxu0
      %v1559 = vadd.f32 0.0, %v1558
      %v1560 = vpop.f32.mrf.mxu0
      %v1561 = vpop.f32.mrf.mxu0
      %v1562 = vadd.f32 0.0, %v1561
      %v1563 = vpop.f32.mrf.mxu0
      %1564 = vmatprep.mubr.bf16.mxu0 0
      %1565 = vmatmul.mubr.bf16.gmra.mxu0 %v1430
      %v1566 = vpop.f32.mrf.mxu0
      %v1567 = vadd.f32 0.0, %v1566
      %v1568 = vpop.f32.mrf.mxu0
      %v1569 = vpop.f32.mrf.mxu0
      %v1570 = vadd.f32 0.0, %v1569
      %v1571 = vpop.f32.mrf.mxu0
      %1572 = vmatprep.mubr.bf16.mxu0 0
      %1573 = vmatmul.mubr.bf16.gmra.mxu0 %v1432
      %v1574 = vpop.f32.mrf.mxu0
      %v1575 = vadd.f32 0.0, %v1574
      %v1576 = vpop.f32.mrf.mxu0
      %v1577 = vpop.f32.mrf.mxu0
      %v1578 = vadd.f32 0.0, %v1577
      %v1579 = vpop.f32.mrf.mxu0
      %1580 = vmatprep.mubr.bf16.mxu0 0
      %1581 = vmatmul.mubr.bf16.gmra.mxu0 %v1434
      %v1582 = vpop.f32.mrf.mxu0
      %v1583 = vadd.f32 0.0, %v1582
      %v1584 = vpop.f32.mrf.mxu0
      %v1585 = vpop.f32.mrf.mxu0
      %v1586 = vadd.f32 0.0, %v1585
      %v1587 = vpop.f32.mrf.mxu0
      %1588 = vmatprep.mubr.bf16.mxu0 0
      %1589 = vmatmul.mubr.bf16.gmra.mxu0 %v1436
      %v1590 = vpop.f32.mrf.mxu0
      %v1591 = vadd.f32 0.0, %v1590
      %v1592 = vpop.f32.mrf.mxu0
      %v1593 = vpop.f32.mrf.mxu0
      %v1594 = vadd.f32 0.0, %v1593
      %v1595 = vpop.f32.mrf.mxu0
      %1596 = vmatprep.mubr.bf16.mxu0 0
      %1597 = vmatmul.mubr.bf16.gmra.mxu0 %v1438
      %v1598 = vpop.f32.mrf.mxu0
      %v1599 = vadd.f32 0.0, %v1598
      %v1600 = vpop.f32.mrf.mxu0
      %v1601 = vpop.f32.mrf.mxu0
      %v1602 = vadd.f32 0.0, %v1601
      %v1603 = vpop.f32.mrf.mxu0
      %1604 = vdwg.mxu0
      %v1605 = vld [vmem:[%s4] sm:$0x1]
      %v1607 = vlaneseq
      %v1608 = vshrl.u32 %v1607, 7
      %v1609 = vsub.s32 0, %v1608
      %v1610 = vrot.slane %v1605, %v1609
      %v1612 = vmul.f32 %v1479, %v1610
      %v1613 = vmul.f32 %v1482, %v1610
      %v1614 = vmul.f32 %v1487, %v1610
      %v1615 = vmul.f32 %v1490, %v1610
      %v1616 = vmul.f32 %v1495, %v1610
      %v1617 = vmul.f32 %v1498, %v1610
      %v1618 = vmul.f32 %v1503, %v1610
      %v1619 = vmul.f32 %v1506, %v1610
      %v1620 = vmul.f32 %v1511, %v1610
      %v1621 = vmul.f32 %v1514, %v1610
      %v1622 = vmul.f32 %v1519, %v1610
      %v1623 = vmul.f32 %v1522, %v1610
      %v1624 = vmul.f32 %v1527, %v1610
      %v1625 = vmul.f32 %v1530, %v1610
      %v1626 = vmul.f32 %v1535, %v1610
      %v1627 = vmul.f32 %v1538, %v1610
      %v1628 = vmul.f32 %v1543, %v1610
      %v1629 = vmul.f32 %v1546, %v1610
      %v1630 = vmul.f32 %v1551, %v1610
      %v1631 = vmul.f32 %v1554, %v1610
      %v1632 = vmul.f32 %v1559, %v1610
      %v1633 = vmul.f32 %v1562, %v1610
      %v1634 = vmul.f32 %v1567, %v1610
      %v1635 = vmul.f32 %v1570, %v1610
      %v1636 = vmul.f32 %v1575, %v1610
      %v1637 = vmul.f32 %v1578, %v1610
      %v1638 = vmul.f32 %v1583, %v1610
      %v1639 = vmul.f32 %v1586, %v1610
      %v1640 = vmul.f32 %v1591, %v1610
      %v1641 = vmul.f32 %v1594, %v1610
      %v1642 = vmul.f32 %v1599, %v1610
      %v1643 = vmul.f32 %v1602, %v1610
      %v1644 = vld [vmem:[%s5] sm:$0x1]
      %v1646 = vlaneseq
      %v1647 = vshrl.u32 %v1646, 7
      %v1648 = vsub.s32 0, %v1647
      %v1649 = vrot.slane %v1644, %v1648
      %v1651 = vadd.f32 %v1612, %v1649
      %v1652 = vadd.f32 %v1613, %v1649
      %v1653 = vadd.f32 %v1614, %v1649
      %v1654 = vadd.f32 %v1615, %v1649
      %v1655 = vadd.f32 %v1616, %v1649
      %v1656 = vadd.f32 %v1617, %v1649
      %v1657 = vadd.f32 %v1618, %v1649
      %v1658 = vadd.f32 %v1619, %v1649
      %v1659 = vadd.f32 %v1620, %v1649
      %v1660 = vadd.f32 %v1621, %v1649
      %v1661 = vadd.f32 %v1622, %v1649
      %v1662 = vadd.f32 %v1623, %v1649
      %v1663 = vadd.f32 %v1624, %v1649
      %v1664 = vadd.f32 %v1625, %v1649
      %v1665 = vadd.f32 %v1626, %v1649
      %v1666 = vadd.f32 %v1627, %v1649
      %v1667 = vadd.f32 %v1628, %v1649
      %v1668 = vadd.f32 %v1629, %v1649
      %v1669 = vadd.f32 %v1630, %v1649
      %v1670 = vadd.f32 %v1631, %v1649
      %v1671 = vadd.f32 %v1632, %v1649
      %v1672 = vadd.f32 %v1633, %v1649
      %v1673 = vadd.f32 %v1634, %v1649
      %v1674 = vadd.f32 %v1635, %v1649
      %v1675 = vadd.f32 %v1636, %v1649
      %v1676 = vadd.f32 %v1637, %v1649
      %v1677 = vadd.f32 %v1638, %v1649
      %v1678 = vadd.f32 %v1639, %v1649
      %v1679 = vadd.f32 %v1640, %v1649
      %v1680 = vadd.f32 %v1641, %v1649
      %v1681 = vadd.f32 %v1642, %v1649
      %v1682 = vadd.f32 %v1643, %v1649
      %v1683 = vld [vmem:[%s374] sm:$0xf]
      %v1684 = vld [vmem:[%s374 + $0x4] sm:$0xf]
      %v1685 = vld [vmem:[%s374 + $0x8] sm:$0xf]
      %v1686 = vld [vmem:[%s374 + $0xc] sm:$0xf]
      %v1687 = vld [vmem:[%s374 + $0x10] sm:$0xf]
      %v1688 = vld [vmem:[%s374 + $0x14] sm:$0xf]
      %v1689 = vld [vmem:[%s374 + $0x18] sm:$0xf]
      %v1690 = vld [vmem:[%s374 + $0x1c] sm:$0xf]
      %v1691 = vld [vmem:[%s374 + $0x20] sm:$0xf]
      %v1692 = vld [vmem:[%s374 + $0x24] sm:$0xf]
      %v1693 = vld [vmem:[%s374 + $0x28] sm:$0xf]
      %v1694 = vld [vmem:[%s374 + $0x2c] sm:$0xf]
      %v1695 = vld [vmem:[%s374 + $0x30] sm:$0xf]
      %v1696 = vld [vmem:[%s374 + $0x34] sm:$0xf]
      %v1697 = vld [vmem:[%s374 + $0x38] sm:$0xf]
      %v1698 = vld [vmem:[%s374 + $0x3c] sm:$0xf]
      %v1699 = vld [vmem:[%s374 + $0x40] sm:$0xf]
      %v1700 = vld [vmem:[%s374 + $0x44] sm:$0xf]
      %v1701 = vld [vmem:[%s374 + $0x48] sm:$0xf]
      %v1702 = vld [vmem:[%s374 + $0x4c] sm:$0xf]
      %v1703 = vld [vmem:[%s374 + $0x50] sm:$0xf]
      %v1704 = vld [vmem:[%s374 + $0x54] sm:$0xf]
      %v1705 = vld [vmem:[%s374 + $0x58] sm:$0xf]
      %v1706 = vld [vmem:[%s374 + $0x5c] sm:$0xf]
      %v1707 = vld [vmem:[%s374 + $0x60] sm:$0xf]
      %v1708 = vld [vmem:[%s374 + $0x64] sm:$0xf]
      %v1709 = vld [vmem:[%s374 + $0x68] sm:$0xf]
      %v1710 = vld [vmem:[%s374 + $0x6c] sm:$0xf]
      %v1711 = vld [vmem:[%s374 + $0x70] sm:$0xf]
      %v1712 = vld [vmem:[%s374 + $0x74] sm:$0xf]
      %v1713 = vld [vmem:[%s374 + $0x78] sm:$0xf]
      %v1714 = vld [vmem:[%s374 + $0x7c] sm:$0xf]
      %v1715 = vld [vmem:[%s3] sm:$0xf]
      %v1748 = vunpack.c.l.b16 %v1683
      %v1749 = vunpack.c.l.b16 %v1684
      %v1750 = vunpack.c.l.b16 %v1685
      %v1751 = vunpack.c.l.b16 %v1686
      %v1752 = vunpack.c.l.b16 %v1687
      %v1753 = vunpack.c.l.b16 %v1688
      %v1754 = vunpack.c.l.b16 %v1689
      %v1755 = vunpack.c.l.b16 %v1690
      %v1756 = vunpack.c.l.b16 %v1691
      %v1757 = vunpack.c.l.b16 %v1692
      %v1758 = vunpack.c.l.b16 %v1693
      %v1759 = vunpack.c.l.b16 %v1694
      %v1760 = vunpack.c.l.b16 %v1695
      %v1761 = vunpack.c.l.b16 %v1696
      %v1762 = vunpack.c.l.b16 %v1697
      %v1763 = vunpack.c.l.b16 %v1698
      %v1764 = vunpack.c.l.b16 %v1699
      %v1765 = vunpack.c.l.b16 %v1700
      %v1766 = vunpack.c.l.b16 %v1701
      %v1767 = vunpack.c.l.b16 %v1702
      %v1768 = vunpack.c.l.b16 %v1703
      %v1769 = vunpack.c.l.b16 %v1704
      %v1770 = vunpack.c.l.b16 %v1705
      %v1771 = vunpack.c.l.b16 %v1706
      %v1772 = vunpack.c.l.b16 %v1707
      %v1773 = vunpack.c.l.b16 %v1708
      %v1774 = vunpack.c.l.b16 %v1709
      %v1775 = vunpack.c.l.b16 %v1710
      %v1776 = vunpack.c.l.b16 %v1711
      %v1777 = vunpack.c.l.b16 %v1712
      %v1778 = vunpack.c.l.b16 %v1713
      %v1779 = vunpack.c.l.b16 %v1714
      %v1780 = vpack.c.b16 %v1749, %v1748
      %v1781 = vpack.c.b16 %v1751, %v1750
      %v1782 = vpack.c.b16 %v1753, %v1752
      %v1783 = vpack.c.b16 %v1755, %v1754
      %v1784 = vpack.c.b16 %v1757, %v1756
      %v1785 = vpack.c.b16 %v1759, %v1758
      %v1786 = vpack.c.b16 %v1761, %v1760
      %v1787 = vpack.c.b16 %v1763, %v1762
      %v1788 = vpack.c.b16 %v1765, %v1764
      %v1789 = vpack.c.b16 %v1767, %v1766
      %v1790 = vpack.c.b16 %v1769, %v1768
      %v1791 = vpack.c.b16 %v1771, %v1770
      %v1792 = vpack.c.b16 %v1773, %v1772
      %v1793 = vpack.c.b16 %v1775, %v1774
      %v1794 = vpack.c.b16 %v1777, %v1776
      %v1795 = vpack.c.b16 %v1779, %v1778
      %v1797 = vsel %vm1107, %v1780, 0
      %v1800 = vsel %vm1107, %v1781, 0
      %v1803 = vsel %vm1107, %v1782, 0
      %v1806 = vsel %vm1107, %v1783, 0
      %v1809 = vsel %vm1107, %v1784, 0
      %v1812 = vsel %vm1107, %v1785, 0
      %v1815 = vsel %vm1107, %v1786, 0
      %v1818 = vsel %vm1107, %v1787, 0
      %v1821 = vsel %vm1107, %v1788, 0
      %v1824 = vsel %vm1107, %v1789, 0
      %v1827 = vsel %vm1107, %v1790, 0
      %v1830 = vsel %vm1107, %v1791, 0
      %v1833 = vsel %vm1107, %v1792, 0
      %v1836 = vsel %vm1107, %v1793, 0
      %v1839 = vsel %vm1107, %v1794, 0
      %v1842 = vsel %vm1107, %v1795, 0
      %v1845 = vsel %vm1440, %v1715, 0
      %1847 = vmatprep.subr.bf16.mxu0 0
      %1848 = vmatpush1.bf16.msra.mxu0 0
      %1849 = vmatprep.subr.bf16.mxu0 0
      %1850 = vmatpush1.bf16.msra.mxu0 0
      %1851 = vmatprep.subr.bf16.mxu0 0
      %1852 = vmatpush1.bf16.msra.mxu0 0
      %1853 = vmatprep.subr.bf16.mxu0 0
      %1854 = vmatpush1.bf16.msra.mxu0 0
      %1855 = vmatprep.subr.bf16.mxu0 0
      %1856 = vmatpush1.bf16.msra.mxu0 0
      %1857 = vmatprep.subr.bf16.mxu0 0
      %1858 = vmatpush1.bf16.msra.mxu0 0
      %1859 = vmatprep.subr.bf16.mxu0 0
      %1860 = vmatpush1.bf16.msra.mxu0 0
      %1861 = vmatprep.subr.bf16.mxu0 0
      %1862 = vmatpush1.bf16.msra.mxu0 %v1845
      %1863 = vmatprep.subr.bf16.mxu0 0
      %1864 = vmatpush2.bf16.msra.mxu0 0
      %1865 = vmatprep.subr.bf16.mxu0 0
      %1866 = vmatpush2.bf16.msra.mxu0 0
      %1867 = vmatprep.subr.bf16.mxu0 0
      %1868 = vmatpush2.bf16.msra.mxu0 0
      %1869 = vmatprep.subr.bf16.mxu0 0
      %1870 = vmatpush2.bf16.msra.mxu0 0
      %1871 = vmatprep.subr.bf16.mxu0 0
      %1872 = vmatpush2.bf16.msra.mxu0 0
      %1873 = vmatprep.subr.bf16.mxu0 0
      %1874 = vmatpush2.bf16.msra.mxu0 0
      %1875 = vmatprep.subr.bf16.mxu0 0
      %1876 = vmatpush2.bf16.msra.mxu0 0
      %1877 = vmatprep.subr.bf16.mxu0 0
      %1878 = vmatpush2.bf16.msra.mxu0 0
      %1879 = vmatprep.mubr.bf16.mxu0 0
      %1880 = vmatmul.mubr.bf16.gmra.mxu0 %v1797
      %v1881 = vpop.f32.mrf.mxu0
      %v1882 = vadd.f32 0.0, %v1881
      %v1883 = vpop.f32.mrf.mxu0
      %v1884 = vpop.f32.mrf.mxu0
      %v1885 = vadd.f32 0.0, %v1884
      %v1886 = vpop.f32.mrf.mxu0
      %1887 = vmatprep.mubr.bf16.mxu0 0
      %1888 = vmatmul.mubr.bf16.gmra.mxu0 %v1800
      %v1889 = vpop.f32.mrf.mxu0
      %v1890 = vadd.f32 0.0, %v1889
      %v1891 = vpop.f32.mrf.mxu0
      %v1892 = vpop.f32.mrf.mxu0
      %v1893 = vadd.f32 0.0, %v1892
      %v1894 = vpop.f32.mrf.mxu0
      %1895 = vmatprep.mubr.bf16.mxu0 0
      %1896 = vmatmul.mubr.bf16.gmra.mxu0 %v1803
      %v1897 = vpop.f32.mrf.mxu0
      %v1898 = vadd.f32 0.0, %v1897
      %v1899 = vpop.f32.mrf.mxu0
      %v1900 = vpop.f32.mrf.mxu0
      %v1901 = vadd.f32 0.0, %v1900
      %v1902 = vpop.f32.mrf.mxu0
      %1903 = vmatprep.mubr.bf16.mxu0 0
      %1904 = vmatmul.mubr.bf16.gmra.mxu0 %v1806
      %v1905 = vpop.f32.mrf.mxu0
      %v1906 = vadd.f32 0.0, %v1905
      %v1907 = vpop.f32.mrf.mxu0
      %v1908 = vpop.f32.mrf.mxu0
      %v1909 = vadd.f32 0.0, %v1908
      %v1910 = vpop.f32.mrf.mxu0
      %1911 = vmatprep.mubr.bf16.mxu0 0
      %1912 = vmatmul.mubr.bf16.gmra.mxu0 %v1809
      %v1913 = vpop.f32.mrf.mxu0
      %v1914 = vadd.f32 0.0, %v1913
      %v1915 = vpop.f32.mrf.mxu0
      %v1916 = vpop.f32.mrf.mxu0
      %v1917 = vadd.f32 0.0, %v1916
      %v1918 = vpop.f32.mrf.mxu0
      %1919 = vmatprep.mubr.bf16.mxu0 0
      %1920 = vmatmul.mubr.bf16.gmra.mxu0 %v1812
      %v1921 = vpop.f32.mrf.mxu0
      %v1922 = vadd.f32 0.0, %v1921
      %v1923 = vpop.f32.mrf.mxu0
      %v1924 = vpop.f32.mrf.mxu0
      %v1925 = vadd.f32 0.0, %v1924
      %v1926 = vpop.f32.mrf.mxu0
      %1927 = vmatprep.mubr.bf16.mxu0 0
      %1928 = vmatmul.mubr.bf16.gmra.mxu0 %v1815
      %v1929 = vpop.f32.mrf.mxu0
      %v1930 = vadd.f32 0.0, %v1929
      %v1931 = vpop.f32.mrf.mxu0
      %v1932 = vpop.f32.mrf.mxu0
      %v1933 = vadd.f32 0.0, %v1932
      %v1934 = vpop.f32.mrf.mxu0
      %1935 = vmatprep.mubr.bf16.mxu0 0
      %1936 = vmatmul.mubr.bf16.gmra.mxu0 %v1818
      %v1937 = vpop.f32.mrf.mxu0
      %v1938 = vadd.f32 0.0, %v1937
      %v1939 = vpop.f32.mrf.mxu0
      %v1940 = vpop.f32.mrf.mxu0
      %v1941 = vadd.f32 0.0, %v1940
      %v1942 = vpop.f32.mrf.mxu0
      %1943 = vmatprep.mubr.bf16.mxu0 0
      %1944 = vmatmul.mubr.bf16.gmra.mxu0 %v1821
      %v1945 = vpop.f32.mrf.mxu0
      %v1946 = vadd.f32 0.0, %v1945
      %v1947 = vpop.f32.mrf.mxu0
      %v1948 = vpop.f32.mrf.mxu0
      %v1949 = vadd.f32 0.0, %v1948
      %v1950 = vpop.f32.mrf.mxu0
      %1951 = vmatprep.mubr.bf16.mxu0 0
      %1952 = vmatmul.mubr.bf16.gmra.mxu0 %v1824
      %v1953 = vpop.f32.mrf.mxu0
      %v1954 = vadd.f32 0.0, %v1953
      %v1955 = vpop.f32.mrf.mxu0
      %v1956 = vpop.f32.mrf.mxu0
      %v1957 = vadd.f32 0.0, %v1956
      %v1958 = vpop.f32.mrf.mxu0
      %1959 = vmatprep.mubr.bf16.mxu0 0
      %1960 = vmatmul.mubr.bf16.gmra.mxu0 %v1827
      %v1961 = vpop.f32.mrf.mxu0
      %v1962 = vadd.f32 0.0, %v1961
      %v1963 = vpop.f32.mrf.mxu0
      %v1964 = vpop.f32.mrf.mxu0
      %v1965 = vadd.f32 0.0, %v1964
      %v1966 = vpop.f32.mrf.mxu0
      %1967 = vmatprep.mubr.bf16.mxu0 0
      %1968 = vmatmul.mubr.bf16.gmra.mxu0 %v1830
      %v1969 = vpop.f32.mrf.mxu0
      %v1970 = vadd.f32 0.0, %v1969
      %v1971 = vpop.f32.mrf.mxu0
      %v1972 = vpop.f32.mrf.mxu0
      %v1973 = vadd.f32 0.0, %v1972
      %v1974 = vpop.f32.mrf.mxu0
      %1975 = vmatprep.mubr.bf16.mxu0 0
      %1976 = vmatmul.mubr.bf16.gmra.mxu0 %v1833
      %v1977 = vpop.f32.mrf.mxu0
      %v1978 = vadd.f32 0.0, %v1977
      %v1979 = vpop.f32.mrf.mxu0
      %v1980 = vpop.f32.mrf.mxu0
      %v1981 = vadd.f32 0.0, %v1980
      %v1982 = vpop.f32.mrf.mxu0
      %1983 = vmatprep.mubr.bf16.mxu0 0
      %1984 = vmatmul.mubr.bf16.gmra.mxu0 %v1836
      %v1985 = vpop.f32.mrf.mxu0
      %v1986 = vadd.f32 0.0, %v1985
      %v1987 = vpop.f32.mrf.mxu0
      %v1988 = vpop.f32.mrf.mxu0
      %v1989 = vadd.f32 0.0, %v1988
      %v1990 = vpop.f32.mrf.mxu0
      %1991 = vmatprep.mubr.bf16.mxu0 0
      %1992 = vmatmul.mubr.bf16.gmra.mxu0 %v1839
      %v1993 = vpop.f32.mrf.mxu0
      %v1994 = vadd.f32 0.0, %v1993
      %v1995 = vpop.f32.mrf.mxu0
      %v1996 = vpop.f32.mrf.mxu0
      %v1997 = vadd.f32 0.0, %v1996
      %v1998 = vpop.f32.mrf.mxu0
      %1999 = vmatprep.mubr.bf16.mxu0 0
      %2000 = vmatmul.mubr.bf16.gmra.mxu0 %v1842
      %v2001 = vpop.f32.mrf.mxu0
      %v2002 = vadd.f32 0.0, %v2001
      %v2003 = vpop.f32.mrf.mxu0
      %v2004 = vpop.f32.mrf.mxu0
      %v2005 = vadd.f32 0.0, %v2004
      %v2006 = vpop.f32.mrf.mxu0
      %2007 = vdwg.mxu0
      %v2008 = vld [vmem:[%s6] sm:$0x1]
      %v2010 = vlaneseq
      %v2011 = vshrl.u32 %v2010, 7
      %v2012 = vsub.s32 0, %v2011
      %v2013 = vrot.slane %v2008, %v2012
      %v2015 = vmul.f32 %v1882, %v2013
      %v2016 = vmul.f32 %v1885, %v2013
      %v2017 = vmul.f32 %v1890, %v2013
      %v2018 = vmul.f32 %v1893, %v2013
      %v2019 = vmul.f32 %v1898, %v2013
      %v2020 = vmul.f32 %v1901, %v2013
      %v2021 = vmul.f32 %v1906, %v2013
      %v2022 = vmul.f32 %v1909, %v2013
      %v2023 = vmul.f32 %v1914, %v2013
      %v2024 = vmul.f32 %v1917, %v2013
      %v2025 = vmul.f32 %v1922, %v2013
      %v2026 = vmul.f32 %v1925, %v2013
      %v2027 = vmul.f32 %v1930, %v2013
      %v2028 = vmul.f32 %v1933, %v2013
      %v2029 = vmul.f32 %v1938, %v2013
      %v2030 = vmul.f32 %v1941, %v2013
      %v2031 = vmul.f32 %v1946, %v2013
      %v2032 = vmul.f32 %v1949, %v2013
      %v2033 = vmul.f32 %v1954, %v2013
      %v2034 = vmul.f32 %v1957, %v2013
      %v2035 = vmul.f32 %v1962, %v2013
      %v2036 = vmul.f32 %v1965, %v2013
      %v2037 = vmul.f32 %v1970, %v2013
      %v2038 = vmul.f32 %v1973, %v2013
      %v2039 = vmul.f32 %v1978, %v2013
      %v2040 = vmul.f32 %v1981, %v2013
      %v2041 = vmul.f32 %v1986, %v2013
      %v2042 = vmul.f32 %v1989, %v2013
      %v2043 = vmul.f32 %v1994, %v2013
      %v2044 = vmul.f32 %v1997, %v2013
      %v2045 = vmul.f32 %v2002, %v2013
      %v2046 = vmul.f32 %v2005, %v2013
      %v2047 = vld [vmem:[%s7] sm:$0x1]
      %v2049 = vlaneseq
      %v2050 = vshrl.u32 %v2049, 7
      %v2051 = vsub.s32 0, %v2050
      %v2052 = vrot.slane %v2047, %v2051
      %v2054 = vadd.f32 %v2015, %v2052
      %v2055 = vadd.f32 %v2016, %v2052
      %v2056 = vadd.f32 %v2017, %v2052
      %v2057 = vadd.f32 %v2018, %v2052
      %v2058 = vadd.f32 %v2019, %v2052
      %v2059 = vadd.f32 %v2020, %v2052
      %v2060 = vadd.f32 %v2021, %v2052
      %v2061 = vadd.f32 %v2022, %v2052
      %v2062 = vadd.f32 %v2023, %v2052
      %v2063 = vadd.f32 %v2024, %v2052
      %v2064 = vadd.f32 %v2025, %v2052
      %v2065 = vadd.f32 %v2026, %v2052
      %v2066 = vadd.f32 %v2027, %v2052
      %v2067 = vadd.f32 %v2028, %v2052
      %v2068 = vadd.f32 %v2029, %v2052
      %v2069 = vadd.f32 %v2030, %v2052
      %v2070 = vadd.f32 %v2031, %v2052
      %v2071 = vadd.f32 %v2032, %v2052
      %v2072 = vadd.f32 %v2033, %v2052
      %v2073 = vadd.f32 %v2034, %v2052
      %v2074 = vadd.f32 %v2035, %v2052
      %v2075 = vadd.f32 %v2036, %v2052
      %v2076 = vadd.f32 %v2037, %v2052
      %v2077 = vadd.f32 %v2038, %v2052
      %v2078 = vadd.f32 %v2039, %v2052
      %v2079 = vadd.f32 %v2040, %v2052
      %v2080 = vadd.f32 %v2041, %v2052
      %v2081 = vadd.f32 %v2042, %v2052
      %v2082 = vadd.f32 %v2043, %v2052
      %v2083 = vadd.f32 %v2044, %v2052
      %v2084 = vadd.f32 %v2045, %v2052
      %v2085 = vadd.f32 %v2046, %v2052
      %v2086 = vsel %vm1140, %v1651, 0.0
      %v2087 = vsel %vm1140, %v1652, 0.0
      %v2088 = vadd.f32 %v2086, %v2087
      %v2089 = vsel %vm1140, %v1653, 0.0
      %v2090 = vadd.f32 %v2088, %v2089
      %v2091 = vsel %vm1140, %v1654, 0.0
      %v2092 = vadd.f32 %v2090, %v2091
      %v2093 = vsel %vm1140, %v1655, 0.0
      %v2094 = vadd.f32 %v2092, %v2093
      %v2095 = vsel %vm1140, %v1656, 0.0
      %v2096 = vadd.f32 %v2094, %v2095
      %v2097 = vsel %vm1140, %v1657, 0.0
      %v2098 = vadd.f32 %v2096, %v2097
      %v2099 = vsel %vm1140, %v1658, 0.0
      %v2100 = vadd.f32 %v2098, %v2099
      %v2101 = vsel %vm1140, %v1659, 0.0
      %v2102 = vadd.f32 %v2100, %v2101
      %v2103 = vsel %vm1140, %v1660, 0.0
      %v2104 = vadd.f32 %v2102, %v2103
      %v2105 = vsel %vm1140, %v1661, 0.0
      %v2106 = vadd.f32 %v2104, %v2105
      %v2107 = vsel %vm1140, %v1662, 0.0
      %v2108 = vadd.f32 %v2106, %v2107
      %v2109 = vsel %vm1140, %v1663, 0.0
      %v2110 = vadd.f32 %v2108, %v2109
      %v2111 = vsel %vm1140, %v1664, 0.0
      %v2112 = vadd.f32 %v2110, %v2111
      %v2113 = vsel %vm1140, %v1665, 0.0
      %v2114 = vadd.f32 %v2112, %v2113
      %v2115 = vsel %vm1140, %v1666, 0.0
      %v2116 = vadd.f32 %v2114, %v2115
      %v2117 = vsel %vm1140, %v1667, 0.0
      %v2118 = vadd.f32 %v2116, %v2117
      %v2119 = vsel %vm1140, %v1668, 0.0
      %v2120 = vadd.f32 %v2118, %v2119
      %v2121 = vsel %vm1140, %v1669, 0.0
      %v2122 = vadd.f32 %v2120, %v2121
      %v2123 = vsel %vm1140, %v1670, 0.0
      %v2124 = vadd.f32 %v2122, %v2123
      %v2125 = vsel %vm1140, %v1671, 0.0
      %v2126 = vadd.f32 %v2124, %v2125
      %v2127 = vsel %vm1140, %v1672, 0.0
      %v2128 = vadd.f32 %v2126, %v2127
      %v2129 = vsel %vm1140, %v1673, 0.0
      %v2130 = vadd.f32 %v2128, %v2129
      %v2131 = vsel %vm1140, %v1674, 0.0
      %v2132 = vadd.f32 %v2130, %v2131
      %v2133 = vsel %vm1140, %v1675, 0.0
      %v2134 = vadd.f32 %v2132, %v2133
      %v2135 = vsel %vm1140, %v1676, 0.0
      %v2136 = vadd.f32 %v2134, %v2135
      %v2137 = vsel %vm1140, %v1677, 0.0
      %v2138 = vadd.f32 %v2136, %v2137
      %v2139 = vsel %vm1140, %v1678, 0.0
      %v2140 = vadd.f32 %v2138, %v2139
      %v2141 = vsel %vm1140, %v1679, 0.0
      %v2142 = vadd.f32 %v2140, %v2141
      %v2143 = vsel %vm1140, %v1680, 0.0
      %v2144 = vadd.f32 %v2142, %v2143
      %v2145 = vsel %vm1140, %v1681, 0.0
      %v2146 = vadd.f32 %v2144, %v2145
      %v2147 = vsel %vm1140, %v1682, 0.0
      %v2148 = vadd.f32 %v2146, %v2147
      %v2149 = vrot.slane %v2148, 4
      %v2150 = vadd.f32 %v2148, %v2149
      %v2151 = vrot.slane %v2150, 2
      %v2152 = vadd.f32 %v2150, %v2151
      %v2153 = vrot.slane %v2152, 1
      %v2154 = vadd.f32 %v2152, %v2153
      %v2155 = vrcp.pop 256.0
      %v2156 = vmul.f32 %v2154, %v2155
      %v2157 = vsel %vm1140, %v2054, 0.0
      %v2158 = vsel %vm1140, %v2055, 0.0
      %v2159 = vadd.f32 %v2157, %v2158
      %v2160 = vsel %vm1140, %v2056, 0.0
      %v2161 = vadd.f32 %v2159, %v2160
      %v2162 = vsel %vm1140, %v2057, 0.0
      %v2163 = vadd.f32 %v2161, %v2162
      %v2164 = vsel %vm1140, %v2058, 0.0
      %v2165 = vadd.f32 %v2163, %v2164
      %v2166 = vsel %vm1140, %v2059, 0.0
      %v2167 = vadd.f32 %v2165, %v2166
      %v2168 = vsel %vm1140, %v2060, 0.0
      %v2169 = vadd.f32 %v2167, %v2168
      %v2170 = vsel %vm1140, %v2061, 0.0
      %v2171 = vadd.f32 %v2169, %v2170
      %v2172 = vsel %vm1140, %v2062, 0.0
      %v2173 = vadd.f32 %v2171, %v2172
      %v2174 = vsel %vm1140, %v2063, 0.0
      %v2175 = vadd.f32 %v2173, %v2174
      %v2176 = vsel %vm1140, %v2064, 0.0
      %v2177 = vadd.f32 %v2175, %v2176
      %v2178 = vsel %vm1140, %v2065, 0.0
      %v2179 = vadd.f32 %v2177, %v2178
      %v2180 = vsel %vm1140, %v2066, 0.0
      %v2181 = vadd.f32 %v2179, %v2180
      %v2182 = vsel %vm1140, %v2067, 0.0
      %v2183 = vadd.f32 %v2181, %v2182
      %v2184 = vsel %vm1140, %v2068, 0.0
      %v2185 = vadd.f32 %v2183, %v2184
      %v2186 = vsel %vm1140, %v2069, 0.0
      %v2187 = vadd.f32 %v2185, %v2186
      %v2188 = vsel %vm1140, %v2070, 0.0
      %v2189 = vadd.f32 %v2187, %v2188
      %v2190 = vsel %vm1140, %v2071, 0.0
      %v2191 = vadd.f32 %v2189, %v2190
      %v2192 = vsel %vm1140, %v2072, 0.0
      %v2193 = vadd.f32 %v2191, %v2192
      %v2194 = vsel %vm1140, %v2073, 0.0
      %v2195 = vadd.f32 %v2193, %v2194
      %v2196 = vsel %vm1140, %v2074, 0.0
      %v2197 = vadd.f32 %v2195, %v2196
      %v2198 = vsel %vm1140, %v2075, 0.0
      %v2199 = vadd.f32 %v2197, %v2198
      %v2200 = vsel %vm1140, %v2076, 0.0
      %v2201 = vadd.f32 %v2199, %v2200
      %v2202 = vsel %vm1140, %v2077, 0.0
      %v2203 = vadd.f32 %v2201, %v2202
      %v2204 = vsel %vm1140, %v2078, 0.0
      %v2205 = vadd.f32 %v2203, %v2204
      %v2206 = vsel %vm1140, %v2079, 0.0
      %v2207 = vadd.f32 %v2205, %v2206
      %v2208 = vsel %vm1140, %v2080, 0.0
      %v2209 = vadd.f32 %v2207, %v2208
      %v2210 = vsel %vm1140, %v2081, 0.0
      %v2211 = vadd.f32 %v2209, %v2210
      %v2212 = vsel %vm1140, %v2082, 0.0
      %v2213 = vadd.f32 %v2211, %v2212
      %v2214 = vsel %vm1140, %v2083, 0.0
      %v2215 = vadd.f32 %v2213, %v2214
      %v2216 = vsel %vm1140, %v2084, 0.0
      %v2217 = vadd.f32 %v2215, %v2216
      %v2218 = vsel %vm1140, %v2085, 0.0
      %v2219 = vadd.f32 %v2217, %v2218
      %v2220 = vrot.slane %v2219, 4
      %v2221 = vadd.f32 %v2219, %v2220
      %v2222 = vrot.slane %v2221, 2
      %v2223 = vadd.f32 %v2221, %v2222
      %v2224 = vrot.slane %v2223, 1
      %v2225 = vadd.f32 %v2223, %v2224
      %v2226 = vmul.f32 %v2225, %v2155
      %v2227 = vmax.f32 %v2156, %v2226
      %v2228 = vsub.f32 %v2156, %v2227
      %v2229 = vmul.f32 %v2228, 1.442695
      %v2230 = vpow.pop %v2229
      %v2231 = vsub.f32 %v2226, %v2227
      %v2232 = vmul.f32 %v2231, 1.442695
      %v2233 = vpow.pop %v2232
      %v2234 = vadd.f32 %v2230, %v2233
      %v2235 = vrcp.pop %v2234
      %v2236 = vmul.f32 1.0, %v2235
      %v2237 = vmul.f32 %v2233, %v2236
      %v2238 = vmul.f32 %v2054, %v2237
      %v2239 = vmul.f32 %v2055, %v2237
      %v2240 = vmul.f32 %v2056, %v2237
      %v2241 = vmul.f32 %v2057, %v2237
      %v2242 = vmul.f32 %v2058, %v2237
      %v2243 = vmul.f32 %v2059, %v2237
      %v2244 = vmul.f32 %v2060, %v2237
      %v2245 = vmul.f32 %v2061, %v2237
      %v2246 = vmul.f32 %v2062, %v2237
      %v2247 = vmul.f32 %v2063, %v2237
      %v2248 = vmul.f32 %v2064, %v2237
      %v2249 = vmul.f32 %v2065, %v2237
      %v2250 = vmul.f32 %v2066, %v2237
      %v2251 = vmul.f32 %v2067, %v2237
      %v2252 = vmul.f32 %v2068, %v2237
      %v2253 = vmul.f32 %v2069, %v2237
      %v2254 = vmul.f32 %v2070, %v2237
      %v2255 = vmul.f32 %v2071, %v2237
      %v2256 = vmul.f32 %v2072, %v2237
      %v2257 = vmul.f32 %v2073, %v2237
      %v2258 = vmul.f32 %v2074, %v2237
      %v2259 = vmul.f32 %v2075, %v2237
      %v2260 = vmul.f32 %v2076, %v2237
      %v2261 = vmul.f32 %v2077, %v2237
      %v2262 = vmul.f32 %v2078, %v2237
      %v2263 = vmul.f32 %v2079, %v2237
      %v2264 = vmul.f32 %v2080, %v2237
      %v2265 = vmul.f32 %v2081, %v2237
      %v2266 = vmul.f32 %v2082, %v2237
      %v2267 = vmul.f32 %v2083, %v2237
      %v2268 = vmul.f32 %v2084, %v2237
      %v2269 = vmul.f32 %v2085, %v2237
      %v2270 = vmul.f32 %v2230, %v2236
      %v2271 = vmul.f32 %v1651, %v2270
      %v2272 = vmul.f32 %v1652, %v2270
      %v2273 = vmul.f32 %v1653, %v2270
      %v2274 = vmul.f32 %v1654, %v2270
      %v2275 = vmul.f32 %v1655, %v2270
      %v2276 = vmul.f32 %v1656, %v2270
      %v2277 = vmul.f32 %v1657, %v2270
      %v2278 = vmul.f32 %v1658, %v2270
      %v2279 = vmul.f32 %v1659, %v2270
      %v2280 = vmul.f32 %v1660, %v2270
      %v2281 = vmul.f32 %v1661, %v2270
      %v2282 = vmul.f32 %v1662, %v2270
      %v2283 = vmul.f32 %v1663, %v2270
      %v2284 = vmul.f32 %v1664, %v2270
      %v2285 = vmul.f32 %v1665, %v2270
      %v2286 = vmul.f32 %v1666, %v2270
      %v2287 = vmul.f32 %v1667, %v2270
      %v2288 = vmul.f32 %v1668, %v2270
      %v2289 = vmul.f32 %v1669, %v2270
      %v2290 = vmul.f32 %v1670, %v2270
      %v2291 = vmul.f32 %v1671, %v2270
      %v2292 = vmul.f32 %v1672, %v2270
      %v2293 = vmul.f32 %v1673, %v2270
      %v2294 = vmul.f32 %v1674, %v2270
      %v2295 = vmul.f32 %v1675, %v2270
      %v2296 = vmul.f32 %v1676, %v2270
      %v2297 = vmul.f32 %v1677, %v2270
      %v2298 = vmul.f32 %v1678, %v2270
      %v2299 = vmul.f32 %v1679, %v2270
      %v2300 = vmul.f32 %v1680, %v2270
      %v2301 = vmul.f32 %v1681, %v2270
      %v2302 = vmul.f32 %v1682, %v2270
      %v2303 = vadd.f32 %v2238, %v2271
      %v2304 = vadd.f32 %v2239, %v2272
      %v2305 = vadd.f32 %v2240, %v2273
      %v2306 = vadd.f32 %v2241, %v2274
      %v2307 = vadd.f32 %v2242, %v2275
      %v2308 = vadd.f32 %v2243, %v2276
      %v2309 = vadd.f32 %v2244, %v2277
      %v2310 = vadd.f32 %v2245, %v2278
      %v2311 = vadd.f32 %v2246, %v2279
      %v2312 = vadd.f32 %v2247, %v2280
      %v2313 = vadd.f32 %v2248, %v2281
      %v2314 = vadd.f32 %v2249, %v2282
      %v2315 = vadd.f32 %v2250, %v2283
      %v2316 = vadd.f32 %v2251, %v2284
      %v2317 = vadd.f32 %v2252, %v2285
      %v2318 = vadd.f32 %v2253, %v2286
      %v2319 = vadd.f32 %v2254, %v2287
      %v2320 = vadd.f32 %v2255, %v2288
      %v2321 = vadd.f32 %v2256, %v2289
      %v2322 = vadd.f32 %v2257, %v2290
      %v2323 = vadd.f32 %v2258, %v2291
      %v2324 = vadd.f32 %v2259, %v2292
      %v2325 = vadd.f32 %v2260, %v2293
      %v2326 = vadd.f32 %v2261, %v2294
      %v2327 = vadd.f32 %v2262, %v2295
      %v2328 = vadd.f32 %v2263, %v2296
      %v2329 = vadd.f32 %v2264, %v2297
      %v2330 = vadd.f32 %v2265, %v2298
      %v2331 = vadd.f32 %v2266, %v2299
      %v2332 = vadd.f32 %v2267, %v2300
      %v2333 = vadd.f32 %v2268, %v2301
      %v2334 = vadd.f32 %v2269, %v2302
      %v2335 = vld [vmem:[%s8] sm:$0x1]
      %v2337 = vlaneseq
      %v2338 = vshrl.u32 %v2337, 7
      %v2339 = vsub.s32 0, %v2338
      %v2340 = vrot.slane %v2335, %v2339
      %v2342 = vmul.f32 %v2303, %v2340
      %v2343 = vmul.f32 %v2304, %v2340
      %v2344 = vmul.f32 %v2305, %v2340
      %v2345 = vmul.f32 %v2306, %v2340
      %v2346 = vmul.f32 %v2307, %v2340
      %v2347 = vmul.f32 %v2308, %v2340
      %v2348 = vmul.f32 %v2309, %v2340
      %v2349 = vmul.f32 %v2310, %v2340
      %v2350 = vmul.f32 %v2311, %v2340
      %v2351 = vmul.f32 %v2312, %v2340
      %v2352 = vmul.f32 %v2313, %v2340
      %v2353 = vmul.f32 %v2314, %v2340
      %v2354 = vmul.f32 %v2315, %v2340
      %v2355 = vmul.f32 %v2316, %v2340
      %v2356 = vmul.f32 %v2317, %v2340
      %v2357 = vmul.f32 %v2318, %v2340
      %v2358 = vmul.f32 %v2319, %v2340
      %v2359 = vmul.f32 %v2320, %v2340
      %v2360 = vmul.f32 %v2321, %v2340
      %v2361 = vmul.f32 %v2322, %v2340
      %v2362 = vmul.f32 %v2323, %v2340
      %v2363 = vmul.f32 %v2324, %v2340
      %v2364 = vmul.f32 %v2325, %v2340
      %v2365 = vmul.f32 %v2326, %v2340
      %v2366 = vmul.f32 %v2327, %v2340
      %v2367 = vmul.f32 %v2328, %v2340
      %v2368 = vmul.f32 %v2329, %v2340
      %v2369 = vmul.f32 %v2330, %v2340
      %v2370 = vmul.f32 %v2331, %v2340
      %v2371 = vmul.f32 %v2332, %v2340
      %v2372 = vmul.f32 %v2333, %v2340
      %v2373 = vmul.f32 %v2334, %v2340
      %v2374 = vld [vmem:[%s9] sm:$0x1]
      %v2376 = vlaneseq
      %v2377 = vshrl.u32 %v2376, 7
      %v2378 = vsub.s32 0, %v2377
      %v2379 = vrot.slane %v2374, %v2378
      %v2381 = vadd.f32 %v2342, %v2379
      %v2382 = vadd.f32 %v2343, %v2379
      %v2383 = vadd.f32 %v2344, %v2379
      %v2384 = vadd.f32 %v2345, %v2379
      %v2385 = vadd.f32 %v2346, %v2379
      %v2386 = vadd.f32 %v2347, %v2379
      %v2387 = vadd.f32 %v2348, %v2379
      %v2388 = vadd.f32 %v2349, %v2379
      %v2389 = vadd.f32 %v2350, %v2379
      %v2390 = vadd.f32 %v2351, %v2379
      %v2391 = vadd.f32 %v2352, %v2379
      %v2392 = vadd.f32 %v2353, %v2379
      %v2393 = vadd.f32 %v2354, %v2379
      %v2394 = vadd.f32 %v2355, %v2379
      %v2395 = vadd.f32 %v2356, %v2379
      %v2396 = vadd.f32 %v2357, %v2379
      %v2397 = vadd.f32 %v2358, %v2379
      %v2398 = vadd.f32 %v2359, %v2379
      %v2399 = vadd.f32 %v2360, %v2379
      %v2400 = vadd.f32 %v2361, %v2379
      %v2401 = vadd.f32 %v2362, %v2379
      %v2402 = vadd.f32 %v2363, %v2379
      %v2403 = vadd.f32 %v2364, %v2379
      %v2404 = vadd.f32 %v2365, %v2379
      %v2405 = vadd.f32 %v2366, %v2379
      %v2406 = vadd.f32 %v2367, %v2379
      %v2407 = vadd.f32 %v2368, %v2379
      %v2408 = vadd.f32 %v2369, %v2379
      %v2409 = vadd.f32 %v2370, %v2379
      %v2410 = vadd.f32 %v2371, %v2379
      %v2411 = vadd.f32 %v2372, %v2379
      %v2412 = vadd.f32 %v2373, %v2379
      %v2413 = vmax.f32 %v2381, 0.0
      %v2414 = vmax.f32 %v2382, 0.0
      %v2415 = vmax.f32 %v2383, 0.0
      %v2416 = vmax.f32 %v2384, 0.0
      %v2417 = vmax.f32 %v2385, 0.0
      %v2418 = vmax.f32 %v2386, 0.0
      %v2419 = vmax.f32 %v2387, 0.0
      %v2420 = vmax.f32 %v2388, 0.0
      %v2421 = vmax.f32 %v2389, 0.0
      %v2422 = vmax.f32 %v2390, 0.0
      %v2423 = vmax.f32 %v2391, 0.0
      %v2424 = vmax.f32 %v2392, 0.0
      %v2425 = vmax.f32 %v2393, 0.0
      %v2426 = vmax.f32 %v2394, 0.0
      %v2427 = vmax.f32 %v2395, 0.0
      %v2428 = vmax.f32 %v2396, 0.0
      %v2429 = vmax.f32 %v2397, 0.0
      %v2430 = vmax.f32 %v2398, 0.0
      %v2431 = vmax.f32 %v2399, 0.0
      %v2432 = vmax.f32 %v2400, 0.0
      %v2433 = vmax.f32 %v2401, 0.0
      %v2434 = vmax.f32 %v2402, 0.0
      %v2435 = vmax.f32 %v2403, 0.0
      %v2436 = vmax.f32 %v2404, 0.0
      %v2437 = vmax.f32 %v2405, 0.0
      %v2438 = vmax.f32 %v2406, 0.0
      %v2439 = vmax.f32 %v2407, 0.0
      %v2440 = vmax.f32 %v2408, 0.0
      %v2441 = vmax.f32 %v2409, 0.0
      %v2442 = vmax.f32 %v2410, 0.0
      %v2443 = vmax.f32 %v2411, 0.0
      %v2444 = vmax.f32 %v2412, 0.0
      %v2445 = vpack.c.bf16 %v2414, %v2413
      %v2446 = vpack.c.bf16 %v2416, %v2415
      %v2447 = vpack.c.bf16 %v2418, %v2417
      %v2448 = vpack.c.bf16 %v2420, %v2419
      %v2449 = vpack.c.bf16 %v2422, %v2421
      %v2450 = vpack.c.bf16 %v2424, %v2423
      %v2451 = vpack.c.bf16 %v2426, %v2425
      %v2452 = vpack.c.bf16 %v2428, %v2427
      %v2453 = vpack.c.bf16 %v2430, %v2429
      %v2454 = vpack.c.bf16 %v2432, %v2431
      %v2455 = vpack.c.bf16 %v2434, %v2433
      %v2456 = vpack.c.bf16 %v2436, %v2435
      %v2457 = vpack.c.bf16 %v2438, %v2437
      %v2458 = vpack.c.bf16 %v2440, %v2439
      %v2459 = vpack.c.bf16 %v2442, %v2441
      %v2460 = vpack.c.bf16 %v2444, %v2443
      %v2477 = vunpack.c.l.b16 %v2445
      %v2478 = vunpack.c.h.b16 %v2445
      %v2479 = vunpack.c.l.b16 %v2446
      %v2480 = vunpack.c.h.b16 %v2446
      %v2481 = vunpack.c.l.b16 %v2447
      %v2482 = vunpack.c.h.b16 %v2447
      %v2483 = vunpack.c.l.b16 %v2448
      %v2484 = vunpack.c.h.b16 %v2448
      %v2485 = vunpack.c.l.b16 %v2449
      %v2486 = vunpack.c.h.b16 %v2449
      %v2487 = vunpack.c.l.b16 %v2450
      %v2488 = vunpack.c.h.b16 %v2450
      %v2489 = vunpack.c.l.b16 %v2451
      %v2490 = vunpack.c.h.b16 %v2451
      %v2491 = vunpack.c.l.b16 %v2452
      %v2492 = vunpack.c.h.b16 %v2452
      %v2493 = vunpack.c.l.b16 %v2453
      %v2494 = vunpack.c.h.b16 %v2453
      %v2495 = vunpack.c.l.b16 %v2454
      %v2496 = vunpack.c.h.b16 %v2454
      %v2497 = vunpack.c.l.b16 %v2455
      %v2498 = vunpack.c.h.b16 %v2455
      %v2499 = vunpack.c.l.b16 %v2456
      %v2500 = vunpack.c.h.b16 %v2456
      %v2501 = vunpack.c.l.b16 %v2457
      %v2502 = vunpack.c.h.b16 %v2457
      %v2503 = vunpack.c.l.b16 %v2458
      %v2504 = vunpack.c.h.b16 %v2458
      %v2505 = vunpack.c.l.b16 %v2459
      %v2506 = vunpack.c.h.b16 %v2459
      %v2507 = vunpack.c.l.b16 %v2460
      %v2508 = vunpack.c.h.b16 %v2460
      %v2509 = vpack.c.b16 %v2477, %v2477
      %v2510 = vpack.c.b16 %v2478, %v2478
      %v2511 = vpack.c.b16 %v2479, %v2479
      %v2512 = vpack.c.b16 %v2480, %v2480
      %v2513 = vpack.c.b16 %v2481, %v2481
      %v2514 = vpack.c.b16 %v2482, %v2482
      %v2515 = vpack.c.b16 %v2483, %v2483
      %v2516 = vpack.c.b16 %v2484, %v2484
      %v2517 = vpack.c.b16 %v2485, %v2485
      %v2518 = vpack.c.b16 %v2486, %v2486
      %v2519 = vpack.c.b16 %v2487, %v2487
      %v2520 = vpack.c.b16 %v2488, %v2488
      %v2521 = vpack.c.b16 %v2489, %v2489
      %v2522 = vpack.c.b16 %v2490, %v2490
      %v2523 = vpack.c.b16 %v2491, %v2491
      %v2524 = vpack.c.b16 %v2492, %v2492
      %v2525 = vpack.c.b16 %v2493, %v2493
      %v2526 = vpack.c.b16 %v2494, %v2494
      %v2527 = vpack.c.b16 %v2495, %v2495
      %v2528 = vpack.c.b16 %v2496, %v2496
      %v2529 = vpack.c.b16 %v2497, %v2497
      %v2530 = vpack.c.b16 %v2498, %v2498
      %v2531 = vpack.c.b16 %v2499, %v2499
      %v2532 = vpack.c.b16 %v2500, %v2500
      %v2533 = vpack.c.b16 %v2501, %v2501
      %v2534 = vpack.c.b16 %v2502, %v2502
      %v2535 = vpack.c.b16 %v2503, %v2503
      %v2536 = vpack.c.b16 %v2504, %v2504
      %v2537 = vpack.c.b16 %v2505, %v2505
      %v2538 = vpack.c.b16 %v2506, %v2506
      %v2539 = vpack.c.b16 %v2507, %v2507
      %v2540 = vpack.c.b16 %v2508, %v2508
      %vm2573 = vcmask 125952
      %2574 = vst.msk [vmem:[%s379] sm:$0xf] %vm2573, %v2509
      %2575 = vst.msk [vmem:[%s379 + $0x4] sm:$0xf] %vm2573, %v2510
      %2576 = vst.msk [vmem:[%s379 + $0x8] sm:$0xf] %vm2573, %v2511
      %2577 = vst.msk [vmem:[%s379 + $0xc] sm:$0xf] %vm2573, %v2512
      %2578 = vst.msk [vmem:[%s379 + $0x10] sm:$0xf] %vm2573, %v2513
      %2579 = vst.msk [vmem:[%s379 + $0x14] sm:$0xf] %vm2573, %v2514
      %2580 = vst.msk [vmem:[%s379 + $0x18] sm:$0xf] %vm2573, %v2515
      %2581 = vst.msk [vmem:[%s379 + $0x1c] sm:$0xf] %vm2573, %v2516
      %2582 = vst.msk [vmem:[%s379 + $0x20] sm:$0xf] %vm2573, %v2517
      %2583 = vst.msk [vmem:[%s379 + $0x24] sm:$0xf] %vm2573, %v2518
      %2584 = vst.msk [vmem:[%s379 + $0x28] sm:$0xf] %vm2573, %v2519
      %2585 = vst.msk [vmem:[%s379 + $0x2c] sm:$0xf] %vm2573, %v2520
      %2586 = vst.msk [vmem:[%s379 + $0x30] sm:$0xf] %vm2573, %v2521
      %2587 = vst.msk [vmem:[%s379 + $0x34] sm:$0xf] %vm2573, %v2522
      %2588 = vst.msk [vmem:[%s379 + $0x38] sm:$0xf] %vm2573, %v2523
      %2589 = vst.msk [vmem:[%s379 + $0x3c] sm:$0xf] %vm2573, %v2524
      %2590 = vst.msk [vmem:[%s379 + $0x40] sm:$0xf] %vm2573, %v2525
      %2591 = vst.msk [vmem:[%s379 + $0x44] sm:$0xf] %vm2573, %v2526
      %2592 = vst.msk [vmem:[%s379 + $0x48] sm:$0xf] %vm2573, %v2527
      %2593 = vst.msk [vmem:[%s379 + $0x4c] sm:$0xf] %vm2573, %v2528
      %2594 = vst.msk [vmem:[%s379 + $0x50] sm:$0xf] %vm2573, %v2529
      %2595 = vst.msk [vmem:[%s379 + $0x54] sm:$0xf] %vm2573, %v2530
      %2596 = vst.msk [vmem:[%s379 + $0x58] sm:$0xf] %vm2573, %v2531
      %2597 = vst.msk [vmem:[%s379 + $0x5c] sm:$0xf] %vm2573, %v2532
      %2598 = vst.msk [vmem:[%s379 + $0x60] sm:$0xf] %vm2573, %v2533
      %2599 = vst.msk [vmem:[%s379 + $0x64] sm:$0xf] %vm2573, %v2534
      %2600 = vst.msk [vmem:[%s379 + $0x68] sm:$0xf] %vm2573, %v2535
      %2601 = vst.msk [vmem:[%s379 + $0x6c] sm:$0xf] %vm2573, %v2536
      %2602 = vst.msk [vmem:[%s379 + $0x70] sm:$0xf] %vm2573, %v2537
      %2603 = vst.msk [vmem:[%s379 + $0x74] sm:$0xf] %vm2573, %v2538
      %2604 = vst.msk [vmem:[%s379 + $0x78] sm:$0xf] %vm2573, %v2539
      %2605 = vst.msk [vmem:[%s379 + $0x7c] sm:$0xf] %vm2573, %v2540
      %p2606 = scmp.lt.s32.totalorder %s21, 3
      %s2607 = scalar_select %p2606, %s21, 3
      %s2608 = smul.addr %s2607, 32
      %s2609 = smul.addr %s2608, 4
      %s2610 = scalar_lea.vmem %s10, %s2609
      // Predicated region
      $region61: #{bottleneck_forward.4} parent=59 // pred_check
        %p2611 = pneg %p259
      $region62: #{bottleneck_forward.4} parent=59 // pred_check_branch
        %2613 = sbr.rel (%p2611) target = $region64
      $region63: #{bottleneck_forward.4} parent=59 // pred_region
        _
      $region64: #{bottleneck_forward.4} parent=59 // pred_fallthru
        _
    $region60: #{bottleneck_forward.4} parent=5 // pred_fallthru
      _
    %p2614 = scmp.le.s32.totalorder 2, %s16
    // Predicated region
    $region65: #{bottleneck_forward.4} parent=5 // pred_check
      %p2615 = pneg %p2614
    $region66: #{bottleneck_forward.4} parent=5 // pred_check_branch
      %2617 = sbr.rel (%p2615) target = $region68
    $region67: #{bottleneck_forward.4} parent=5 // pred_region
      %s2618 = ssub.s32 %s16, 2
      // Predicated region
      $region69: #{bottleneck_forward.4} parent=67 // pred_check
        %p2619 = pneg %p265
      $region70: #{bottleneck_forward.4} parent=67 // pred_check_branch
        %2621 = sbr.rel (%p2619) target = $region72
      $region71: #{bottleneck_forward.4} parent=67 // pred_region
        %p2622 = scmp.lt.s32.totalorder %s22, 3
        %s2623 = scalar_select %p2622, %s22, 3
        %s2624 = smul.addr %s2623, 32
        %s2625 = smul.addr %s2624, 4
        %s2626 = scalar_lea.vmem %s10, %s2625
      $region72: #{bottleneck_forward.4} parent=67 // pred_fallthru
        _
    $region68: #{bottleneck_forward.4} parent=5 // pred_fallthru
      _
  $region6: #{bottleneck_forward.4} parent=0 // loop_footer
    %s20 = sadd.s32 1, %s16
  $region7: #{bottleneck_forward.4} parent=0 // loop_footer_branch
    %15 = sbr.rel target = $region3
  $region8: #{bottleneck_forward.4} parent=0 // loop_exit
    _

</llo_original>
